<compile_context>
chip_gen: v7x
topology: tpu7x:2x2x1
jax: 0.10.0
libtpu: 0.0.40
codegen_flags: <defaults>
</compile_context>

<pallas_src>
import functools

import jax
import jax.numpy as jnp
from jax.experimental import pallas as pl
from jax.experimental.pallas import tpu as pltpu


def _round_up(x, m):
    return ((x + m - 1) // m) * m


def _tensorcores_per_chip():
    # v7x has 2 TensorCores per chip (the leading "parallel" grid axis is sharded
    # across them); v5e / v6e have 1.
    try:
        kind = jax.devices()[0].device_kind.lower()
    except Exception:
        return 1
    return 2 if "v7" in kind else 1


_VMEM_BUDGET = 40 << 20  # per-pallas_call resident-block budget; safe under v7x's 64 MiB


def _vmem_limit_bytes(block_bytes):
    # Explicit scoped-VMEM request (default is only 16/32 MiB): blocks + margin,
    # floor 32 MiB, cap 64 MiB (v7x physical VMEM).
    return int(min(max(block_bytes + (4 << 20), 32 << 20), 64 << 20))


# ---------------------------------------------------------------------------
# Kernel 1: parallel input projection  xproj = X @ W_ih^T + (b_ih + b_hh)
# ---------------------------------------------------------------------------
def input_proj_kernel(x_ref, wih_ref, b_ref, xp_ref):
    # x_ref: (TM, E), wih_ref: (E, 4Hp), b_ref: (1, 4Hp) f32 -> xp_ref: (TM, 4Hp) bf16/f32
    xp_ref[...] = (
        jnp.dot(x_ref[...], wih_ref[...], preferred_element_type=jnp.float32)
        + b_ref[...]
    ).astype(xp_ref.dtype)


# ---------------------------------------------------------------------------
# Kernel 2: sequential recurrence over time chunks; h/c carried in f32 VMEM scratch.
# ---------------------------------------------------------------------------
def lstm_recurrent_kernel(xp_ref, whh_ref, wfc_ref, bfc_ref, out_ref, h_sc, c_sc,
                          *, seq_len, time_chunk):
    t = pl.program_id(1)  # time-chunk index (axis 0 is the parallel batch tile)

    @pl.when(t == 0)
    def _init():
        h_sc[...] = jnp.zeros_like(h_sc)
        c_sc[...] = jnp.zeros_like(c_sc)

    hp = h_sc.shape[-1]
    needs_mask = (seq_len % time_chunk) != 0  # only the padded tail chunk needs masking

    def step(i, carry):
        h, c = carry
        # gates: (bt, 4Hp) f32 = hoisted x-projection + h_prev @ W_hh^T (MXU, f32 acc)
        # TODO(synk): on v5e at small bt, drive the MXU directly with
        # pltpu.matmul_push_rhs / matmul_acc_lhs / matmul_pop so W_hh^T stays resident
        # in the weight registers across the unrolled chunk.
        gates = xp_ref[i].astype(jnp.float32) + jnp.dot(
            h.astype(whh_ref.dtype), whh_ref[...],
            preferred_element_type=jnp.float32)
        # lane-aligned gate slices (Hp is a multiple of 128), PyTorch order [i, f, g, o]
        i_g = jax.nn.sigmoid(gates[:, 0 * hp:1 * hp])
        f_g = jax.nn.sigmoid(gates[:, 1 * hp:2 * hp])
        g_g = jnp.tanh(gates[:, 2 * hp:3 * hp])
        o_g = jax.nn.sigmoid(gates[:, 3 * hp:4 * hp])
        c_new = f_g * c + i_g * g_g
        h_new = o_g * jnp.tanh(c_new)
        if needs_mask:
            # Padded timesteps must keep the previous state (zero xproj is NOT identity).
            m = ((t * time_chunk + i) < seq_len).astype(jnp.float32)
            h_new = m * h_new + (1.0 - m) * h
            c_new = m * c_new + (1.0 - m) * c
        return h_new, c_new

    h, c = jax.lax.fori_loop(0, time_chunk, step, (h_sc[...], c_sc[...]), unroll=True)
    h_sc[...] = h
    c_sc[...] = c

    # Last time chunk: logits = h_T @ W_fc^T + b_fc  (== fc(lstm_out[:, -1, :])).
    # Relies on revisit-output semantics: keep the time axis innermost in the grid.
    @pl.when(t == pl.num_programs(1) - 1)
    def _final():
        logits = jnp.dot(h.astype(wfc_ref.dtype), wfc_ref[...],
                         preferred_element_type=jnp.float32) + bfc_ref[...]
        out_ref[...] = logits.astype(out_ref.dtype)


# ---------------------------------------------------------------------------
# Param preparation (transpose + per-gate lane padding, done once)
# ---------------------------------------------------------------------------
def prepare_pallas_params(params, matmul_dtype=jnp.bfloat16):
    """Transpose + pad PyTorch-layout LSTM params for the Pallas kernels.

    bf16 matmul operands by default (f32 accumulation / gate math inside the kernels);
    pass matmul_dtype=jnp.float32 for strict-f32 parity runs.
    """
    emb = params["embedding"]               # (V, E)
    w_ih = params["w_ih"]                   # (4H, E)
    w_hh = params["w_hh"]                   # (4H, H)
    b = params["b_ih"] + params["b_hh"]     # (4H,)
    w_fc = params["w_fc"]                   # (C, H)
    b_fc = params["b_fc"]                   # (C,)

    E = w_ih.shape[1]
    H = w_hh.shape[1]
    C = w_fc.shape[0]
    Hp = _round_up(H, 128)                  # lane-aligned per-gate blocks
    Cp = _round_up(C, 128)                  # lane-dense output store

    # Pad each gate block [i,f,g,o] from H -> Hp with zeros (padded state stays 0).
    w_ih_t = jnp.pad(w_ih.reshape(4, H, E),
                     ((0, 0), (0, Hp - H), (0, 0))).reshape(4 * Hp, E).T  # (E, 4Hp)
    w_hh_t = jnp.pad(w_hh.reshape(4, H, H),
                     ((0, 0), (0, Hp - H), (0, Hp - H))).reshape(4 * Hp, Hp).T  # (Hp, 4Hp)
    b_p = jnp.pad(b.reshape(4, H), ((0, 0), (0, Hp - H))).reshape(1, 4 * Hp)
    w_fc_t = jnp.pad(w_fc, ((0, Cp - C), (0, Hp - H))).T                  # (Hp, Cp)
    b_fc_p = jnp.pad(b_fc, (0, Cp - C)).reshape(1, Cp)

    return {
        "embedding": emb.astype(matmul_dtype),
        "w_ih_t": w_ih_t.astype(matmul_dtype),
        "w_hh_t": w_hh_t.astype(matmul_dtype),
        "b": b_p.astype(jnp.float32),        # folded into the hoisted projection (f32 add)
        "w_fc_t": w_fc_t.astype(matmul_dtype),
        "b_fc": b_fc_p.astype(jnp.float32),
    }


# ---------------------------------------------------------------------------
# Forward
# ---------------------------------------------------------------------------
@functools.partial(jax.jit, static_argnames=("num_classes", "time_chunk",
                                              "single_buffer_weights"))
def lstm_model_forward(input_ids, pallas_params, num_classes,
                       time_chunk=8, single_buffer_weights=True):
    emb = pallas_params["embedding"]     # (V, E)
    w_ih_t = pallas_params["w_ih_t"]     # (E, 4Hp)
    w_hh_t = pallas_params["w_hh_t"]     # (Hp, 4Hp)
    b = pallas_params["b"]               # (1, 4Hp) f32
    w_fc_t = pallas_params["w_fc_t"]     # (Hp, Cp)
    b_fc = pallas_params["b_fc"]         # (1, Cp) f32

    B, T = input_ids.shape
    E = w_ih_t.shape[0]
    Hp = w_hh_t.shape[0]
    Cp = w_fc_t.shape[1]
    G = 4 * Hp

    xp_dtype = w_ih_t.dtype              # bf16 intermediate by default
    w_isz = jnp.dtype(w_ih_t.dtype).itemsize
    xp_isz = jnp.dtype(xp_dtype).itemsize

    def _const_spec(shape, index_map):
        # Constant block index -> fetched once; single-buffer to halve resident weight VMEM.
        if single_buffer_weights:
            return pl.BlockSpec(shape, index_map, pipeline_mode=pl.Buffered(1))
        return pl.BlockSpec(shape, index_map)

    # --- generation-aware batch tiling ---------------------------------------
    if _tensorcores_per_chip() >= 2 and _round_up(B, 8) >= 16:
        Bp = _round_up(B, 16)            # v7x: 2 parallel tiles -> both TensorCores busy
        bt = Bp // 2
    else:
        Bp = _round_up(B, 8)             # v5e/v6e: full batch tile keeps MXU M-width
        bt = Bp

    # --- time-chunk selection under the VMEM block budget --------------------
    def _p2_bytes(tc):
        wbytes = Hp * G * w_isz + Hp * Cp * w_isz + Cp * 4
        return (2 * tc * bt * G * xp_isz                       # streamed xproj chunk (x2 bufs)
                + (wbytes if single_buffer_weights else 2 * wbytes)
                + 2 * bt * Cp * 4                              # logits output (x2 bufs)
                + 2 * bt * Hp * 4)                             # h/c carry scratch

    TC = max(1, min(T, time_chunk if time_chunk else 8))
    while TC > 1 and _p2_bytes(TC) > _VMEM_BUDGET:
        TC = max(1, TC // 2)
    T_pad = _round_up(T, TC)             # padded steps are masked inside the kernel

    # --- embedding gather directly into time-major layout --------------------
    # TODO(synk): fuse this gather into pass 1 via scalar-prefetched ids + pl.Element
    # row-gather BlockSpec, eliminating one HBM round-trip of the (T, Bp, E) activations.
    x = jnp.take(emb, input_ids.T, axis=0)                     # (T, B, E)
    x = jnp.pad(x, ((0, T_pad - T), (0, Bp - B), (0, 0)))
    rows = T_pad * Bp
    x2d = x.reshape(rows, E)

    # --- pass-1 row tile, decoupled from the recurrence chunk -----------------
    def _p1_bytes(tm):
        wbytes = E * G * w_isz + G * 4
        return (2 * tm * E * w_isz + 2 * tm * G * xp_isz
                + (wbytes if single_buffer_weights else 2 * wbytes))

    TM = min(512, rows)                  # large streaming tile -> near HBM roofline
    while TM > 8 and _p1_bytes(TM) > _VMEM_BUDGET:
        TM = _round_up(TM // 2, 8)
    rows_p = _round_up(rows, TM)
    if rows_p != rows:
        x2d = jnp.pad(x2d, ((0, rows_p - rows), (0, 0)))

    # --- Pass 1: parallel input projection over all timesteps ----------------
    xproj2d = pl.pallas_call(
        input_proj_kernel,
        out_shape=jax.ShapeDtypeStruct((rows_p, G), xp_dtype),
        grid_spec=pltpu.PrefetchScalarGridSpec(
            num_scalar_prefetch=0,
            grid=(rows_p // TM,),
            in_specs=[
                pl.BlockSpec((TM, E), lambda i: (i, 0)),       # x rows (streamed)
                _const_spec((E, G), lambda i: (0, 0)),         # W_ih^T (single-buffered)
                _const_spec((1, G), lambda i: (0, 0)),         # b_ih + b_hh
            ],
            out_specs=pl.BlockSpec((TM, G), lambda i: (i, 0)),
        ),
        compiler_params=pltpu.CompilerParams(
            dimension_semantics=("parallel",),
            vmem_limit_bytes=_vmem_limit_bytes(_p1_bytes(TM)),
        ),
    )(x2d, w_ih_t, b)
    xproj = xproj2d[:rows].reshape(T_pad, Bp, G)

    # --- Pass 2: sequential recurrence (batch tiles parallel, time innermost) -
    kernel = functools.partial(lstm_recurrent_kernel, seq_len=T, time_chunk=TC)
    out_p = pl.pallas_call(
        kernel,
        out_shape=jax.ShapeDtypeStruct((Bp, Cp), jnp.float32),
        grid_spec=pltpu.PrefetchScalarGridSpec(
            num_scalar_prefetch=0,
            grid=(Bp // bt, T_pad // TC),
            in_specs=[
                # TODO(synk): sweep pipeline_mode=pl.Buffered(3) here if the chunk DMA is
                # exposed at small bt/H (verify VMEM headroom on v7x first).
                pl.BlockSpec((TC, bt, G), lambda bi, ti: (ti, bi, 0)),  # xproj chunk
                _const_spec((Hp, G), lambda bi, ti: (0, 0)),            # W_hh^T
                _const_spec((Hp, Cp), lambda bi, ti: (0, 0)),           # W_fc^T
                _const_spec((1, Cp), lambda bi, ti: (0, 0)),            # b_fc
            ],
            out_specs=pl.BlockSpec((bt, Cp), lambda bi, ti: (bi, 0)),
            scratch_shapes=[
                pltpu.VMEM((bt, Hp), jnp.float32),   # h carry (f32)
                pltpu.VMEM((bt, Hp), jnp.float32),   # c carry (f32)
            ],
        ),
        compiler_params=pltpu.CompilerParams(
            dimension_semantics=("parallel", "arbitrary"),
            vmem_limit_bytes=_vmem_limit_bytes(_p2_bytes(TC)),
        ),
    )(xproj, w_hh_t, w_fc_t, b_fc)

    # Dropout(p=0.2) is identity at inference (eval mode).
    # TODO(synk): training-mode dropout (pltpu.prng_seed + stateful_bernoulli) not implemented.
    return out_p[:B, :num_classes]


# ---------------------------------------------------------------------------
# Pure-JAX reference (PyTorch-equivalent semantics) + init
# ---------------------------------------------------------------------------
def init_params(key, vocab_size, embedding_dim, hidden_size, num_classes):
    k = jax.random.split(key, 7)
    H, E, C = hidden_size, embedding_dim, num_classes
    s = 1.0 / (H ** 0.5)
    return {
        "embedding": jax.random.normal(k[0], (vocab_size, E), jnp.float32),
        "w_ih": jax.random.uniform(k[1], (4 * H, E), jnp.float32, -s, s),
        "w_hh": jax.random.uniform(k[2], (4 * H, H), jnp.float32, -s, s),
        "b_ih": jax.random.uniform(k[3], (4 * H,), jnp.float32, -s, s),
        "b_hh": jax.random.uniform(k[4], (4 * H,), jnp.float32, -s, s),
        "w_fc": jax.random.uniform(k[5], (C, H), jnp.float32, -s, s),
        "b_fc": jax.random.uniform(k[6], (C,), jnp.float32, -s, s),
    }


def reference_forward(input_ids, params):
    x = jnp.take(params["embedding"], input_ids, axis=0)   # (B, T, E)
    w_ih, w_hh = params["w_ih"], params["w_hh"]
    b = params["b_ih"] + params["b_hh"]
    H = w_hh.shape[1]
    B = x.shape[0]

    def step(carry, x_t):
        h, c = carry
        g = x_t @ w_ih.T + h @ w_hh.T + b
        i_g = jax.nn.sigmoid(g[:, 0 * H:1 * H])
        f_g = jax.nn.sigmoid(g[:, 1 * H:2 * H])
        g_g = jnp.tanh(g[:, 2 * H:3 * H])
        o_g = jax.nn.sigmoid(g[:, 3 * H:4 * H])
        c = f_g * c + i_g * g_g
        h = o_g * jnp.tanh(c)
        return (h, c), None

    init = (jnp.zeros((B, H), jnp.float32), jnp.zeros((B, H), jnp.float32))
    (h, _), _ = jax.lax.scan(step, init, jnp.transpose(x, (1, 0, 2)))
    return h @ params["w_fc"].T + params["b_fc"]


if __name__ == "__main__":
    vocab_size, embedding_dim, hidden_size, num_classes = 50, 16, 32, 4
    batch, seq_len = 2, 8

    key = jax.random.PRNGKey(0)
    pkey, ikey = jax.random.split(key)
    params = init_params(pkey, vocab_size, embedding_dim, hidden_size, num_classes)
    input_ids = jax.random.randint(ikey, (batch, seq_len), 0, vocab_size, jnp.int32)

    # bf16 operands / bf16 xproj intermediate by default (f32 accumulation + gate math).
    pallas_params = prepare_pallas_params(params)

    def run(single_buffer_weights):
        return jax.block_until_ready(
            lstm_model_forward(input_ids, pallas_params, num_classes=num_classes,
                               time_chunk=4,
                               single_buffer_weights=single_buffer_weights))

    try:
        out = run(True)
    except Exception:
        # Fallback if this JAX build rejects pl.Buffered(1) single-buffering of weights.
        out = run(False)

    assert out.shape == (batch, num_classes)

    ref = jax.block_until_ready(reference_forward(input_ids, params))
    assert bool(jnp.allclose(out, ref, rtol=1e-1, atol=1e-1)), (
        f"mismatch vs reference, max abs diff = {jnp.max(jnp.abs(out - ref))}")

    print("KERNEL_OK")
</pallas_src>

<mosaic_0001>
module attributes {stable_mosaic.version = 11 : i64} {
  func.func @input_proj_kernel(%arg0: i32, %arg1: memref<64x16xbf16, #tpu.memory_space<vmem>>, %arg2: memref<16x512xbf16, #tpu.memory_space<vmem>>, %arg3: memref<1x512xf32, #tpu.memory_space<vmem>>, %arg4: memref<64x512xbf16, #tpu.memory_space<vmem>>) attributes {dimension_semantics = [#tpu.dimension_semantics<parallel>], iteration_bounds = array<i64: 1>, scalar_prefetch = 0 : i64, scratch_operands = 0 : i64, tpu.core_type = #tpu.core_type<tc>, window_params = [{transform_indices = @transform_0, window_bounds = array<i64: 64, 16>}, {pipeline_mode = #tpu.pipeline_mode<synchronous>, transform_indices = @transform_1, window_bounds = array<i64: 16, 512>}, {pipeline_mode = #tpu.pipeline_mode<synchronous>, transform_indices = @transform_2, window_bounds = array<i64: 1, 512>}, {transform_indices = @transform_3, window_bounds = array<i64: 64, 512>}]} {
    %c0 = arith.constant 0 : index
    %c0_0 = arith.constant 0 : index
    %0 = vector.load %arg1[%c0, %c0_0] : memref<64x16xbf16, #tpu.memory_space<vmem>>, vector<64x16xbf16>
    %c0_1 = arith.constant 0 : index
    %c0_2 = arith.constant 0 : index
    %1 = vector.load %arg2[%c0_1, %c0_2] : memref<16x512xbf16, #tpu.memory_space<vmem>>, vector<16x512xbf16>
    %cst = arith.constant dense<0.000000e+00> : vector<64x512xf32>
    %2 = tpu.matmul %0, %1, %cst {dimension_numbers = #tpu.dot_dimension_numbers<[1], [0], [0], [1], [0, 0, 1, 1], [], []>} : vector<64x16xbf16>, vector<16x512xbf16>, vector<64x512xf32> -> vector<64x512xf32>
    %c0_3 = arith.constant 0 : index
    %c0_4 = arith.constant 0 : index
    %3 = vector.load %arg3[%c0_3, %c0_4] : memref<1x512xf32, #tpu.memory_space<vmem>>, vector<1x512xf32>
    %4 = vector.broadcast %3 : vector<1x512xf32> to vector<64x512xf32>
    %5 = arith.addf %2, %4 : vector<64x512xf32>
    %6 = arith.truncf %5 : vector<64x512xf32> to vector<64x512xbf16>
    %c0_5 = arith.constant 0 : index
    %c0_6 = arith.constant 0 : index
    %7 = vector.load %arg4[%c0_5, %c0_6] : memref<64x512xbf16, #tpu.memory_space<vmem>>, vector<64x512xbf16>
    tpu.vector_store %arg4[%c0_5, %c0_6], %6 {strides = array<i32>} : memref<64x512xbf16, #tpu.memory_space<vmem>>, vector<64x512xbf16>,
    return
  }
  func.func @transform_0(%arg0: i32) -> (i32, i32) {
    %c0_i32 = arith.constant 0 : i32
    %c0_i32_0 = arith.constant 0 : i32
    return %arg0, %c0_i32 : i32, i32
  }
  func.func @transform_1(%arg0: i32) -> (i32, i32) {
    %c0_i32 = arith.constant 0 : i32
    %c0_i32_0 = arith.constant 0 : i32
    %c0_i32_1 = arith.constant 0 : i32
    return %c0_i32, %c0_i32_0 : i32, i32
  }
  func.func @transform_2(%arg0: i32) -> (i32, i32) {
    %c0_i32 = arith.constant 0 : i32
    %c0_i32_0 = arith.constant 0 : i32
    %c0_i32_1 = arith.constant 0 : i32
    return %c0_i32, %c0_i32_0 : i32, i32
  }
  func.func @transform_3(%arg0: i32) -> (i32, i32) {
    %c0_i32 = arith.constant 0 : i32
    %c0_i32_0 = arith.constant 0 : i32
    return %arg0, %c0_i32 : i32, i32
  }
}

module attributes {stable_mosaic.version = 11 : i64} {
  func.func @lstm_recurrent_kernel(%arg0: i32, %arg1: i32, %arg2: memref<4x8x512xbf16, #tpu.memory_space<vmem>>, %arg3: memref<128x512xbf16, #tpu.memory_space<vmem>>, %arg4: memref<128x128xbf16, #tpu.memory_space<vmem>>, %arg5: memref<1x128xf32, #tpu.memory_space<vmem>>, %arg6: memref<8x128xf32, #tpu.memory_space<vmem>>, %arg7: memref<8x128xf32, #tpu.memory_space<vmem>>, %arg8: memref<8x128xf32, #tpu.memory_space<vmem>>) attributes {dimension_semantics = [#tpu.dimension_semantics<parallel>, #tpu.dimension_semantics<arbitrary>], iteration_bounds = array<i64: 1, 2>, scalar_prefetch = 0 : i64, scratch_operands = 2 : i64, tpu.core_type = #tpu.core_type<tc>, window_params = [{transform_indices = @transform_0, window_bounds = array<i64: 4, 8, 512>}, {pipeline_mode = #tpu.pipeline_mode<synchronous>, transform_indices = @transform_1, window_bounds = array<i64: 128, 512>}, {pipeline_mode = #tpu.pipeline_mode<synchronous>, transform_indices = @transform_2, window_bounds = array<i64: 128, 128>}, {pipeline_mode = #tpu.pipeline_mode<synchronous>, transform_indices = @transform_3, window_bounds = array<i64: 1, 128>}, {transform_indices = @transform_4, window_bounds = array<i64: 8, 128>}]} {
    %c0_i32 = arith.constant 0 : i32
    %0 = arith.cmpi eq, %arg1, %c0_i32 : i32
    %1 = arith.extui %0 : i1 to i32
    %c0_i32_0 = arith.constant 0 : i32
    %2 = arith.cmpi ne, %1, %c0_i32_0 : i32
    scf.if %2 {
      %cst_42 = arith.constant 0.000000e+00 : f32
      %142 = vector.broadcast %cst_42 : f32 to vector<8x128xf32>
      %c0_43 = arith.constant 0 : index
      %c0_44 = arith.constant 0 : index
      %143 = vector.load %arg7[%c0_43, %c0_44] : memref<8x128xf32, #tpu.memory_space<vmem>>, vector<8x128xf32>
      tpu.vector_store %arg7[%c0_43, %c0_44], %142 {strides = array<i32>} : memref<8x128xf32, #tpu.memory_space<vmem>>, vector<8x128xf32>,
      %cst_45 = arith.constant 0.000000e+00 : f32
      %144 = vector.broadcast %cst_45 : f32 to vector<8x128xf32>
      %c0_46 = arith.constant 0 : index
      %c0_47 = arith.constant 0 : index
      %145 = vector.load %arg8[%c0_46, %c0_47] : memref<8x128xf32, #tpu.memory_space<vmem>>, vector<8x128xf32>
      tpu.vector_store %arg8[%c0_46, %c0_47], %144 {strides = array<i32>} : memref<8x128xf32, #tpu.memory_space<vmem>>, vector<8x128xf32>,
    } else {
    }
    %c0 = arith.constant 0 : index
    %c0_1 = arith.constant 0 : index
    %3 = vector.load %arg7[%c0, %c0_1] : memref<8x128xf32, #tpu.memory_space<vmem>>, vector<8x128xf32>
    %c0_2 = arith.constant 0 : index
    %c0_3 = arith.constant 0 : index
    %4 = vector.load %arg8[%c0_2, %c0_3] : memref<8x128xf32, #tpu.memory_space<vmem>>, vector<8x128xf32>
    %c0_i32_4 = arith.constant 0 : i32
    %5 = arith.index_cast %c0_i32_4 : i32 to index
    %c0_5 = arith.constant 0 : index
    %c0_6 = arith.constant 0 : index
    %6 = vector.load %arg2[%5, %c0_5, %c0_6] : memref<4x8x512xbf16, #tpu.memory_space<vmem>>, vector<1x8x512xbf16>
    %7 = vector.shape_cast %6 : vector<1x8x512xbf16> to vector<8x512xbf16>
    %8 = arith.extf %7 : vector<8x512xbf16> to vector<8x512xf32>
    %9 = arith.truncf %3 : vector<8x128xf32> to vector<8x128xbf16>
    %c0_7 = arith.constant 0 : index
    %c0_8 = arith.constant 0 : index
    %10 = vector.load %arg3[%c0_7, %c0_8] : memref<128x512xbf16, #tpu.memory_space<vmem>>, vector<128x512xbf16>
    %cst = arith.constant dense<0.000000e+00> : vector<8x512xf32>
    %11 = tpu.matmul %9, %10, %cst {dimension_numbers = #tpu.dot_dimension_numbers<[1], [0], [0], [1], [0, 0, 1, 1], [], []>} : vector<8x128xbf16>, vector<128x512xbf16>, vector<8x512xf32> -> vector<8x512xf32>
    %12 = arith.addf %8, %11 : vector<8x512xf32>
    %13 = vector.extract_strided_slice %12 {offsets = [0, 0], sizes = [8, 128], strides = [1, 1]} : vector<8x512xf32> to vector<8x128xf32>
    %14 = arith.negf %13 : vector<8x128xf32>
    %15 = math.exp %14 : vector<8x128xf32>
    %cst_9 = arith.constant 1.000000e+00 : f32
    %16 = vector.broadcast %cst_9 : f32 to vector<8x128xf32>
    %17 = arith.addf %16, %15 : vector<8x128xf32>
    %18 = arith.divf %16, %17 : vector<8x128xf32>
    %19 = vector.extract_strided_slice %12 {offsets = [0, 128], sizes = [8, 128], strides = [1, 1]} : vector<8x512xf32> to vector<8x128xf32>
    %20 = arith.negf %19 : vector<8x128xf32>
    %21 = math.exp %20 : vector<8x128xf32>
    %cst_10 = arith.constant 1.000000e+00 : f32
    %22 = vector.broadcast %cst_10 : f32 to vector<8x128xf32>
    %23 = arith.addf %22, %21 : vector<8x128xf32>
    %24 = arith.divf %22, %23 : vector<8x128xf32>
    %25 = vector.extract_strided_slice %12 {offsets = [0, 256], sizes = [8, 128], strides = [1, 1]} : vector<8x512xf32> to vector<8x128xf32>
    %26 = math.tanh %25 : vector<8x128xf32>
    %27 = vector.extract_strided_slice %12 {offsets = [0, 384], sizes = [8, 128], strides = [1, 1]} : vector<8x512xf32> to vector<8x128xf32>
    %28 = arith.negf %27 : vector<8x128xf32>
    %29 = math.exp %28 : vector<8x128xf32>
    %cst_11 = arith.constant 1.000000e+00 : f32
    %30 = vector.broadcast %cst_11 : f32 to vector<8x128xf32>
    %31 = arith.addf %30, %29 : vector<8x128xf32>
    %32 = arith.divf %30, %31 : vector<8x128xf32>
    %33 = arith.mulf %24, %4 : vector<8x128xf32>
    %34 = arith.mulf %18, %26 : vector<8x128xf32>
    %35 = arith.addf %33, %34 : vector<8x128xf32>
    %36 = math.tanh %35 : vector<8x128xf32>
    %37 = arith.mulf %32, %36 : vector<8x128xf32>
    %c1_i32 = arith.constant 1 : i32
    %38 = arith.index_cast %c1_i32 : i32 to index
    %c0_12 = arith.constant 0 : index
    %c0_13 = arith.constant 0 : index
    %39 = vector.load %arg2[%38, %c0_12, %c0_13] : memref<4x8x512xbf16, #tpu.memory_space<vmem>>, vector<1x8x512xbf16>
    %40 = vector.shape_cast %39 : vector<1x8x512xbf16> to vector<8x512xbf16>
    %41 = arith.extf %40 : vector<8x512xbf16> to vector<8x512xf32>
    %42 = arith.truncf %37 : vector<8x128xf32> to vector<8x128xbf16>
    %c0_14 = arith.constant 0 : index
    %c0_15 = arith.constant 0 : index
    %43 = vector.load %arg3[%c0_14, %c0_15] : memref<128x512xbf16, #tpu.memory_space<vmem>>, vector<128x512xbf16>
    %cst_16 = arith.constant dense<0.000000e+00> : vector<8x512xf32>
    %44 = tpu.matmul %42, %43, %cst_16 {dimension_numbers = #tpu.dot_dimension_numbers<[1], [0], [0], [1], [0, 0, 1, 1], [], []>} : vector<8x128xbf16>, vector<128x512xbf16>, vector<8x512xf32> -> vector<8x512xf32>
    %45 = arith.addf %41, %44 : vector<8x512xf32>
    %46 = vector.extract_strided_slice %45 {offsets = [0, 0], sizes = [8, 128], strides = [1, 1]} : vector<8x512xf32> to vector<8x128xf32>
    %47 = arith.negf %46 : vector<8x128xf32>
    %48 = math.exp %47 : vector<8x128xf32>
    %cst_17 = arith.constant 1.000000e+00 : f32
    %49 = vector.broadcast %cst_17 : f32 to vector<8x128xf32>
    %50 = arith.addf %49, %48 : vector<8x128xf32>
    %51 = arith.divf %49, %50 : vector<8x128xf32>
    %52 = vector.extract_strided_slice %45 {offsets = [0, 128], sizes = [8, 128], strides = [1, 1]} : vector<8x512xf32> to vector<8x128xf32>
    %53 = arith.negf %52 : vector<8x128xf32>
    %54 = math.exp %53 : vector<8x128xf32>
    %cst_18 = arith.constant 1.000000e+00 : f32
    %55 = vector.broadcast %cst_18 : f32 to vector<8x128xf32>
    %56 = arith.addf %55, %54 : vector<8x128xf32>
    %57 = arith.divf %55, %56 : vector<8x128xf32>
    %58 = vector.extract_strided_slice %45 {offsets = [0, 256], sizes = [8, 128], strides = [1, 1]} : vector<8x512xf32> to vector<8x128xf32>
    %59 = math.tanh %58 : vector<8x128xf32>
    %60 = vector.extract_strided_slice %45 {offsets = [0, 384], sizes = [8, 128], strides = [1, 1]} : vector<8x512xf32> to vector<8x128xf32>
    %61 = arith.negf %60 : vector<8x128xf32>
    %62 = math.exp %61 : vector<8x128xf32>
    %cst_19 = arith.constant 1.000000e+00 : f32
    %63 = vector.broadcast %cst_19 : f32 to vector<8x128xf32>
    %64 = arith.addf %63, %62 : vector<8x128xf32>
    %65 = arith.divf %63, %64 : vector<8x128xf32>
    %66 = arith.mulf %57, %35 : vector<8x128xf32>
    %67 = arith.mulf %51, %59 : vector<8x128xf32>
    %68 = arith.addf %66, %67 : vector<8x128xf32>
    %69 = math.tanh %68 : vector<8x128xf32>
    %70 = arith.mulf %65, %69 : vector<8x128xf32>
    %c2_i32 = arith.constant 2 : i32
    %71 = arith.index_cast %c2_i32 : i32 to index
    %c0_20 = arith.constant 0 : index
    %c0_21 = arith.constant 0 : index
    %72 = vector.load %arg2[%71, %c0_20, %c0_21] : memref<4x8x512xbf16, #tpu.memory_space<vmem>>, vector<1x8x512xbf16>
    %73 = vector.shape_cast %72 : vector<1x8x512xbf16> to vector<8x512xbf16>
    %74 = arith.extf %73 : vector<8x512xbf16> to vector<8x512xf32>
    %75 = arith.truncf %70 : vector<8x128xf32> to vector<8x128xbf16>
    %c0_22 = arith.constant 0 : index
    %c0_23 = arith.constant 0 : index
    %76 = vector.load %arg3[%c0_22, %c0_23] : memref<128x512xbf16, #tpu.memory_space<vmem>>, vector<128x512xbf16>
    %cst_24 = arith.constant dense<0.000000e+00> : vector<8x512xf32>
    %77 = tpu.matmul %75, %76, %cst_24 {dimension_numbers = #tpu.dot_dimension_numbers<[1], [0], [0], [1], [0, 0, 1, 1], [], []>} : vector<8x128xbf16>, vector<128x512xbf16>, vector<8x512xf32> -> vector<8x512xf32>
    %78 = arith.addf %74, %77 : vector<8x512xf32>
    %79 = vector.extract_strided_slice %78 {offsets = [0, 0], sizes = [8, 128], strides = [1, 1]} : vector<8x512xf32> to vector<8x128xf32>
    %80 = arith.negf %79 : vector<8x128xf32>
    %81 = math.exp %80 : vector<8x128xf32>
    %cst_25 = arith.constant 1.000000e+00 : f32
    %82 = vector.broadcast %cst_25 : f32 to vector<8x128xf32>
    %83 = arith.addf %82, %81 : vector<8x128xf32>
    %84 = arith.divf %82, %83 : vector<8x128xf32>
    %85 = vector.extract_strided_slice %78 {offsets = [0, 128], sizes = [8, 128], strides = [1, 1]} : vector<8x512xf32> to vector<8x128xf32>
    %86 = arith.negf %85 : vector<8x128xf32>
    %87 = math.exp %86 : vector<8x128xf32>
    %cst_26 = arith.constant 1.000000e+00 : f32
    %88 = vector.broadcast %cst_26 : f32 to vector<8x128xf32>
    %89 = arith.addf %88, %87 : vector<8x128xf32>
    %90 = arith.divf %88, %89 : vector<8x128xf32>
    %91 = vector.extract_strided_slice %78 {offsets = [0, 256], sizes = [8, 128], strides = [1, 1]} : vector<8x512xf32> to vector<8x128xf32>
    %92 = math.tanh %91 : vector<8x128xf32>
    %93 = vector.extract_strided_slice %78 {offsets = [0, 384], sizes = [8, 128], strides = [1, 1]} : vector<8x512xf32> to vector<8x128xf32>
    %94 = arith.negf %93 : vector<8x128xf32>
    %95 = math.exp %94 : vector<8x128xf32>
    %cst_27 = arith.constant 1.000000e+00 : f32
    %96 = vector.broadcast %cst_27 : f32 to vector<8x128xf32>
    %97 = arith.addf %96, %95 : vector<8x128xf32>
    %98 = arith.divf %96, %97 : vector<8x128xf32>
    %99 = arith.mulf %90, %68 : vector<8x128xf32>
    %100 = arith.mulf %84, %92 : vector<8x128xf32>
    %101 = arith.addf %99, %100 : vector<8x128xf32>
    %102 = math.tanh %101 : vector<8x128xf32>
    %103 = arith.mulf %98, %102 : vector<8x128xf32>
    %c3_i32 = arith.constant 3 : i32
    %104 = arith.index_cast %c3_i32 : i32 to index
    %c0_28 = arith.constant 0 : index
    %c0_29 = arith.constant 0 : index
    %105 = vector.load %arg2[%104, %c0_28, %c0_29] : memref<4x8x512xbf16, #tpu.memory_space<vmem>>, vector<1x8x512xbf16>
    %106 = vector.shape_cast %105 : vector<1x8x512xbf16> to vector<8x512xbf16>
    %107 = arith.extf %106 : vector<8x512xbf16> to vector<8x512xf32>
    %108 = arith.truncf %103 : vector<8x128xf32> to vector<8x128xbf16>
    %c0_30 = arith.constant 0 : index
    %c0_31 = arith.constant 0 : index
    %109 = vector.load %arg3[%c0_30, %c0_31] : memref<128x512xbf16, #tpu.memory_space<vmem>>, vector<128x512xbf16>
    %cst_32 = arith.constant dense<0.000000e+00> : vector<8x512xf32>
    %110 = tpu.matmul %108, %109, %cst_32 {dimension_numbers = #tpu.dot_dimension_numbers<[1], [0], [0], [1], [0, 0, 1, 1], [], []>} : vector<8x128xbf16>, vector<128x512xbf16>, vector<8x512xf32> -> vector<8x512xf32>
    %111 = arith.addf %107, %110 : vector<8x512xf32>
    %112 = vector.extract_strided_slice %111 {offsets = [0, 0], sizes = [8, 128], strides = [1, 1]} : vector<8x512xf32> to vector<8x128xf32>
    %113 = arith.negf %112 : vector<8x128xf32>
    %114 = math.exp %113 : vector<8x128xf32>
    %cst_33 = arith.constant 1.000000e+00 : f32
    %115 = vector.broadcast %cst_33 : f32 to vector<8x128xf32>
    %116 = arith.addf %115, %114 : vector<8x128xf32>
    %117 = arith.divf %115, %116 : vector<8x128xf32>
    %118 = vector.extract_strided_slice %111 {offsets = [0, 128], sizes = [8, 128], strides = [1, 1]} : vector<8x512xf32> to vector<8x128xf32>
    %119 = arith.negf %118 : vector<8x128xf32>
    %120 = math.exp %119 : vector<8x128xf32>
    %cst_34 = arith.constant 1.000000e+00 : f32
    %121 = vector.broadcast %cst_34 : f32 to vector<8x128xf32>
    %122 = arith.addf %121, %120 : vector<8x128xf32>
    %123 = arith.divf %121, %122 : vector<8x128xf32>
    %124 = vector.extract_strided_slice %111 {offsets = [0, 256], sizes = [8, 128], strides = [1, 1]} : vector<8x512xf32> to vector<8x128xf32>
    %125 = math.tanh %124 : vector<8x128xf32>
    %126 = vector.extract_strided_slice %111 {offsets = [0, 384], sizes = [8, 128], strides = [1, 1]} : vector<8x512xf32> to vector<8x128xf32>
    %127 = arith.negf %126 : vector<8x128xf32>
    %128 = math.exp %127 : vector<8x128xf32>
    %cst_35 = arith.constant 1.000000e+00 : f32
    %129 = vector.broadcast %cst_35 : f32 to vector<8x128xf32>
    %130 = arith.addf %129, %128 : vector<8x128xf32>
    %131 = arith.divf %129, %130 : vector<8x128xf32>
    %132 = arith.mulf %123, %101 : vector<8x128xf32>
    %133 = arith.mulf %117, %125 : vector<8x128xf32>
    %134 = arith.addf %132, %133 : vector<8x128xf32>
    %135 = math.tanh %134 : vector<8x128xf32>
    %136 = arith.mulf %131, %135 : vector<8x128xf32>
    %c4_i32 = arith.constant 4 : i32
    %c0_36 = arith.constant 0 : index
    %c0_37 = arith.constant 0 : index
    %137 = vector.load %arg7[%c0_36, %c0_37] : memref<8x128xf32, #tpu.memory_space<vmem>>, vector<8x128xf32>
    tpu.vector_store %arg7[%c0_36, %c0_37], %136 {strides = array<i32>} : memref<8x128xf32, #tpu.memory_space<vmem>>, vector<8x128xf32>,
    %c0_38 = arith.constant 0 : index
    %c0_39 = arith.constant 0 : index
    %138 = vector.load %arg8[%c0_38, %c0_39] : memref<8x128xf32, #tpu.memory_space<vmem>>, vector<8x128xf32>
    tpu.vector_store %arg8[%c0_38, %c0_39], %134 {strides = array<i32>} : memref<8x128xf32, #tpu.memory_space<vmem>>, vector<8x128xf32>,
    %c1_i32_40 = arith.constant 1 : i32
    %139 = arith.cmpi eq, %arg1, %c1_i32_40 : i32
    %140 = arith.extui %139 : i1 to i32
    %c0_i32_41 = arith.constant 0 : i32
    %141 = arith.cmpi ne, %140, %c0_i32_41 : i32
    scf.if %141 {
      %142 = arith.truncf %136 : vector<8x128xf32> to vector<8x128xbf16>
      %c0_42 = arith.constant 0 : index
      %c0_43 = arith.constant 0 : index
      %143 = vector.load %arg4[%c0_42, %c0_43] : memref<128x128xbf16, #tpu.memory_space<vmem>>, vector<128x128xbf16>
      %cst_44 = arith.constant dense<0.000000e+00> : vector<8x128xf32>
      %144 = tpu.matmul %142, %143, %cst_44 {dimension_numbers = #tpu.dot_dimension_numbers<[1], [0], [0], [1], [0, 0, 1, 1], [], []>} : vector<8x128xbf16>, vector<128x128xbf16>, vector<8x128xf32> -> vector<8x128xf32>
      %c0_45 = arith.constant 0 : index
      %c0_46 = arith.constant 0 : index
      %145 = vector.load %arg5[%c0_45, %c0_46] : memref<1x128xf32, #tpu.memory_space<vmem>>, vector<1x128xf32>
      %146 = vector.broadcast %145 : vector<1x128xf32> to vector<8x128xf32>
      %147 = arith.addf %144, %146 : vector<8x128xf32>
      %c0_47 = arith.constant 0 : index
      %c0_48 = arith.constant 0 : index
      %148 = vector.load %arg6[%c0_47, %c0_48] : memref<8x128xf32, #tpu.memory_space<vmem>>, vector<8x128xf32>
      tpu.vector_store %arg6[%c0_47, %c0_48], %147 {strides = array<i32>} : memref<8x128xf32, #tpu.memory_space<vmem>>, vector<8x128xf32>,
    } else {
    }
    return
  }
  func.func @transform_0(%arg0: i32, %arg1: i32) -> (i32, i32, i32) {
    %c0_i32 = arith.constant 0 : i32
    %c0_i32_0 = arith.constant 0 : i32
    return %arg1, %arg0, %c0_i32 : i32, i32, i32
  }
  func.func @transform_1(%arg0: i32, %arg1: i32) -> (i32, i32) {
    %c0_i32 = arith.constant 0 : i32
    %c0_i32_0 = arith.constant 0 : i32
    %c0_i32_1 = arith.constant 0 : i32
    return %c0_i32, %c0_i32_0 : i32, i32
  }
  func.func @transform_2(%arg0: i32, %arg1: i32) -> (i32, i32) {
    %c0_i32 = arith.constant 0 : i32
    %c0_i32_0 = arith.constant 0 : i32
    %c0_i32_1 = arith.constant 0 : i32
    return %c0_i32, %c0_i32_0 : i32, i32
  }
  func.func @transform_3(%arg0: i32, %arg1: i32) -> (i32, i32) {
    %c0_i32 = arith.constant 0 : i32
    %c0_i32_0 = arith.constant 0 : i32
    %c0_i32_1 = arith.constant 0 : i32
    return %c0_i32, %c0_i32_0 : i32, i32
  }
  func.func @transform_4(%arg0: i32, %arg1: i32) -> (i32, i32) {
    %c0_i32 = arith.constant 0 : i32
    %c0_i32_0 = arith.constant 0 : i32
    return %arg0, %c0_i32 : i32, i32
  }
}

module attributes {stable_mosaic.version = 11 : i64} {
  func.func @input_proj_kernel(%arg0: i32, %arg1: memref<64x16xbf16, #tpu.memory_space<vmem>>, %arg2: memref<16x512xbf16, #tpu.memory_space<vmem>>, %arg3: memref<1x512xf32, #tpu.memory_space<vmem>>, %arg4: memref<64x512xbf16, #tpu.memory_space<vmem>>) attributes {dimension_semantics = [#tpu.dimension_semantics<parallel>], iteration_bounds = array<i64: 1>, scalar_prefetch = 0 : i64, scratch_operands = 0 : i64, tpu.core_type = #tpu.core_type<tc>, window_params = [{transform_indices = @transform_0, window_bounds = array<i64: 64, 16>}, {pipeline_mode = #tpu.pipeline_mode<synchronous>, transform_indices = @transform_1, window_bounds = array<i64: 16, 512>}, {pipeline_mode = #tpu.pipeline_mode<synchronous>, transform_indices = @transform_2, window_bounds = array<i64: 1, 512>}, {transform_indices = @transform_3, window_bounds = array<i64: 64, 512>}]} {
    %c0 = arith.constant 0 : index
    %c0_0 = arith.constant 0 : index
    %0 = vector.load %arg1[%c0, %c0_0] : memref<64x16xbf16, #tpu.memory_space<vmem>>, vector<64x16xbf16>
    %c0_1 = arith.constant 0 : index
    %c0_2 = arith.constant 0 : index
    %1 = vector.load %arg2[%c0_1, %c0_2] : memref<16x512xbf16, #tpu.memory_space<vmem>>, vector<16x512xbf16>
    %cst = arith.constant dense<0.000000e+00> : vector<64x512xf32>
    %2 = tpu.matmul %0, %1, %cst {dimension_numbers = #tpu.dot_dimension_numbers<[1], [0], [0], [1], [0, 0, 1, 1], [], []>} : vector<64x16xbf16>, vector<16x512xbf16>, vector<64x512xf32> -> vector<64x512xf32>
    %c0_3 = arith.constant 0 : index
    %c0_4 = arith.constant 0 : index
    %3 = vector.load %arg3[%c0_3, %c0_4] : memref<1x512xf32, #tpu.memory_space<vmem>>, vector<1x512xf32>
    %4 = vector.broadcast %3 : vector<1x512xf32> to vector<64x512xf32>
    %5 = arith.addf %2, %4 : vector<64x512xf32>
    %6 = arith.truncf %5 : vector<64x512xf32> to vector<64x512xbf16>
    %c0_5 = arith.constant 0 : index
    %c0_6 = arith.constant 0 : index
    %7 = vector.load %arg4[%c0_5, %c0_6] : memref<64x512xbf16, #tpu.memory_space<vmem>>, vector<64x512xbf16>
    tpu.vector_store %arg4[%c0_5, %c0_6], %6 {strides = array<i32>} : memref<64x512xbf16, #tpu.memory_space<vmem>>, vector<64x512xbf16>,
    return
  }
  func.func @transform_0(%arg0: i32) -> (i32, i32) {
    %c0_i32 = arith.constant 0 : i32
    %c0_i32_0 = arith.constant 0 : i32
    return %arg0, %c0_i32 : i32, i32
  }
  func.func @transform_1(%arg0: i32) -> (i32, i32) {
    %c0_i32 = arith.constant 0 : i32
    %c0_i32_0 = arith.constant 0 : i32
    %c0_i32_1 = arith.constant 0 : i32
    return %c0_i32, %c0_i32_0 : i32, i32
  }
  func.func @transform_2(%arg0: i32) -> (i32, i32) {
    %c0_i32 = arith.constant 0 : i32
    %c0_i32_0 = arith.constant 0 : i32
    %c0_i32_1 = arith.constant 0 : i32
    return %c0_i32, %c0_i32_0 : i32, i32
  }
  func.func @transform_3(%arg0: i32) -> (i32, i32) {
    %c0_i32 = arith.constant 0 : i32
    %c0_i32_0 = arith.constant 0 : i32
    return %arg0, %c0_i32 : i32, i32
  }
}

module attributes {stable_mosaic.version = 11 : i64} {
  func.func @lstm_recurrent_kernel(%arg0: i32, %arg1: i32, %arg2: memref<4x8x512xbf16, #tpu.memory_space<vmem>>, %arg3: memref<128x512xbf16, #tpu.memory_space<vmem>>, %arg4: memref<128x128xbf16, #tpu.memory_space<vmem>>, %arg5: memref<1x128xf32, #tpu.memory_space<vmem>>, %arg6: memref<8x128xf32, #tpu.memory_space<vmem>>, %arg7: memref<8x128xf32, #tpu.memory_space<vmem>>, %arg8: memref<8x128xf32, #tpu.memory_space<vmem>>) attributes {dimension_semantics = [#tpu.dimension_semantics<parallel>, #tpu.dimension_semantics<arbitrary>], iteration_bounds = array<i64: 1, 2>, scalar_prefetch = 0 : i64, scratch_operands = 2 : i64, tpu.core_type = #tpu.core_type<tc>, window_params = [{transform_indices = @transform_0, window_bounds = array<i64: 4, 8, 512>}, {pipeline_mode = #tpu.pipeline_mode<synchronous>, transform_indices = @transform_1, window_bounds = array<i64: 128, 512>}, {pipeline_mode = #tpu.pipeline_mode<synchronous>, transform_indices = @transform_2, window_bounds = array<i64: 128, 128>}, {pipeline_mode = #tpu.pipeline_mode<synchronous>, transform_indices = @transform_3, window_bounds = array<i64: 1, 128>}, {transform_indices = @transform_4, window_bounds = array<i64: 8, 128>}]} {
    %c0_i32 = arith.constant 0 : i32
    %0 = arith.cmpi eq, %arg1, %c0_i32 : i32
    %1 = arith.extui %0 : i1 to i32
    %c0_i32_0 = arith.constant 0 : i32
    %2 = arith.cmpi ne, %1, %c0_i32_0 : i32
    scf.if %2 {
      %cst_42 = arith.constant 0.000000e+00 : f32
      %142 = vector.broadcast %cst_42 : f32 to vector<8x128xf32>
      %c0_43 = arith.constant 0 : index
      %c0_44 = arith.constant 0 : index
      %143 = vector.load %arg7[%c0_43, %c0_44] : memref<8x128xf32, #tpu.memory_space<vmem>>, vector<8x128xf32>
      tpu.vector_store %arg7[%c0_43, %c0_44], %142 {strides = array<i32>} : memref<8x128xf32, #tpu.memory_space<vmem>>, vector<8x128xf32>,
      %cst_45 = arith.constant 0.000000e+00 : f32
      %144 = vector.broadcast %cst_45 : f32 to vector<8x128xf32>
      %c0_46 = arith.constant 0 : index
      %c0_47 = arith.constant 0 : index
      %145 = vector.load %arg8[%c0_46, %c0_47] : memref<8x128xf32, #tpu.memory_space<vmem>>, vector<8x128xf32>
      tpu.vector_store %arg8[%c0_46, %c0_47], %144 {strides = array<i32>} : memref<8x128xf32, #tpu.memory_space<vmem>>, vector<8x128xf32>,
    } else {
    }
    %c0 = arith.constant 0 : index
    %c0_1 = arith.constant 0 : index
    %3 = vector.load %arg7[%c0, %c0_1] : memref<8x128xf32, #tpu.memory_space<vmem>>, vector<8x128xf32>
    %c0_2 = arith.constant 0 : index
    %c0_3 = arith.constant 0 : index
    %4 = vector.load %arg8[%c0_2, %c0_3] : memref<8x128xf32, #tpu.memory_space<vmem>>, vector<8x128xf32>
    %c0_i32_4 = arith.constant 0 : i32
    %5 = arith.index_cast %c0_i32_4 : i32 to index
    %c0_5 = arith.constant 0 : index
    %c0_6 = arith.constant 0 : index
    %6 = vector.load %arg2[%5, %c0_5, %c0_6] : memref<4x8x512xbf16, #tpu.memory_space<vmem>>, vector<1x8x512xbf16>
    %7 = vector.shape_cast %6 : vector<1x8x512xbf16> to vector<8x512xbf16>
    %8 = arith.extf %7 : vector<8x512xbf16> to vector<8x512xf32>
    %9 = arith.truncf %3 : vector<8x128xf32> to vector<8x128xbf16>
    %c0_7 = arith.constant 0 : index
    %c0_8 = arith.constant 0 : index
    %10 = vector.load %arg3[%c0_7, %c0_8] : memref<128x512xbf16, #tpu.memory_space<vmem>>, vector<128x512xbf16>
    %cst = arith.constant dense<0.000000e+00> : vector<8x512xf32>
    %11 = tpu.matmul %9, %10, %cst {dimension_numbers = #tpu.dot_dimension_numbers<[1], [0], [0], [1], [0, 0, 1, 1], [], []>} : vector<8x128xbf16>, vector<128x512xbf16>, vector<8x512xf32> -> vector<8x512xf32>
    %12 = arith.addf %8, %11 : vector<8x512xf32>
    %13 = vector.extract_strided_slice %12 {offsets = [0, 0], sizes = [8, 128], strides = [1, 1]} : vector<8x512xf32> to vector<8x128xf32>
    %14 = arith.negf %13 : vector<8x128xf32>
    %15 = math.exp %14 : vector<8x128xf32>
    %cst_9 = arith.constant 1.000000e+00 : f32
    %16 = vector.broadcast %cst_9 : f32 to vector<8x128xf32>
    %17 = arith.addf %16, %15 : vector<8x128xf32>
    %18 = arith.divf %16, %17 : vector<8x128xf32>
    %19 = vector.extract_strided_slice %12 {offsets = [0, 128], sizes = [8, 128], strides = [1, 1]} : vector<8x512xf32> to vector<8x128xf32>
    %20 = arith.negf %19 : vector<8x128xf32>
    %21 = math.exp %20 : vector<8x128xf32>
    %cst_10 = arith.constant 1.000000e+00 : f32
    %22 = vector.broadcast %cst_10 : f32 to vector<8x128xf32>
    %23 = arith.addf %22, %21 : vector<8x128xf32>
    %24 = arith.divf %22, %23 : vector<8x128xf32>
    %25 = vector.extract_strided_slice %12 {offsets = [0, 256], sizes = [8, 128], strides = [1, 1]} : vector<8x512xf32> to vector<8x128xf32>
    %26 = math.tanh %25 : vector<8x128xf32>
    %27 = vector.extract_strided_slice %12 {offsets = [0, 384], sizes = [8, 128], strides = [1, 1]} : vector<8x512xf32> to vector<8x128xf32>
    %28 = arith.negf %27 : vector<8x128xf32>
    %29 = math.exp %28 : vector<8x128xf32>
    %cst_11 = arith.constant 1.000000e+00 : f32
    %30 = vector.broadcast %cst_11 : f32 to vector<8x128xf32>
    %31 = arith.addf %30, %29 : vector<8x128xf32>
    %32 = arith.divf %30, %31 : vector<8x128xf32>
    %33 = arith.mulf %24, %4 : vector<8x128xf32>
    %34 = arith.mulf %18, %26 : vector<8x128xf32>
    %35 = arith.addf %33, %34 : vector<8x128xf32>
    %36 = math.tanh %35 : vector<8x128xf32>
    %37 = arith.mulf %32, %36 : vector<8x128xf32>
    %c1_i32 = arith.constant 1 : i32
    %38 = arith.index_cast %c1_i32 : i32 to index
    %c0_12 = arith.constant 0 : index
    %c0_13 = arith.constant 0 : index
    %39 = vector.load %arg2[%38, %c0_12, %c0_13] : memref<4x8x512xbf16, #tpu.memory_space<vmem>>, vector<1x8x512xbf16>
    %40 = vector.shape_cast %39 : vector<1x8x512xbf16> to vector<8x512xbf16>
    %41 = arith.extf %40 : vector<8x512xbf16> to vector<8x512xf32>
    %42 = arith.truncf %37 : vector<8x128xf32> to vector<8x128xbf16>
    %c0_14 = arith.constant 0 : index
    %c0_15 = arith.constant 0 : index
    %43 = vector.load %arg3[%c0_14, %c0_15] : memref<128x512xbf16, #tpu.memory_space<vmem>>, vector<128x512xbf16>
    %cst_16 = arith.constant dense<0.000000e+00> : vector<8x512xf32>
    %44 = tpu.matmul %42, %43, %cst_16 {dimension_numbers = #tpu.dot_dimension_numbers<[1], [0], [0], [1], [0, 0, 1, 1], [], []>} : vector<8x128xbf16>, vector<128x512xbf16>, vector<8x512xf32> -> vector<8x512xf32>
    %45 = arith.addf %41, %44 : vector<8x512xf32>
    %46 = vector.extract_strided_slice %45 {offsets = [0, 0], sizes = [8, 128], strides = [1, 1]} : vector<8x512xf32> to vector<8x128xf32>
    %47 = arith.negf %46 : vector<8x128xf32>
    %48 = math.exp %47 : vector<8x128xf32>
    %cst_17 = arith.constant 1.000000e+00 : f32
    %49 = vector.broadcast %cst_17 : f32 to vector<8x128xf32>
    %50 = arith.addf %49, %48 : vector<8x128xf32>
    %51 = arith.divf %49, %50 : vector<8x128xf32>
    %52 = vector.extract_strided_slice %45 {offsets = [0, 128], sizes = [8, 128], strides = [1, 1]} : vector<8x512xf32> to vector<8x128xf32>
    %53 = arith.negf %52 : vector<8x128xf32>
    %54 = math.exp %53 : vector<8x128xf32>
    %cst_18 = arith.constant 1.000000e+00 : f32
    %55 = vector.broadcast %cst_18 : f32 to vector<8x128xf32>
    %56 = arith.addf %55, %54 : vector<8x128xf32>
    %57 = arith.divf %55, %56 : vector<8x128xf32>
    %58 = vector.extract_strided_slice %45 {offsets = [0, 256], sizes = [8, 128], strides = [1, 1]} : vector<8x512xf32> to vector<8x128xf32>
    %59 = math.tanh %58 : vector<8x128xf32>
    %60 = vector.extract_strided_slice %45 {offsets = [0, 384], sizes = [8, 128], strides = [1, 1]} : vector<8x512xf32> to vector<8x128xf32>
    %61 = arith.negf %60 : vector<8x128xf32>
    %62 = math.exp %61 : vector<8x128xf32>
    %cst_19 = arith.constant 1.000000e+00 : f32
    %63 = vector.broadcast %cst_19 : f32 to vector<8x128xf32>
    %64 = arith.addf %63, %62 : vector<8x128xf32>
    %65 = arith.divf %63, %64 : vector<8x128xf32>
    %66 = arith.mulf %57, %35 : vector<8x128xf32>
    %67 = arith.mulf %51, %59 : vector<8x128xf32>
    %68 = arith.addf %66, %67 : vector<8x128xf32>
    %69 = math.tanh %68 : vector<8x128xf32>
    %70 = arith.mulf %65, %69 : vector<8x128xf32>
    %c2_i32 = arith.constant 2 : i32
    %71 = arith.index_cast %c2_i32 : i32 to index
    %c0_20 = arith.constant 0 : index
    %c0_21 = arith.constant 0 : index
    %72 = vector.load %arg2[%71, %c0_20, %c0_21] : memref<4x8x512xbf16, #tpu.memory_space<vmem>>, vector<1x8x512xbf16>
    %73 = vector.shape_cast %72 : vector<1x8x512xbf16> to vector<8x512xbf16>
    %74 = arith.extf %73 : vector<8x512xbf16> to vector<8x512xf32>
    %75 = arith.truncf %70 : vector<8x128xf32> to vector<8x128xbf16>
    %c0_22 = arith.constant 0 : index
    %c0_23 = arith.constant 0 : index
    %76 = vector.load %arg3[%c0_22, %c0_23] : memref<128x512xbf16, #tpu.memory_space<vmem>>, vector<128x512xbf16>
    %cst_24 = arith.constant dense<0.000000e+00> : vector<8x512xf32>
    %77 = tpu.matmul %75, %76, %cst_24 {dimension_numbers = #tpu.dot_dimension_numbers<[1], [0], [0], [1], [0, 0, 1, 1], [], []>} : vector<8x128xbf16>, vector<128x512xbf16>, vector<8x512xf32> -> vector<8x512xf32>
    %78 = arith.addf %74, %77 : vector<8x512xf32>
    %79 = vector.extract_strided_slice %78 {offsets = [0, 0], sizes = [8, 128], strides = [1, 1]} : vector<8x512xf32> to vector<8x128xf32>
    %80 = arith.negf %79 : vector<8x128xf32>
    %81 = math.exp %80 : vector<8x128xf32>
    %cst_25 = arith.constant 1.000000e+00 : f32
    %82 = vector.broadcast %cst_25 : f32 to vector<8x128xf32>
    %83 = arith.addf %82, %81 : vector<8x128xf32>
    %84 = arith.divf %82, %83 : vector<8x128xf32>
    %85 = vector.extract_strided_slice %78 {offsets = [0, 128], sizes = [8, 128], strides = [1, 1]} : vector<8x512xf32> to vector<8x128xf32>
    %86 = arith.negf %85 : vector<8x128xf32>
    %87 = math.exp %86 : vector<8x128xf32>
    %cst_26 = arith.constant 1.000000e+00 : f32
    %88 = vector.broadcast %cst_26 : f32 to vector<8x128xf32>
    %89 = arith.addf %88, %87 : vector<8x128xf32>
    %90 = arith.divf %88, %89 : vector<8x128xf32>
    %91 = vector.extract_strided_slice %78 {offsets = [0, 256], sizes = [8, 128], strides = [1, 1]} : vector<8x512xf32> to vector<8x128xf32>
    %92 = math.tanh %91 : vector<8x128xf32>
    %93 = vector.extract_strided_slice %78 {offsets = [0, 384], sizes = [8, 128], strides = [1, 1]} : vector<8x512xf32> to vector<8x128xf32>
    %94 = arith.negf %93 : vector<8x128xf32>
    %95 = math.exp %94 : vector<8x128xf32>
    %cst_27 = arith.constant 1.000000e+00 : f32
    %96 = vector.broadcast %cst_27 : f32 to vector<8x128xf32>
    %97 = arith.addf %96, %95 : vector<8x128xf32>
    %98 = arith.divf %96, %97 : vector<8x128xf32>
    %99 = arith.mulf %90, %68 : vector<8x128xf32>
    %100 = arith.mulf %84, %92 : vector<8x128xf32>
    %101 = arith.addf %99, %100 : vector<8x128xf32>
    %102 = math.tanh %101 : vector<8x128xf32>
    %103 = arith.mulf %98, %102 : vector<8x128xf32>
    %c3_i32 = arith.constant 3 : i32
    %104 = arith.index_cast %c3_i32 : i32 to index
    %c0_28 = arith.constant 0 : index
    %c0_29 = arith.constant 0 : index
    %105 = vector.load %arg2[%104, %c0_28, %c0_29] : memref<4x8x512xbf16, #tpu.memory_space<vmem>>, vector<1x8x512xbf16>
    %106 = vector.shape_cast %105 : vector<1x8x512xbf16> to vector<8x512xbf16>
    %107 = arith.extf %106 : vector<8x512xbf16> to vector<8x512xf32>
    %108 = arith.truncf %103 : vector<8x128xf32> to vector<8x128xbf16>
    %c0_30 = arith.constant 0 : index
    %c0_31 = arith.constant 0 : index
    %109 = vector.load %arg3[%c0_30, %c0_31] : memref<128x512xbf16, #tpu.memory_space<vmem>>, vector<128x512xbf16>
    %cst_32 = arith.constant dense<0.000000e+00> : vector<8x512xf32>
    %110 = tpu.matmul %108, %109, %cst_32 {dimension_numbers = #tpu.dot_dimension_numbers<[1], [0], [0], [1], [0, 0, 1, 1], [], []>} : vector<8x128xbf16>, vector<128x512xbf16>, vector<8x512xf32> -> vector<8x512xf32>
    %111 = arith.addf %107, %110 : vector<8x512xf32>
    %112 = vector.extract_strided_slice %111 {offsets = [0, 0], sizes = [8, 128], strides = [1, 1]} : vector<8x512xf32> to vector<8x128xf32>
    %113 = arith.negf %112 : vector<8x128xf32>
    %114 = math.exp %113 : vector<8x128xf32>
    %cst_33 = arith.constant 1.000000e+00 : f32
    %115 = vector.broadcast %cst_33 : f32 to vector<8x128xf32>
    %116 = arith.addf %115, %114 : vector<8x128xf32>
    %117 = arith.divf %115, %116 : vector<8x128xf32>
    %118 = vector.extract_strided_slice %111 {offsets = [0, 128], sizes = [8, 128], strides = [1, 1]} : vector<8x512xf32> to vector<8x128xf32>
    %119 = arith.negf %118 : vector<8x128xf32>
    %120 = math.exp %119 : vector<8x128xf32>
    %cst_34 = arith.constant 1.000000e+00 : f32
    %121 = vector.broadcast %cst_34 : f32 to vector<8x128xf32>
    %122 = arith.addf %121, %120 : vector<8x128xf32>
    %123 = arith.divf %121, %122 : vector<8x128xf32>
    %124 = vector.extract_strided_slice %111 {offsets = [0, 256], sizes = [8, 128], strides = [1, 1]} : vector<8x512xf32> to vector<8x128xf32>
    %125 = math.tanh %124 : vector<8x128xf32>
    %126 = vector.extract_strided_slice %111 {offsets = [0, 384], sizes = [8, 128], strides = [1, 1]} : vector<8x512xf32> to vector<8x128xf32>
    %127 = arith.negf %126 : vector<8x128xf32>
    %128 = math.exp %127 : vector<8x128xf32>
    %cst_35 = arith.constant 1.000000e+00 : f32
    %129 = vector.broadcast %cst_35 : f32 to vector<8x128xf32>
    %130 = arith.addf %129, %128 : vector<8x128xf32>
    %131 = arith.divf %129, %130 : vector<8x128xf32>
    %132 = arith.mulf %123, %101 : vector<8x128xf32>
    %133 = arith.mulf %117, %125 : vector<8x128xf32>
    %134 = arith.addf %132, %133 : vector<8x128xf32>
    %135 = math.tanh %134 : vector<8x128xf32>
    %136 = arith.mulf %131, %135 : vector<8x128xf32>
    %c4_i32 = arith.constant 4 : i32
    %c0_36 = arith.constant 0 : index
    %c0_37 = arith.constant 0 : index
    %137 = vector.load %arg7[%c0_36, %c0_37] : memref<8x128xf32, #tpu.memory_space<vmem>>, vector<8x128xf32>
    tpu.vector_store %arg7[%c0_36, %c0_37], %136 {strides = array<i32>} : memref<8x128xf32, #tpu.memory_space<vmem>>, vector<8x128xf32>,
    %c0_38 = arith.constant 0 : index
    %c0_39 = arith.constant 0 : index
    %138 = vector.load %arg8[%c0_38, %c0_39] : memref<8x128xf32, #tpu.memory_space<vmem>>, vector<8x128xf32>
    tpu.vector_store %arg8[%c0_38, %c0_39], %134 {strides = array<i32>} : memref<8x128xf32, #tpu.memory_space<vmem>>, vector<8x128xf32>,
    %c1_i32_40 = arith.constant 1 : i32
    %139 = arith.cmpi eq, %arg1, %c1_i32_40 : i32
    %140 = arith.extui %139 : i1 to i32
    %c0_i32_41 = arith.constant 0 : i32
    %141 = arith.cmpi ne, %140, %c0_i32_41 : i32
    scf.if %141 {
      %142 = arith.truncf %136 : vector<8x128xf32> to vector<8x128xbf16>
      %c0_42 = arith.constant 0 : index
      %c0_43 = arith.constant 0 : index
      %143 = vector.load %arg4[%c0_42, %c0_43] : memref<128x128xbf16, #tpu.memory_space<vmem>>, vector<128x128xbf16>
      %cst_44 = arith.constant dense<0.000000e+00> : vector<8x128xf32>
      %144 = tpu.matmul %142, %143, %cst_44 {dimension_numbers = #tpu.dot_dimension_numbers<[1], [0], [0], [1], [0, 0, 1, 1], [], []>} : vector<8x128xbf16>, vector<128x128xbf16>, vector<8x128xf32> -> vector<8x128xf32>
      %c0_45 = arith.constant 0 : index
      %c0_46 = arith.constant 0 : index
      %145 = vector.load %arg5[%c0_45, %c0_46] : memref<1x128xf32, #tpu.memory_space<vmem>>, vector<1x128xf32>
      %146 = vector.broadcast %145 : vector<1x128xf32> to vector<8x128xf32>
      %147 = arith.addf %144, %146 : vector<8x128xf32>
      %c0_47 = arith.constant 0 : index
      %c0_48 = arith.constant 0 : index
      %148 = vector.load %arg6[%c0_47, %c0_48] : memref<8x128xf32, #tpu.memory_space<vmem>>, vector<8x128xf32>
      tpu.vector_store %arg6[%c0_47, %c0_48], %147 {strides = array<i32>} : memref<8x128xf32, #tpu.memory_space<vmem>>, vector<8x128xf32>,
    } else {
    }
    return
  }
  func.func @transform_0(%arg0: i32, %arg1: i32) -> (i32, i32, i32) {
    %c0_i32 = arith.constant 0 : i32
    %c0_i32_0 = arith.constant 0 : i32
    return %arg1, %arg0, %c0_i32 : i32, i32, i32
  }
  func.func @transform_1(%arg0: i32, %arg1: i32) -> (i32, i32) {
    %c0_i32 = arith.constant 0 : i32
    %c0_i32_0 = arith.constant 0 : i32
    %c0_i32_1 = arith.constant 0 : i32
    return %c0_i32, %c0_i32_0 : i32, i32
  }
  func.func @transform_2(%arg0: i32, %arg1: i32) -> (i32, i32) {
    %c0_i32 = arith.constant 0 : i32
    %c0_i32_0 = arith.constant 0 : i32
    %c0_i32_1 = arith.constant 0 : i32
    return %c0_i32, %c0_i32_0 : i32, i32
  }
  func.func @transform_3(%arg0: i32, %arg1: i32) -> (i32, i32) {
    %c0_i32 = arith.constant 0 : i32
    %c0_i32_0 = arith.constant 0 : i32
    %c0_i32_1 = arith.constant 0 : i32
    return %c0_i32, %c0_i32_0 : i32, i32
  }
  func.func @transform_4(%arg0: i32, %arg1: i32) -> (i32, i32) {
    %c0_i32 = arith.constant 0 : i32
    %c0_i32_0 = arith.constant 0 : i32
    return %arg0, %c0_i32 : i32, i32
  }
}

</mosaic_0001>

<llo_original>
// kernel: lstm_model_forward.2
$region0: #{lstm_model_forward.2}
  #allocation0 [shape = 'u32[]', space=smem, size = 0x4, offset = 0x4, fixed_abs, tag = 'smem constant byte address 0x4 - core index']
  #allocation1 [shape = 'u32[144,128]{1,0:T(1,128)}', space=vmem, size = 0x12000, scoped, tag = 'internal scratch']
  %s0 = inlined_call_operand.vmem [shape: bf16[64,16], index: 0, kind: input, shape index: {}]
  %s1 = inlined_call_operand.vmem [shape: bf16[16,512], index: 1, kind: input, shape index: {}]
  %s2 = inlined_call_operand.hbm [shape: f32[1,512], index: 2, kind: input, shape index: {}]
  %s3 = inlined_call_operand.vmem [shape: bf16[64,512], index: 3, kind: output, shape index: {}]
  %s4 = sld [smem:[#allocation0]]
  $region26: #{lstm_model_forward.2} parent=0
    _
  %s6 = ssub.s32 1, %s4
  %s7 = scalar_select 0, %s6, %s4
  $region1: #{lstm_model_forward.2} parent=0
    #allocation2 [shape = 'u8[2048]{0}', space=vmem, size = 0x800, scoped, tag = 'input window, operand 2, single buffered']
    #allocation3 [shape = 's32[1]{0}', space=sflag, size = 0x4, scoped, tag = 'scoped memory for lstm_model_forward.2']
    %8 = vsyncpa [#allocation3], 0
    // Predicated region
    $region2: #{lstm_model_forward.2} parent=1 // pred_check
      _
    $region3: #{lstm_model_forward.2} parent=1 // pred_check_branch
      %10 = sbr.rel (0) target = $region5
    $region4: #{lstm_model_forward.2} parent=1 // pred_region
      _
    $region5: #{lstm_model_forward.2} parent=1 // pred_fallthru
      _
    // Predicated region
    $region6: #{lstm_model_forward.2} parent=1 // pred_check
      _
    $region7: #{lstm_model_forward.2} parent=1 // pred_check_branch
      %12 = sbr.rel (0) target = $region9
    $region8: #{lstm_model_forward.2} parent=1 // pred_region
      _
    $region9: #{lstm_model_forward.2} parent=1 // pred_fallthru
      _
    // Predicated region
    $region10: #{lstm_model_forward.2} parent=1 // pred_check
      _
    $region11: #{lstm_model_forward.2} parent=1 // pred_check_branch
      %14 = sbr.rel (0) target = $region13
    $region12: #{lstm_model_forward.2} parent=1 // pred_region
      %s16 = ssub.s32 64, 64
      %17 = vsyncadd [#allocation3], %s16
      %s19 = sshll.u32 [#allocation2], 4
      %s20 = int_to_ptr.vmem [resolvable:$true] %s19
      %22 = dma.hbm_to_vmem [thread:$0]  %s2, 64, %s20, [#allocation3]
    $region13: #{lstm_model_forward.2} parent=1 // pred_fallthru
      _
    // Predicated region
    $region14: #{lstm_model_forward.2} parent=1 // pred_check
      _
    $region15: #{lstm_model_forward.2} parent=1 // pred_check_branch
      %24 = sbr.rel (0) target = $region17
    $region16: #{lstm_model_forward.2} parent=1 // pred_region
      %25 = dma.done [#allocation3], 64
    $region17: #{lstm_model_forward.2} parent=1 // pred_fallthru
      _
    %v27 = vld [vmem:[%s0] sm:$0xf]
    %v28 = vld [vmem:[%s0 + $0x4] sm:$0xf]
    %v29 = vld [vmem:[%s0 + $0x8] sm:$0xf]
    %v30 = vld [vmem:[%s0 + $0xc] sm:$0xf]
    %v31 = vld [vmem:[%s0 + $0x10] sm:$0xf]
    %v32 = vld [vmem:[%s0 + $0x14] sm:$0xf]
    %v33 = vld [vmem:[%s0 + $0x18] sm:$0xf]
    %v34 = vld [vmem:[%s0 + $0x1c] sm:$0xf]
    %v35 = vld [vmem:[%s1] sm:$0xff]
    %v36 = vld [vmem:[%s1 + $0x8] sm:$0xff]
    %v37 = vld [vmem:[%s1 + $0x10] sm:$0xff]
    %v38 = vld [vmem:[%s1 + $0x18] sm:$0xff]
    %v39 = vld [vmem:[#allocation2] sm:$0xf]
    %v41 = vlaneseq
    %v42 = vshrl.u32 %v41, 7
    %v43 = vsub.s32 0, %v42
    %v44 = vrot.slane %v39, %v43
    %v45 = vlaneseq
    %v46 = vshrl.u32 %v45, 7
    %v47 = vsub.s32 1, %v46
    %v48 = vrot.slane %v39, %v47
    %v49 = vlaneseq
    %v50 = vshrl.u32 %v49, 7
    %v51 = vsub.s32 2, %v50
    %v52 = vrot.slane %v39, %v51
    %v53 = vlaneseq
    %v54 = vshrl.u32 %v53, 7
    %v55 = vsub.s32 3, %v54
    %v56 = vrot.slane %v39, %v55
    %v69 = vunpack.c.l.b16 %v27
    %v70 = vunpack.c.l.b16 %v28
    %v71 = vunpack.c.l.b16 %v29
    %v72 = vunpack.c.l.b16 %v30
    %v73 = vunpack.c.l.b16 %v31
    %v74 = vunpack.c.l.b16 %v32
    %v75 = vunpack.c.l.b16 %v33
    %v76 = vunpack.c.l.b16 %v34
    %v77 = vpack.c.b16 %v70, %v69
    %v78 = vpack.c.b16 %v72, %v71
    %v79 = vpack.c.b16 %v74, %v73
    %v80 = vpack.c.b16 %v76, %v75
    %v85 = vunpack.c.l.b16 %v35
    %v86 = vunpack.c.h.b16 %v35
    %v87 = vunpack.c.l.b16 %v36
    %v88 = vunpack.c.h.b16 %v36
    %v89 = vunpack.c.l.b16 %v37
    %v90 = vunpack.c.h.b16 %v37
    %v91 = vunpack.c.l.b16 %v38
    %v92 = vunpack.c.h.b16 %v38
    %v93 = vpack.c.b16 %v89, %v85
    %v94 = vpack.c.b16 %v90, %v86
    %v95 = vpack.c.b16 %v91, %v87
    %v96 = vpack.c.b16 %v92, %v88
    %vm101 = vcmask 130048
    %v103 = vsel %vm101, %v77, 0
    %v106 = vsel %vm101, %v78, 0
    %v109 = vsel %vm101, %v79, 0
    %v112 = vsel %vm101, %v80, 0
    %114 = vmatprep.subr.bf16.mxu0 %v94
    %115 = vmatpush1.bf16.msra.mxu0 %v93
    %116 = vmatprep.subr.bf16.mxu0 0
    %117 = vmatpush1.bf16.msra.mxu0 0
    %118 = vmatprep.subr.bf16.mxu0 0
    %119 = vmatpush1.bf16.msra.mxu0 0
    %120 = vmatprep.subr.bf16.mxu0 0
    %121 = vmatpush1.bf16.msra.mxu0 0
    %122 = vmatprep.subr.bf16.mxu0 0
    %123 = vmatpush1.bf16.msra.mxu0 0
    %124 = vmatprep.subr.bf16.mxu0 0
    %125 = vmatpush1.bf16.msra.mxu0 0
    %126 = vmatprep.subr.bf16.mxu0 0
    %127 = vmatpush1.bf16.msra.mxu0 0
    %128 = vmatprep.subr.bf16.mxu0 0
    %129 = vmatpush1.bf16.msra.mxu0 0
    %130 = vmatprep.subr.bf16.mxu0 0
    %131 = vmatpush1.bf16.msra.mxu0 0
    %132 = vmatprep.subr.bf16.mxu0 0
    %133 = vmatpush1.bf16.msra.mxu0 0
    %134 = vmatprep.subr.bf16.mxu0 0
    %135 = vmatpush1.bf16.msra.mxu0 0
    %136 = vmatprep.subr.bf16.mxu0 0
    %137 = vmatpush1.bf16.msra.mxu0 0
    %138 = vmatprep.subr.bf16.mxu0 0
    %139 = vmatpush1.bf16.msra.mxu0 0
    %140 = vmatprep.subr.bf16.mxu0 0
    %141 = vmatpush1.bf16.msra.mxu0 0
    %142 = vmatprep.subr.bf16.mxu0 0
    %143 = vmatpush1.bf16.msra.mxu0 0
    %144 = vmatprep.subr.bf16.mxu0 0
    %145 = vmatpush1.bf16.msra.mxu0 0
    %146 = vmatprep.mubr.bf16.mxu0 0
    %147 = vmatmul.mubr.bf16.gmra.mrb[0].mxu0 %v103
    %v148 = vpop.f32.mrb[0].mxu0
    %v149 = vadd.f32 %v44, %v148
    %v150 = vpop.f32.mrb[0].mxu0
    %v151 = vadd.f32 %v48, %v150
    %v152 = vpop.f32.mrb[0].mxu0
    %v153 = vadd.f32 %v44, %v152
    %v154 = vpop.f32.mrb[0].mxu0
    %v155 = vadd.f32 %v48, %v154
    %156 = vmatprep.mubr.bf16.mxu0 0
    %157 = vmatmul.mubr.bf16.gmra.mrb[0].mxu0 %v106
    %v158 = vpop.f32.mrb[0].mxu0
    %v159 = vadd.f32 %v44, %v158
    %v160 = vpop.f32.mrb[0].mxu0
    %v161 = vadd.f32 %v48, %v160
    %v162 = vpop.f32.mrb[0].mxu0
    %v163 = vadd.f32 %v44, %v162
    %v164 = vpop.f32.mrb[0].mxu0
    %v165 = vadd.f32 %v48, %v164
    %166 = vmatprep.mubr.bf16.mxu0 0
    %167 = vmatmul.mubr.bf16.gmra.mrb[0].mxu0 %v109
    %v168 = vpop.f32.mrb[0].mxu0
    %v169 = vadd.f32 %v44, %v168
    %v170 = vpop.f32.mrb[0].mxu0
    %v171 = vadd.f32 %v48, %v170
    %v172 = vpop.f32.mrb[0].mxu0
    %v173 = vadd.f32 %v44, %v172
    %v174 = vpop.f32.mrb[0].mxu0
    %v175 = vadd.f32 %v48, %v174
    %176 = vmatprep.mubr.bf16.mxu0 0
    %177 = vmatmul.mubr.bf16.gmra.mrb[0].mxu0 %v112
    %v178 = vpop.f32.mrb[0].mxu0
    %v179 = vadd.f32 %v44, %v178
    %v180 = vpop.f32.mrb[0].mxu0
    %v181 = vadd.f32 %v48, %v180
    %v182 = vpop.f32.mrb[0].mxu0
    %v183 = vadd.f32 %v44, %v182
    %v184 = vpop.f32.mrb[0].mxu0
    %v185 = vadd.f32 %v48, %v184
    %186 = vdwg.mxu0
    %187 = vmatprep.subr.bf16.mxu0 %v96
    %188 = vmatpush1.bf16.msra.mxu0 %v95
    %189 = vmatprep.subr.bf16.mxu0 0
    %190 = vmatpush1.bf16.msra.mxu0 0
    %191 = vmatprep.subr.bf16.mxu0 0
    %192 = vmatpush1.bf16.msra.mxu0 0
    %193 = vmatprep.subr.bf16.mxu0 0
    %194 = vmatpush1.bf16.msra.mxu0 0
    %195 = vmatprep.subr.bf16.mxu0 0
    %196 = vmatpush1.bf16.msra.mxu0 0
    %197 = vmatprep.subr.bf16.mxu0 0
    %198 = vmatpush1.bf16.msra.mxu0 0
    %199 = vmatprep.subr.bf16.mxu0 0
    %200 = vmatpush1.bf16.msra.mxu0 0
    %201 = vmatprep.subr.bf16.mxu0 0
    %202 = vmatpush1.bf16.msra.mxu0 0
    %203 = vmatprep.subr.bf16.mxu0 0
    %204 = vmatpush1.bf16.msra.mxu0 0
    %205 = vmatprep.subr.bf16.mxu0 0
    %206 = vmatpush1.bf16.msra.mxu0 0
    %207 = vmatprep.subr.bf16.mxu0 0
    %208 = vmatpush1.bf16.msra.mxu0 0
    %209 = vmatprep.subr.bf16.mxu0 0
    %210 = vmatpush1.bf16.msra.mxu0 0
    %211 = vmatprep.subr.bf16.mxu0 0
    %212 = vmatpush1.bf16.msra.mxu0 0
    %213 = vmatprep.subr.bf16.mxu0 0
    %214 = vmatpush1.bf16.msra.mxu0 0
    %215 = vmatprep.subr.bf16.mxu0 0
    %216 = vmatpush1.bf16.msra.mxu0 0
    %217 = vmatprep.subr.bf16.mxu0 0
    %218 = vmatpush1.bf16.msra.mxu0 0
    %219 = vmatprep.mubr.bf16.mxu0 0
    %220 = vmatmul.mubr.bf16.gmra.mrb[0].mxu0 %v103
    %v221 = vpop.f32.mrb[0].mxu0
    %v222 = vadd.f32 %v52, %v221
    %v223 = vpop.f32.mrb[0].mxu0
    %v224 = vadd.f32 %v56, %v223
    %v225 = vpop.f32.mrb[0].mxu0
    %v226 = vadd.f32 %v52, %v225
    %v227 = vpop.f32.mrb[0].mxu0
    %v228 = vadd.f32 %v56, %v227
    %229 = vmatprep.mubr.bf16.mxu0 0
    %230 = vmatmul.mubr.bf16.gmra.mrb[0].mxu0 %v106
    %v231 = vpop.f32.mrb[0].mxu0
    %v232 = vadd.f32 %v52, %v231
    %v233 = vpop.f32.mrb[0].mxu0
    %v234 = vadd.f32 %v56, %v233
    %v235 = vpop.f32.mrb[0].mxu0
    %v236 = vadd.f32 %v52, %v235
    %v237 = vpop.f32.mrb[0].mxu0
    %v238 = vadd.f32 %v56, %v237
    %239 = vmatprep.mubr.bf16.mxu0 0
    %240 = vmatmul.mubr.bf16.gmra.mrb[0].mxu0 %v109
    %v241 = vpop.f32.mrb[0].mxu0
    %v242 = vadd.f32 %v52, %v241
    %v243 = vpop.f32.mrb[0].mxu0
    %v244 = vadd.f32 %v56, %v243
    %v245 = vpop.f32.mrb[0].mxu0
    %v246 = vadd.f32 %v52, %v245
    %v247 = vpop.f32.mrb[0].mxu0
    %v248 = vadd.f32 %v56, %v247
    %249 = vmatprep.mubr.bf16.mxu0 0
    %250 = vmatmul.mubr.bf16.gmra.mrb[0].mxu0 %v112
    %v251 = vpop.f32.mrb[0].mxu0
    %v252 = vadd.f32 %v52, %v251
    %v253 = vpop.f32.mrb[0].mxu0
    %v254 = vadd.f32 %v56, %v253
    %v255 = vpop.f32.mrb[0].mxu0
    %v256 = vadd.f32 %v52, %v255
    %v257 = vpop.f32.mrb[0].mxu0
    %v258 = vadd.f32 %v56, %v257
    %259 = vdwg.mxu0
    %v260 = vpack.c.bf16 %v153, %v149
    %v261 = vpack.c.bf16 %v155, %v151
    %v262 = vpack.c.bf16 %v226, %v222
    %v263 = vpack.c.bf16 %v228, %v224
    %v264 = vpack.c.bf16 %v163, %v159
    %v265 = vpack.c.bf16 %v165, %v161
    %v266 = vpack.c.bf16 %v236, %v232
    %v267 = vpack.c.bf16 %v238, %v234
    %v268 = vpack.c.bf16 %v173, %v169
    %v269 = vpack.c.bf16 %v175, %v171
    %v270 = vpack.c.bf16 %v246, %v242
    %v271 = vpack.c.bf16 %v248, %v244
    %v272 = vpack.c.bf16 %v183, %v179
    %v273 = vpack.c.bf16 %v185, %v181
    %v274 = vpack.c.bf16 %v256, %v252
    %v275 = vpack.c.bf16 %v258, %v254
    %v292 = vunpack.c.l.b16 %v260
    %v293 = vunpack.c.l.b16 %v261
    %v294 = vunpack.c.l.b16 %v262
    %v295 = vunpack.c.l.b16 %v263
    %v296 = vunpack.c.h.b16 %v260
    %v297 = vunpack.c.h.b16 %v261
    %v298 = vunpack.c.h.b16 %v262
    %v299 = vunpack.c.h.b16 %v263
    %v300 = vunpack.c.l.b16 %v264
    %v301 = vunpack.c.l.b16 %v265
    %v302 = vunpack.c.l.b16 %v266
    %v303 = vunpack.c.l.b16 %v267
    %v304 = vunpack.c.h.b16 %v264
    %v305 = vunpack.c.h.b16 %v265
    %v306 = vunpack.c.h.b16 %v266
    %v307 = vunpack.c.h.b16 %v267
    %v308 = vunpack.c.l.b16 %v268
    %v309 = vunpack.c.l.b16 %v269
    %v310 = vunpack.c.l.b16 %v270
    %v311 = vunpack.c.l.b16 %v271
    %v312 = vunpack.c.h.b16 %v268
    %v313 = vunpack.c.h.b16 %v269
    %v314 = vunpack.c.h.b16 %v270
    %v315 = vunpack.c.h.b16 %v271
    %v316 = vunpack.c.l.b16 %v272
    %v317 = vunpack.c.l.b16 %v273
    %v318 = vunpack.c.l.b16 %v274
    %v319 = vunpack.c.l.b16 %v275
    %v320 = vunpack.c.h.b16 %v272
    %v321 = vunpack.c.h.b16 %v273
    %v322 = vunpack.c.h.b16 %v274
    %v323 = vunpack.c.h.b16 %v275
    %v324 = vpack.c.b16 %v293, %v292
    %v325 = vpack.c.b16 %v295, %v294
    %v326 = vpack.c.b16 %v297, %v296
    %v327 = vpack.c.b16 %v299, %v298
    %v328 = vpack.c.b16 %v301, %v300
    %v329 = vpack.c.b16 %v303, %v302
    %v330 = vpack.c.b16 %v305, %v304
    %v331 = vpack.c.b16 %v307, %v306
    %v332 = vpack.c.b16 %v309, %v308
    %v333 = vpack.c.b16 %v311, %v310
    %v334 = vpack.c.b16 %v313, %v312
    %v335 = vpack.c.b16 %v315, %v314
    %v336 = vpack.c.b16 %v317, %v316
    %v337 = vpack.c.b16 %v319, %v318
    %v338 = vpack.c.b16 %v321, %v320
    %v339 = vpack.c.b16 %v323, %v322
    %356 = vst [vmem:[%s3] sm:$0xff] %v324
    %357 = vst [vmem:[%s3 + $0x8] sm:$0xff] %v325
    %358 = vst [vmem:[%s3 + $0x10] sm:$0xff] %v326
    %359 = vst [vmem:[%s3 + $0x18] sm:$0xff] %v327
    %360 = vst [vmem:[%s3 + $0x20] sm:$0xff] %v328
    %361 = vst [vmem:[%s3 + $0x28] sm:$0xff] %v329
    %362 = vst [vmem:[%s3 + $0x30] sm:$0xff] %v330
    %363 = vst [vmem:[%s3 + $0x38] sm:$0xff] %v331
    %364 = vst [vmem:[%s3 + $0x40] sm:$0xff] %v332
    %365 = vst [vmem:[%s3 + $0x48] sm:$0xff] %v333
    %366 = vst [vmem:[%s3 + $0x50] sm:$0xff] %v334
    %367 = vst [vmem:[%s3 + $0x58] sm:$0xff] %v335
    %368 = vst [vmem:[%s3 + $0x60] sm:$0xff] %v336
    %369 = vst [vmem:[%s3 + $0x68] sm:$0xff] %v337
    %370 = vst [vmem:[%s3 + $0x70] sm:$0xff] %v338
    %371 = vst [vmem:[%s3 + $0x78] sm:$0xff] %v339
    // Predicated region
    $region18: #{lstm_model_forward.2} parent=1 // pred_check
      _
    $region19: #{lstm_model_forward.2} parent=1 // pred_check_branch
      %373 = sbr.rel (0) target = $region21
    $region20: #{lstm_model_forward.2} parent=1 // pred_region
      _
    $region21: #{lstm_model_forward.2} parent=1 // pred_fallthru
      _
    // Predicated region
    $region22: #{lstm_model_forward.2} parent=1 // pred_check
      _
    $region23: #{lstm_model_forward.2} parent=1 // pred_check_branch
      %375 = sbr.rel (0) target = $region25
    $region24: #{lstm_model_forward.2} parent=1 // pred_region
      _
    $region25: #{lstm_model_forward.2} parent=1 // pred_fallthru
      _
    %376 = vsyncpa [#allocation3], 1

// kernel: lstm_model_forward.3
$region0: #{lstm_model_forward.3}
  #allocation0 [shape = 'u32[]', space=smem, size = 0x4, offset = 0x4, fixed_abs, tag = 'smem constant byte address 0x4 - core index']
  #allocation1 [shape = 'u32[144,128]{1,0:T(1,128)}', space=vmem, size = 0x12000, scoped, tag = 'internal scratch']
  #allocation2 [shape = 'f32[8,128]{1,0:T(8,128)}', space=vmem, size = 0x1000, scoped, tag = 'scratch operand']
  #allocation3 [shape = 'f32[8,128]{1,0:T(8,128)}', space=vmem, size = 0x1000, scoped, tag = 'scratch operand']
  %s0 = inlined_call_operand.vmem [shape: bf16[8,8,512], index: 0, kind: input, shape index: {}]
  %s1 = inlined_call_operand.vmem [shape: bf16[128,512], index: 1, kind: input, shape index: {}]
  %s2 = inlined_call_operand.vmem [shape: bf16[128,128], index: 2, kind: input, shape index: {}]
  %s3 = inlined_call_operand.vmem [shape: f32[1,128], index: 3, kind: input, shape index: {}]
  %s4 = inlined_call_operand.vmem [shape: f32[8,128], index: 4, kind: output, shape index: {}]
  %s5 = sld [smem:[#allocation0]]
  $region57: #{lstm_model_forward.3} parent=0
    _
  %s7 = ssub.s32 1, %s5
  %s8 = scalar_select 0, %s7, %s5
  loop: start=0, step=1, limit=4
  $region2: #{lstm_model_forward.3} parent=0 // loop_pre_header
    _
  $region3: #{lstm_model_forward.3} parent=0 // loop_header
    %s10 = sphi 0, %s14
    %p11 = scmp.ge.s32.totalorder %s10, 4
    %s17 = sphi 0, %s29
    %s18 = sphi 0, %s25
    %s19 = sphi 0, %s17
    %s20 = sphi 0, %s18
    %s21 = sphi 0, %s19
    %s22 = sphi 0, %s20
    %s34 = sphi 0, %s36
    %s37 = sphi 0, %s34
    %s38 = sphi 0, %s37
    %s54 = sphi 0, %s38
    %s58 = sphi 0, %s58
    %s60 = sphi 0, %s58
    %s61 = sphi 0, %s60
    %s75 = sphi 0, %s61
    %s79 = sphi 0, %s79
    %s81 = sphi 0, %s79
    %s82 = sphi 0, %s81
    %s96 = sphi 0, %s82
    %s100 = sphi 0, %s100
    %s102 = sphi 0, %s100
    %s103 = sphi 0, %s102
    %s117 = sphi 0, %s103
    %s123 = sphi 0, %s125
    %s126 = sphi 0, %s123
    %s127 = sphi 0, %s126
    %s143 = sphi 0, %s127
  $region4: #{lstm_model_forward.3} parent=0 // loop_header_branch
    %13 = sbr.rel (%p11) target = $region8
  $region5: #{lstm_model_forward.3} parent=0 // loop_body
    %s15 = ssub.s32 %s10, 1
    %s16 = ssub.s32 %s10, 2
    %s23 = sadd.s32 1, %s18
    %p24 = scmp.ge.s32.totalorder %s23, 2
    %s25 = scalar_select %p24, 0, %s23
    %s26 = sadd.s32 1, %s17
    %s27 = scalar_select %p24, %s26, %s17
    %p28 = scmp.ge.s32.totalorder %s27, 1
    %s29 = scalar_select %p28, 0, %s27
    %s30 = ssub.s32 %s18, %s25
    %s31 = ssub.s32 %s17, %s29
    %s32 = sor.u32 %s30, %s31
    %p33 = scmp.eq.s32.totalorder %s32, 0
    %s35 = sadd.s32 %s34, 1
    %s36 = scalar_select %p33, %s34, %s35
    %p39 = pneg %p33
    %p40 = scmp.eq.s32.totalorder %s10, 1
    %p41 = por %p39, %p40
    %p42 = scmp.ne.s32.totalorder %s34, %s37
    %p43 = scmp.eq.s32.totalorder %s10, 0
    %p44 = por %p42, %p43
    %p45 = scmp.ne.s32.totalorder %s34, %s37
    %p46 = scmp.eq.s32.totalorder %s15, 1
    %p47 = por %p45, %p46
    %p48 = scmp.ne.s32.totalorder %s37, %s38
    %p49 = scmp.eq.s32.totalorder %s15, 0
    %p50 = por %p48, %p49
    %p51 = scmp.ne.s32.totalorder %s37, %s38
    %p52 = scmp.eq.s32.totalorder %s16, 1
    %p53 = por %p51, %p52
    %p55 = scmp.ne.s32.totalorder %s38, %s54
    %p56 = scmp.eq.s32.totalorder %s16, 0
    %p57 = por %p55, %p56
    %s59 = sadd.s32 %s58, 1
    %p62 = scmp.eq.s32.totalorder %s10, 1
    %p63 = scmp.ne.s32.totalorder %s58, %s60
    %p64 = scmp.eq.s32.totalorder %s10, 0
    %p65 = por %p63, %p64
    %p66 = scmp.ne.s32.totalorder %s58, %s60
    %p67 = scmp.eq.s32.totalorder %s15, 1
    %p68 = por %p66, %p67
    %p69 = scmp.ne.s32.totalorder %s60, %s61
    %p70 = scmp.eq.s32.totalorder %s15, 0
    %p71 = por %p69, %p70
    %p72 = scmp.ne.s32.totalorder %s60, %s61
    %p73 = scmp.eq.s32.totalorder %s16, 1
    %p74 = por %p72, %p73
    %p76 = scmp.ne.s32.totalorder %s61, %s75
    %p77 = scmp.eq.s32.totalorder %s16, 0
    %p78 = por %p76, %p77
    %s80 = sadd.s32 %s79, 1
    %p83 = scmp.eq.s32.totalorder %s10, 1
    %p84 = scmp.ne.s32.totalorder %s79, %s81
    %p85 = scmp.eq.s32.totalorder %s10, 0
    %p86 = por %p84, %p85
    %p87 = scmp.ne.s32.totalorder %s79, %s81
    %p88 = scmp.eq.s32.totalorder %s15, 1
    %p89 = por %p87, %p88
    %p90 = scmp.ne.s32.totalorder %s81, %s82
    %p91 = scmp.eq.s32.totalorder %s15, 0
    %p92 = por %p90, %p91
    %p93 = scmp.ne.s32.totalorder %s81, %s82
    %p94 = scmp.eq.s32.totalorder %s16, 1
    %p95 = por %p93, %p94
    %p97 = scmp.ne.s32.totalorder %s82, %s96
    %p98 = scmp.eq.s32.totalorder %s16, 0
    %p99 = por %p97, %p98
    %s101 = sadd.s32 %s100, 1
    %p104 = scmp.eq.s32.totalorder %s10, 1
    %p105 = scmp.ne.s32.totalorder %s100, %s102
    %p106 = scmp.eq.s32.totalorder %s10, 0
    %p107 = por %p105, %p106
    %p108 = scmp.ne.s32.totalorder %s100, %s102
    %p109 = scmp.eq.s32.totalorder %s15, 1
    %p110 = por %p108, %p109
    %p111 = scmp.ne.s32.totalorder %s102, %s103
    %p112 = scmp.eq.s32.totalorder %s15, 0
    %p113 = por %p111, %p112
    %p114 = scmp.ne.s32.totalorder %s102, %s103
    %p115 = scmp.eq.s32.totalorder %s16, 1
    %p116 = por %p114, %p115
    %p118 = scmp.ne.s32.totalorder %s103, %s117
    %p119 = scmp.eq.s32.totalorder %s16, 0
    %p120 = por %p118, %p119
    %s121 = ssub.s32 %s17, %s29
    %p122 = scmp.eq.s32.totalorder %s121, 0
    %s124 = sadd.s32 %s123, 1
    %s125 = scalar_select %p122, %s123, %s124
    %p128 = pneg %p122
    %p129 = scmp.eq.s32.totalorder %s10, 1
    %p130 = por %p128, %p129
    %p131 = scmp.ne.s32.totalorder %s123, %s126
    %p132 = scmp.eq.s32.totalorder %s10, 0
    %p133 = por %p131, %p132
    %p134 = scmp.ne.s32.totalorder %s123, %s126
    %p135 = scmp.eq.s32.totalorder %s15, 1
    %p136 = por %p134, %p135
    %p137 = scmp.ne.s32.totalorder %s126, %s127
    %p138 = scmp.eq.s32.totalorder %s15, 0
    %p139 = por %p137, %p138
    %p140 = scmp.ne.s32.totalorder %s126, %s127
    %p141 = scmp.eq.s32.totalorder %s16, 1
    %p142 = por %p140, %p141
    %p144 = scmp.ne.s32.totalorder %s127, %s143
    %p145 = scmp.eq.s32.totalorder %s16, 0
    %p146 = por %p144, %p145
    %p147 = scmp.le.s32.totalorder 1, %s10
    %p148 = scmp.lt.s32.totalorder %s10, 3
    %p149 = pnand %p147, %p148
    %p150 = pneg %p149
    // Predicated region
    $region9: #{lstm_model_forward.3} parent=5 // pred_check
      _
    $region10: #{lstm_model_forward.3} parent=5 // pred_check_branch
      %152 = sbr.rel (%p149) target = $region12
    $region11: #{lstm_model_forward.3} parent=5 // pred_region
      %s153 = ssub.s32 %s10, 1
      // Predicated region
      $region13: #{lstm_model_forward.3} parent=11 // pred_check
        %p154 = pneg %p71
      $region14: #{lstm_model_forward.3} parent=11 // pred_check_branch
        %156 = sbr.rel (%p154) target = $region16
      $region15: #{lstm_model_forward.3} parent=11 // pred_region
        _
      $region16: #{lstm_model_forward.3} parent=11 // pred_fallthru
        _
      // Predicated region
      $region17: #{lstm_model_forward.3} parent=11 // pred_check
        %p157 = pneg %p92
      $region18: #{lstm_model_forward.3} parent=11 // pred_check_branch
        %159 = sbr.rel (%p157) target = $region20
      $region19: #{lstm_model_forward.3} parent=11 // pred_region
        _
      $region20: #{lstm_model_forward.3} parent=11 // pred_fallthru
        _
      // Predicated region
      $region21: #{lstm_model_forward.3} parent=11 // pred_check
        %p160 = pneg %p113
      $region22: #{lstm_model_forward.3} parent=11 // pred_check_branch
        %162 = sbr.rel (%p160) target = $region24
      $region23: #{lstm_model_forward.3} parent=11 // pred_region
        _
      $region24: #{lstm_model_forward.3} parent=11 // pred_fallthru
        _
    $region12: #{lstm_model_forward.3} parent=5 // pred_fallthru
      _
    %p163 = scmp.lt.s32.totalorder %s10, 2
    // Predicated region
    $region25: #{lstm_model_forward.3} parent=5 // pred_check
      %p164 = pneg %p163
    $region26: #{lstm_model_forward.3} parent=5 // pred_check_branch
      %166 = sbr.rel (%p164) target = $region28
    $region27: #{lstm_model_forward.3} parent=5 // pred_region
      // Predicated region
      $region29: #{lstm_model_forward.3} parent=27 // pred_check
        %p167 = pneg %p44
      $region30: #{lstm_model_forward.3} parent=27 // pred_check_branch
        %169 = sbr.rel (%p167) target = $region32
      $region31: #{lstm_model_forward.3} parent=27 // pred_region
        %s170 = smul.u32 4, %s18
        %p171 = scmp.lt.s32.totalorder %s170, 7
        %s172 = scalar_select %p171, %s170, 7
        %p173 = scmp.lt.s32.totalorder %s17, 0
        %s174 = scalar_select %p173, %s17, 0
        %s175 = smul.addr %s174, 4
        %s176 = smul.addr %s172, 4
        %s177 = sadd.s32 %s175, %s176
        %s178 = smul.addr %s177, 4
        %s179 = scalar_lea.vmem %s0, %s178
        %s180 = smul.u32 4, %s18
      $region32: #{lstm_model_forward.3} parent=27 // pred_fallthru
        _
    $region28: #{lstm_model_forward.3} parent=5 // pred_fallthru
      _
    %p181 = scmp.le.s32.totalorder 1, %s10
    %p182 = scmp.lt.s32.totalorder %s10, 3
    %p183 = pnand %p181, %p182
    %p184 = pneg %p183
    // Predicated region
    $region33: #{lstm_model_forward.3} parent=5 // pred_check
      _
    $region34: #{lstm_model_forward.3} parent=5 // pred_check_branch
      %186 = sbr.rel (%p183) target = $region36
    $region35: #{lstm_model_forward.3} parent=5 // pred_region
      %s187 = ssub.s32 %s10, 1
      %s188 = smul.u32 4, %s20
      %p189 = scmp.lt.s32.totalorder %s188, 7
      %s190 = scalar_select %p189, %s188, 7
      %p191 = scmp.lt.s32.totalorder %s19, 0
      %s192 = scalar_select %p191, %s19, 0
      %s193 = smul.addr %s192, 4
      %s194 = smul.addr %s190, 4
      %s195 = sadd.s32 %s193, %s194
      %s196 = smul.addr %s195, 4
      %s197 = scalar_lea.vmem %s0, %s196
      %p198 = pneg %p50
      %p199 = pneg %p47
      %p200 = pneg %p71
      %p201 = pneg %p68
      %p202 = pneg %p92
      %p203 = pneg %p89
      %p204 = pneg %p113
      %p205 = pneg %p110
      %p206 = pneg %p139
      %p207 = pneg %p136
      %p208 = scmp.lt.s32.totalorder %s19, 0
      %s209 = scalar_select %p208, %s19, 0
      %s210 = smul.addr %s209, 8
      %s211 = scalar_lea.vmem %s4, %s210
      %s212 = smul.u32 4, %s20
      %p213 = scmp.lt.s32.totalorder %s212, 7
      %s214 = scalar_select %p213, %s212, 7
      %p215 = scmp.lt.s32.totalorder %s19, 0
      %s216 = scalar_select %p215, %s19, 0
      %s217 = smul.addr %s216, 4
      %s218 = smul.addr %s214, 4
      %s219 = sadd.s32 %s217, %s218
      %s220 = smul.addr %s219, 4
      %s221 = scalar_lea.vmem %s0, %s220
      %s222 = smul.u32 4, %s20
      %p223 = scmp.lt.s32.totalorder %s19, 0
      %s224 = scalar_select %p223, %s19, 0
      %s225 = smul.addr %s224, 8
      %s226 = scalar_lea.vmem %s4, %s225
      %p228 = scmp.eq.s32.totalorder %s20, 0
      // Predicated region
      $region37: #{lstm_model_forward.3} parent=35 // pred_check
        %p229 = pneg %p228
      $region38: #{lstm_model_forward.3} parent=35 // pred_check_branch
        %231 = sbr.rel (%p229) target = $region40
      $region39: #{lstm_model_forward.3} parent=35 // pred_region
        %232 = vst [vmem:[#allocation2] sm:$0xff] 0.0
        %233 = vst [vmem:[#allocation3] sm:$0xff] 0.0
      $region40: #{lstm_model_forward.3} parent=35 // pred_fallthru
        _
      %v234 = vld [vmem:[#allocation2] sm:$0xff]
      %v235 = vld [vmem:[#allocation3] sm:$0xff]
      %v236 = vld [vmem:[%s221] sm:$0xff]
      %v237 = vld [vmem:[%s221 + $0x8] sm:$0xff]
      %v238 = vunpack.c.l.bf16 %v236
      %v239 = vunpack.c.h.bf16 %v236
      %v240 = vunpack.c.l.bf16 %v237
      %v241 = vunpack.c.h.bf16 %v237
      %v242 = vpack.c.bf16 %v234, %v234
      %v243 = vld [vmem:[%s1] sm:$0xff]
      %v244 = vld [vmem:[%s1 + $0x8] sm:$0xff]
      %v245 = vld [vmem:[%s1 + $0x10] sm:$0xff]
      %v246 = vld [vmem:[%s1 + $0x18] sm:$0xff]
      %v247 = vld [vmem:[%s1 + $0x20] sm:$0xff]
      %v248 = vld [vmem:[%s1 + $0x28] sm:$0xff]
      %v249 = vld [vmem:[%s1 + $0x30] sm:$0xff]
      %v250 = vld [vmem:[%s1 + $0x38] sm:$0xff]
      %v251 = vld [vmem:[%s1 + $0x40] sm:$0xff]
      %v252 = vld [vmem:[%s1 + $0x48] sm:$0xff]
      %v253 = vld [vmem:[%s1 + $0x50] sm:$0xff]
      %v254 = vld [vmem:[%s1 + $0x58] sm:$0xff]
      %v255 = vld [vmem:[%s1 + $0x60] sm:$0xff]
      %v256 = vld [vmem:[%s1 + $0x68] sm:$0xff]
      %v257 = vld [vmem:[%s1 + $0x70] sm:$0xff]
      %v258 = vld [vmem:[%s1 + $0x78] sm:$0xff]
      %v259 = vld [vmem:[%s1 + $0x80] sm:$0xff]
      %v260 = vld [vmem:[%s1 + $0x88] sm:$0xff]
      %v261 = vld [vmem:[%s1 + $0x90] sm:$0xff]
      %v262 = vld [vmem:[%s1 + $0x98] sm:$0xff]
      %v263 = vld [vmem:[%s1 + $0xa0] sm:$0xff]
      %v264 = vld [vmem:[%s1 + $0xa8] sm:$0xff]
      %v265 = vld [vmem:[%s1 + $0xb0] sm:$0xff]
      %v266 = vld [vmem:[%s1 + $0xb8] sm:$0xff]
      %v267 = vld [vmem:[%s1 + $0xc0] sm:$0xff]
      %v268 = vld [vmem:[%s1 + $0xc8] sm:$0xff]
      %v269 = vld [vmem:[%s1 + $0xd0] sm:$0xff]
      %v270 = vld [vmem:[%s1 + $0xd8] sm:$0xff]
      %v271 = vld [vmem:[%s1 + $0xe0] sm:$0xff]
      %v272 = vld [vmem:[%s1 + $0xe8] sm:$0xff]
      %v273 = vld [vmem:[%s1 + $0xf0] sm:$0xff]
      %v274 = vld [vmem:[%s1 + $0xf8] sm:$0xff]
      %v307 = vunpack.c.l.b16 %v243
      %v308 = vunpack.c.h.b16 %v243
      %v309 = vunpack.c.l.b16 %v244
      %v310 = vunpack.c.h.b16 %v244
      %v311 = vunpack.c.l.b16 %v245
      %v312 = vunpack.c.h.b16 %v245
      %v313 = vunpack.c.l.b16 %v246
      %v314 = vunpack.c.h.b16 %v246
      %v315 = vunpack.c.l.b16 %v247
      %v316 = vunpack.c.h.b16 %v247
      %v317 = vunpack.c.l.b16 %v248
      %v318 = vunpack.c.h.b16 %v248
      %v319 = vunpack.c.l.b16 %v249
      %v320 = vunpack.c.h.b16 %v249
      %v321 = vunpack.c.l.b16 %v250
      %v322 = vunpack.c.h.b16 %v250
      %v323 = vunpack.c.l.b16 %v251
      %v324 = vunpack.c.h.b16 %v251
      %v325 = vunpack.c.l.b16 %v252
      %v326 = vunpack.c.h.b16 %v252
      %v327 = vunpack.c.l.b16 %v253
      %v328 = vunpack.c.h.b16 %v253
      %v329 = vunpack.c.l.b16 %v254
      %v330 = vunpack.c.h.b16 %v254
      %v331 = vunpack.c.l.b16 %v255
      %v332 = vunpack.c.h.b16 %v255
      %v333 = vunpack.c.l.b16 %v256
      %v334 = vunpack.c.h.b16 %v256
      %v335 = vunpack.c.l.b16 %v257
      %v336 = vunpack.c.h.b16 %v257
      %v337 = vunpack.c.l.b16 %v258
      %v338 = vunpack.c.h.b16 %v258
      %v339 = vunpack.c.l.b16 %v259
      %v340 = vunpack.c.h.b16 %v259
      %v341 = vunpack.c.l.b16 %v260
      %v342 = vunpack.c.h.b16 %v260
      %v343 = vunpack.c.l.b16 %v261
      %v344 = vunpack.c.h.b16 %v261
      %v345 = vunpack.c.l.b16 %v262
      %v346 = vunpack.c.h.b16 %v262
      %v347 = vunpack.c.l.b16 %v263
      %v348 = vunpack.c.h.b16 %v263
      %v349 = vunpack.c.l.b16 %v264
      %v350 = vunpack.c.h.b16 %v264
      %v351 = vunpack.c.l.b16 %v265
      %v352 = vunpack.c.h.b16 %v265
      %v353 = vunpack.c.l.b16 %v266
      %v354 = vunpack.c.h.b16 %v266
      %v355 = vunpack.c.l.b16 %v267
      %v356 = vunpack.c.h.b16 %v267
      %v357 = vunpack.c.l.b16 %v268
      %v358 = vunpack.c.h.b16 %v268
      %v359 = vunpack.c.l.b16 %v269
      %v360 = vunpack.c.h.b16 %v269
      %v361 = vunpack.c.l.b16 %v270
      %v362 = vunpack.c.h.b16 %v270
      %v363 = vunpack.c.l.b16 %v271
      %v364 = vunpack.c.h.b16 %v271
      %v365 = vunpack.c.l.b16 %v272
      %v366 = vunpack.c.h.b16 %v272
      %v367 = vunpack.c.l.b16 %v273
      %v368 = vunpack.c.h.b16 %v273
      %v369 = vunpack.c.l.b16 %v274
      %v370 = vunpack.c.h.b16 %v274
      %v371 = vpack.c.b16 %v311, %v307
      %v372 = vpack.c.b16 %v312, %v308
      %v373 = vpack.c.b16 %v313, %v309
      %v374 = vpack.c.b16 %v314, %v310
      %v375 = vpack.c.b16 %v319, %v315
      %v376 = vpack.c.b16 %v320, %v316
      %v377 = vpack.c.b16 %v321, %v317
      %v378 = vpack.c.b16 %v322, %v318
      %v379 = vpack.c.b16 %v327, %v323
      %v380 = vpack.c.b16 %v328, %v324
      %v381 = vpack.c.b16 %v329, %v325
      %v382 = vpack.c.b16 %v330, %v326
      %v383 = vpack.c.b16 %v335, %v331
      %v384 = vpack.c.b16 %v336, %v332
      %v385 = vpack.c.b16 %v337, %v333
      %v386 = vpack.c.b16 %v338, %v334
      %v387 = vpack.c.b16 %v343, %v339
      %v388 = vpack.c.b16 %v344, %v340
      %v389 = vpack.c.b16 %v345, %v341
      %v390 = vpack.c.b16 %v346, %v342
      %v391 = vpack.c.b16 %v351, %v347
      %v392 = vpack.c.b16 %v352, %v348
      %v393 = vpack.c.b16 %v353, %v349
      %v394 = vpack.c.b16 %v354, %v350
      %v395 = vpack.c.b16 %v359, %v355
      %v396 = vpack.c.b16 %v360, %v356
      %v397 = vpack.c.b16 %v361, %v357
      %v398 = vpack.c.b16 %v362, %v358
      %v399 = vpack.c.b16 %v367, %v363
      %v400 = vpack.c.b16 %v368, %v364
      %v401 = vpack.c.b16 %v369, %v365
      %v402 = vpack.c.b16 %v370, %v366
      %435 = vmatprep.subr.bf16.mxu0 %v372
      %436 = vmatpush1.bf16.msra.mxu0 %v371
      %437 = vmatprep.subr.bf16.mxu0 %v376
      %438 = vmatpush1.bf16.msra.mxu0 %v375
      %439 = vmatprep.subr.bf16.mxu0 %v380
      %440 = vmatpush1.bf16.msra.mxu0 %v379
      %441 = vmatprep.subr.bf16.mxu0 %v384
      %442 = vmatpush1.bf16.msra.mxu0 %v383
      %443 = vmatprep.subr.bf16.mxu0 %v388
      %444 = vmatpush1.bf16.msra.mxu0 %v387
      %445 = vmatprep.subr.bf16.mxu0 %v392
      %446 = vmatpush1.bf16.msra.mxu0 %v391
      %447 = vmatprep.subr.bf16.mxu0 %v396
      %448 = vmatpush1.bf16.msra.mxu0 %v395
      %449 = vmatprep.subr.bf16.mxu0 %v400
      %450 = vmatpush1.bf16.msra.mxu0 %v399
      %451 = vmatprep.subr.bf16.mxu0 0
      %452 = vmatpush1.bf16.msra.mxu0 0
      %453 = vmatprep.subr.bf16.mxu0 0
      %454 = vmatpush1.bf16.msra.mxu0 0
      %455 = vmatprep.subr.bf16.mxu0 0
      %456 = vmatpush1.bf16.msra.mxu0 0
      %457 = vmatprep.subr.bf16.mxu0 0
      %458 = vmatpush1.bf16.msra.mxu0 0
      %459 = vmatprep.subr.bf16.mxu0 0
      %460 = vmatpush1.bf16.msra.mxu0 0
      %461 = vmatprep.subr.bf16.mxu0 0
      %462 = vmatpush1.bf16.msra.mxu0 0
      %463 = vmatprep.subr.bf16.mxu0 0
      %464 = vmatpush1.bf16.msra.mxu0 0
      %465 = vmatprep.subr.bf16.mxu0 0
      %466 = vmatpush1.bf16.msra.mxu0 0
      %467 = vmatprep.mubr.bf16.mxu0 0
      %468 = vmatmul.mubr.bf16.gmra.mrb[0].mxu0 %v242
      %v469 = vpop.f32.mrb[0].mxu0
      %v470 = vadd.f32 0.0, %v469
      %v471 = vpop.f32.mrb[0].mxu0
      %v472 = vadd.f32 0.0, %v471
      %v473 = vpop.f32.mrb[0].mxu0
      %v474 = vpop.f32.mrb[0].mxu0
      %475 = vdwg.mxu0
      %476 = vmatprep.subr.bf16.mxu0 %v374
      %477 = vmatpush1.bf16.msra.mxu0 %v373
      %478 = vmatprep.subr.bf16.mxu0 %v378
      %479 = vmatpush1.bf16.msra.mxu0 %v377
      %480 = vmatprep.subr.bf16.mxu0 %v382
      %481 = vmatpush1.bf16.msra.mxu0 %v381
      %482 = vmatprep.subr.bf16.mxu0 %v386
      %483 = vmatpush1.bf16.msra.mxu0 %v385
      %484 = vmatprep.subr.bf16.mxu0 %v390
      %485 = vmatpush1.bf16.msra.mxu0 %v389
      %486 = vmatprep.subr.bf16.mxu0 %v394
      %487 = vmatpush1.bf16.msra.mxu0 %v393
      %488 = vmatprep.subr.bf16.mxu0 %v398
      %489 = vmatpush1.bf16.msra.mxu0 %v397
      %490 = vmatprep.subr.bf16.mxu0 %v402
      %491 = vmatpush1.bf16.msra.mxu0 %v401
      %492 = vmatprep.subr.bf16.mxu0 0
      %493 = vmatpush1.bf16.msra.mxu0 0
      %494 = vmatprep.subr.bf16.mxu0 0
      %495 = vmatpush1.bf16.msra.mxu0 0
      %496 = vmatprep.subr.bf16.mxu0 0
      %497 = vmatpush1.bf16.msra.mxu0 0
      %498 = vmatprep.subr.bf16.mxu0 0
      %499 = vmatpush1.bf16.msra.mxu0 0
      %500 = vmatprep.subr.bf16.mxu0 0
      %501 = vmatpush1.bf16.msra.mxu0 0
      %502 = vmatprep.subr.bf16.mxu0 0
      %503 = vmatpush1.bf16.msra.mxu0 0
      %504 = vmatprep.subr.bf16.mxu0 0
      %505 = vmatpush1.bf16.msra.mxu0 0
      %506 = vmatprep.subr.bf16.mxu0 0
      %507 = vmatpush1.bf16.msra.mxu0 0
      %508 = vmatprep.mubr.bf16.mxu0 0
      %509 = vmatmul.mubr.bf16.gmra.mrb[0].mxu0 %v242
      %v510 = vpop.f32.mrb[0].mxu0
      %v511 = vadd.f32 0.0, %v510
      %v512 = vpop.f32.mrb[0].mxu0
      %v513 = vadd.f32 0.0, %v512
      %v514 = vpop.f32.mrb[0].mxu0
      %v515 = vpop.f32.mrb[0].mxu0
      %516 = vdwg.mxu0
      %v517 = vadd.f32 %v238, %v470
      %v518 = vadd.f32 %v239, %v472
      %v519 = vadd.f32 %v240, %v511
      %v520 = vadd.f32 %v241, %v513
      %v521 = vxor.u32 %v517, 2147483648
      %v522 = vmul.f32 %v521, 1.442695
      %v523 = vpow.pop %v522
      %v524 = vadd.f32 %v523, 1.0
      %v525 = vrcp.pop %v524
      %v526 = vmul.f32 1.0, %v525
      %v527 = vxor.u32 %v518, 2147483648
      %v528 = vmul.f32 %v527, 1.442695
      %v529 = vpow.pop %v528
      %v530 = vadd.f32 %v529, 1.0
      %v531 = vrcp.pop %v530
      %v532 = vmul.f32 1.0, %v531
      %v533 = vtanh.pop %v519
      %v534 = vxor.u32 %v520, 2147483648
      %v535 = vmul.f32 %v534, 1.442695
      %v536 = vpow.pop %v535
      %v537 = vadd.f32 %v536, 1.0
      %v538 = vrcp.pop %v537
      %v539 = vmul.f32 1.0, %v538
      %v540 = vmul.f32 %v532, %v235
      %v541 = vmul.f32 %v526, %v533
      %v542 = vadd.f32 %v540, %v541
      %v543 = vtanh.pop %v542
      %v544 = vmul.f32 %v539, %v543
      %s545 = scalar_lea.vmem %s221, 16
      %v546 = vld [vmem:[%s545] sm:$0xff]
      %v547 = vld [vmem:[%s545 + $0x8] sm:$0xff]
      %v548 = vunpack.c.l.bf16 %v546
      %v549 = vunpack.c.h.bf16 %v546
      %v550 = vunpack.c.l.bf16 %v547
      %v551 = vunpack.c.h.bf16 %v547
      %v552 = vpack.c.bf16 %v544, %v544
      %553 = vmatprep.subr.bf16.mxu0 %v372
      %554 = vmatpush1.bf16.msra.mxu0 %v371
      %555 = vmatprep.subr.bf16.mxu0 %v376
      %556 = vmatpush1.bf16.msra.mxu0 %v375
      %557 = vmatprep.subr.bf16.mxu0 %v380
      %558 = vmatpush1.bf16.msra.mxu0 %v379
      %559 = vmatprep.subr.bf16.mxu0 %v384
      %560 = vmatpush1.bf16.msra.mxu0 %v383
      %561 = vmatprep.subr.bf16.mxu0 %v388
      %562 = vmatpush1.bf16.msra.mxu0 %v387
      %563 = vmatprep.subr.bf16.mxu0 %v392
      %564 = vmatpush1.bf16.msra.mxu0 %v391
      %565 = vmatprep.subr.bf16.mxu0 %v396
      %566 = vmatpush1.bf16.msra.mxu0 %v395
      %567 = vmatprep.subr.bf16.mxu0 %v400
      %568 = vmatpush1.bf16.msra.mxu0 %v399
      %569 = vmatprep.subr.bf16.mxu0 0
      %570 = vmatpush1.bf16.msra.mxu0 0
      %571 = vmatprep.subr.bf16.mxu0 0
      %572 = vmatpush1.bf16.msra.mxu0 0
      %573 = vmatprep.subr.bf16.mxu0 0
      %574 = vmatpush1.bf16.msra.mxu0 0
      %575 = vmatprep.subr.bf16.mxu0 0
      %576 = vmatpush1.bf16.msra.mxu0 0
      %577 = vmatprep.subr.bf16.mxu0 0
      %578 = vmatpush1.bf16.msra.mxu0 0
      %579 = vmatprep.subr.bf16.mxu0 0
      %580 = vmatpush1.bf16.msra.mxu0 0
      %581 = vmatprep.subr.bf16.mxu0 0
      %582 = vmatpush1.bf16.msra.mxu0 0
      %583 = vmatprep.subr.bf16.mxu0 0
      %584 = vmatpush1.bf16.msra.mxu0 0
      %585 = vmatprep.mubr.bf16.mxu0 0
      %586 = vmatmul.mubr.bf16.gmra.mrb[0].mxu0 %v552
      %v587 = vpop.f32.mrb[0].mxu0
      %v588 = vadd.f32 0.0, %v587
      %v589 = vpop.f32.mrb[0].mxu0
      %v590 = vadd.f32 0.0, %v589
      %v591 = vpop.f32.mrb[0].mxu0
      %v592 = vpop.f32.mrb[0].mxu0
      %593 = vdwg.mxu0
      %594 = vmatprep.subr.bf16.mxu0 %v374
      %595 = vmatpush1.bf16.msra.mxu0 %v373
      %596 = vmatprep.subr.bf16.mxu0 %v378
      %597 = vmatpush1.bf16.msra.mxu0 %v377
      %598 = vmatprep.subr.bf16.mxu0 %v382
      %599 = vmatpush1.bf16.msra.mxu0 %v381
      %600 = vmatprep.subr.bf16.mxu0 %v386
      %601 = vmatpush1.bf16.msra.mxu0 %v385
      %602 = vmatprep.subr.bf16.mxu0 %v390
      %603 = vmatpush1.bf16.msra.mxu0 %v389
      %604 = vmatprep.subr.bf16.mxu0 %v394
      %605 = vmatpush1.bf16.msra.mxu0 %v393
      %606 = vmatprep.subr.bf16.mxu0 %v398
      %607 = vmatpush1.bf16.msra.mxu0 %v397
      %608 = vmatprep.subr.bf16.mxu0 %v402
      %609 = vmatpush1.bf16.msra.mxu0 %v401
      %610 = vmatprep.subr.bf16.mxu0 0
      %611 = vmatpush1.bf16.msra.mxu0 0
      %612 = vmatprep.subr.bf16.mxu0 0
      %613 = vmatpush1.bf16.msra.mxu0 0
      %614 = vmatprep.subr.bf16.mxu0 0
      %615 = vmatpush1.bf16.msra.mxu0 0
      %616 = vmatprep.subr.bf16.mxu0 0
      %617 = vmatpush1.bf16.msra.mxu0 0
      %618 = vmatprep.subr.bf16.mxu0 0
      %619 = vmatpush1.bf16.msra.mxu0 0
      %620 = vmatprep.subr.bf16.mxu0 0
      %621 = vmatpush1.bf16.msra.mxu0 0
      %622 = vmatprep.subr.bf16.mxu0 0
      %623 = vmatpush1.bf16.msra.mxu0 0
      %624 = vmatprep.subr.bf16.mxu0 0
      %625 = vmatpush1.bf16.msra.mxu0 0
      %626 = vmatprep.mubr.bf16.mxu0 0
      %627 = vmatmul.mubr.bf16.gmra.mrb[0].mxu0 %v552
      %v628 = vpop.f32.mrb[0].mxu0
      %v629 = vadd.f32 0.0, %v628
      %v630 = vpop.f32.mrb[0].mxu0
      %v631 = vadd.f32 0.0, %v630
      %v632 = vpop.f32.mrb[0].mxu0
      %v633 = vpop.f32.mrb[0].mxu0
      %634 = vdwg.mxu0
      %v635 = vadd.f32 %v548, %v588
      %v636 = vadd.f32 %v549, %v590
      %v637 = vadd.f32 %v550, %v629
      %v638 = vadd.f32 %v551, %v631
      %v639 = vxor.u32 %v635, 2147483648
      %v640 = vmul.f32 %v639, 1.442695
      %v641 = vpow.pop %v640
      %v642 = vadd.f32 %v641, 1.0
      %v643 = vrcp.pop %v642
      %v644 = vmul.f32 1.0, %v643
      %v645 = vxor.u32 %v636, 2147483648
      %v646 = vmul.f32 %v645, 1.442695
      %v647 = vpow.pop %v646
      %v648 = vadd.f32 %v647, 1.0
      %v649 = vrcp.pop %v648
      %v650 = vmul.f32 1.0, %v649
      %v651 = vtanh.pop %v637
      %v652 = vxor.u32 %v638, 2147483648
      %v653 = vmul.f32 %v652, 1.442695
      %v654 = vpow.pop %v653
      %v655 = vadd.f32 %v654, 1.0
      %v656 = vrcp.pop %v655
      %v657 = vmul.f32 1.0, %v656
      %v658 = vmul.f32 %v650, %v542
      %v659 = vmul.f32 %v644, %v651
      %v660 = vadd.f32 %v658, %v659
      %v661 = vtanh.pop %v660
      %v662 = vmul.f32 %v657, %v661
      %s663 = scalar_lea.vmem %s221, 32
      %v664 = vld [vmem:[%s663] sm:$0xff]
      %v665 = vld [vmem:[%s663 + $0x8] sm:$0xff]
      %v666 = vunpack.c.l.bf16 %v664
      %v667 = vunpack.c.h.bf16 %v664
      %v668 = vunpack.c.l.bf16 %v665
      %v669 = vunpack.c.h.bf16 %v665
      %v670 = vpack.c.bf16 %v662, %v662
      %671 = vmatprep.subr.bf16.mxu0 %v372
      %672 = vmatpush1.bf16.msra.mxu0 %v371
      %673 = vmatprep.subr.bf16.mxu0 %v376
      %674 = vmatpush1.bf16.msra.mxu0 %v375
      %675 = vmatprep.subr.bf16.mxu0 %v380
      %676 = vmatpush1.bf16.msra.mxu0 %v379
      %677 = vmatprep.subr.bf16.mxu0 %v384
      %678 = vmatpush1.bf16.msra.mxu0 %v383
      %679 = vmatprep.subr.bf16.mxu0 %v388
      %680 = vmatpush1.bf16.msra.mxu0 %v387
      %681 = vmatprep.subr.bf16.mxu0 %v392
      %682 = vmatpush1.bf16.msra.mxu0 %v391
      %683 = vmatprep.subr.bf16.mxu0 %v396
      %684 = vmatpush1.bf16.msra.mxu0 %v395
      %685 = vmatprep.subr.bf16.mxu0 %v400
      %686 = vmatpush1.bf16.msra.mxu0 %v399
      %687 = vmatprep.subr.bf16.mxu0 0
      %688 = vmatpush1.bf16.msra.mxu0 0
      %689 = vmatprep.subr.bf16.mxu0 0
      %690 = vmatpush1.bf16.msra.mxu0 0
      %691 = vmatprep.subr.bf16.mxu0 0
      %692 = vmatpush1.bf16.msra.mxu0 0
      %693 = vmatprep.subr.bf16.mxu0 0
      %694 = vmatpush1.bf16.msra.mxu0 0
      %695 = vmatprep.subr.bf16.mxu0 0
      %696 = vmatpush1.bf16.msra.mxu0 0
      %697 = vmatprep.subr.bf16.mxu0 0
      %698 = vmatpush1.bf16.msra.mxu0 0
      %699 = vmatprep.subr.bf16.mxu0 0
      %700 = vmatpush1.bf16.msra.mxu0 0
      %701 = vmatprep.subr.bf16.mxu0 0
      %702 = vmatpush1.bf16.msra.mxu0 0
      %703 = vmatprep.mubr.bf16.mxu0 0
      %704 = vmatmul.mubr.bf16.gmra.mrb[0].mxu0 %v670
      %v705 = vpop.f32.mrb[0].mxu0
      %v706 = vadd.f32 0.0, %v705
      %v707 = vpop.f32.mrb[0].mxu0
      %v708 = vadd.f32 0.0, %v707
      %v709 = vpop.f32.mrb[0].mxu0
      %v710 = vpop.f32.mrb[0].mxu0
      %711 = vdwg.mxu0
      %712 = vmatprep.subr.bf16.mxu0 %v374
      %713 = vmatpush1.bf16.msra.mxu0 %v373
      %714 = vmatprep.subr.bf16.mxu0 %v378
      %715 = vmatpush1.bf16.msra.mxu0 %v377
      %716 = vmatprep.subr.bf16.mxu0 %v382
      %717 = vmatpush1.bf16.msra.mxu0 %v381
      %718 = vmatprep.subr.bf16.mxu0 %v386
      %719 = vmatpush1.bf16.msra.mxu0 %v385
      %720 = vmatprep.subr.bf16.mxu0 %v390
      %721 = vmatpush1.bf16.msra.mxu0 %v389
      %722 = vmatprep.subr.bf16.mxu0 %v394
      %723 = vmatpush1.bf16.msra.mxu0 %v393
      %724 = vmatprep.subr.bf16.mxu0 %v398
      %725 = vmatpush1.bf16.msra.mxu0 %v397
      %726 = vmatprep.subr.bf16.mxu0 %v402
      %727 = vmatpush1.bf16.msra.mxu0 %v401
      %728 = vmatprep.subr.bf16.mxu0 0
      %729 = vmatpush1.bf16.msra.mxu0 0
      %730 = vmatprep.subr.bf16.mxu0 0
      %731 = vmatpush1.bf16.msra.mxu0 0
      %732 = vmatprep.subr.bf16.mxu0 0
      %733 = vmatpush1.bf16.msra.mxu0 0
      %734 = vmatprep.subr.bf16.mxu0 0
      %735 = vmatpush1.bf16.msra.mxu0 0
      %736 = vmatprep.subr.bf16.mxu0 0
      %737 = vmatpush1.bf16.msra.mxu0 0
      %738 = vmatprep.subr.bf16.mxu0 0
      %739 = vmatpush1.bf16.msra.mxu0 0
      %740 = vmatprep.subr.bf16.mxu0 0
      %741 = vmatpush1.bf16.msra.mxu0 0
      %742 = vmatprep.subr.bf16.mxu0 0
      %743 = vmatpush1.bf16.msra.mxu0 0
      %744 = vmatprep.mubr.bf16.mxu0 0
      %745 = vmatmul.mubr.bf16.gmra.mrb[0].mxu0 %v670
      %v746 = vpop.f32.mrb[0].mxu0
      %v747 = vadd.f32 0.0, %v746
      %v748 = vpop.f32.mrb[0].mxu0
      %v749 = vadd.f32 0.0, %v748
      %v750 = vpop.f32.mrb[0].mxu0
      %v751 = vpop.f32.mrb[0].mxu0
      %752 = vdwg.mxu0
      %v753 = vadd.f32 %v666, %v706
      %v754 = vadd.f32 %v667, %v708
      %v755 = vadd.f32 %v668, %v747
      %v756 = vadd.f32 %v669, %v749
      %v757 = vxor.u32 %v753, 2147483648
      %v758 = vmul.f32 %v757, 1.442695
      %v759 = vpow.pop %v758
      %v760 = vadd.f32 %v759, 1.0
      %v761 = vrcp.pop %v760
      %v762 = vmul.f32 1.0, %v761
      %v763 = vxor.u32 %v754, 2147483648
      %v764 = vmul.f32 %v763, 1.442695
      %v765 = vpow.pop %v764
      %v766 = vadd.f32 %v765, 1.0
      %v767 = vrcp.pop %v766
      %v768 = vmul.f32 1.0, %v767
      %v769 = vtanh.pop %v755
      %v770 = vxor.u32 %v756, 2147483648
      %v771 = vmul.f32 %v770, 1.442695
      %v772 = vpow.pop %v771
      %v773 = vadd.f32 %v772, 1.0
      %v774 = vrcp.pop %v773
      %v775 = vmul.f32 1.0, %v774
      %v776 = vmul.f32 %v768, %v660
      %v777 = vmul.f32 %v762, %v769
      %v778 = vadd.f32 %v776, %v777
      %v779 = vtanh.pop %v778
      %v780 = vmul.f32 %v775, %v779
      %s781 = scalar_lea.vmem %s221, 48
      %v782 = vld [vmem:[%s781] sm:$0xff]
      %v783 = vld [vmem:[%s781 + $0x8] sm:$0xff]
      %v784 = vunpack.c.l.bf16 %v782
      %v785 = vunpack.c.h.bf16 %v782
      %v786 = vunpack.c.l.bf16 %v783
      %v787 = vunpack.c.h.bf16 %v783
      %v788 = vpack.c.bf16 %v780, %v780
      %789 = vmatprep.subr.bf16.mxu0 %v372
      %790 = vmatpush1.bf16.msra.mxu0 %v371
      %791 = vmatprep.subr.bf16.mxu0 %v376
      %792 = vmatpush1.bf16.msra.mxu0 %v375
      %793 = vmatprep.subr.bf16.mxu0 %v380
      %794 = vmatpush1.bf16.msra.mxu0 %v379
      %795 = vmatprep.subr.bf16.mxu0 %v384
      %796 = vmatpush1.bf16.msra.mxu0 %v383
      %797 = vmatprep.subr.bf16.mxu0 %v388
      %798 = vmatpush1.bf16.msra.mxu0 %v387
      %799 = vmatprep.subr.bf16.mxu0 %v392
      %800 = vmatpush1.bf16.msra.mxu0 %v391
      %801 = vmatprep.subr.bf16.mxu0 %v396
      %802 = vmatpush1.bf16.msra.mxu0 %v395
      %803 = vmatprep.subr.bf16.mxu0 %v400
      %804 = vmatpush1.bf16.msra.mxu0 %v399
      %805 = vmatprep.subr.bf16.mxu0 0
      %806 = vmatpush1.bf16.msra.mxu0 0
      %807 = vmatprep.subr.bf16.mxu0 0
      %808 = vmatpush1.bf16.msra.mxu0 0
      %809 = vmatprep.subr.bf16.mxu0 0
      %810 = vmatpush1.bf16.msra.mxu0 0
      %811 = vmatprep.subr.bf16.mxu0 0
      %812 = vmatpush1.bf16.msra.mxu0 0
      %813 = vmatprep.subr.bf16.mxu0 0
      %814 = vmatpush1.bf16.msra.mxu0 0
      %815 = vmatprep.subr.bf16.mxu0 0
      %816 = vmatpush1.bf16.msra.mxu0 0
      %817 = vmatprep.subr.bf16.mxu0 0
      %818 = vmatpush1.bf16.msra.mxu0 0
      %819 = vmatprep.subr.bf16.mxu0 0
      %820 = vmatpush1.bf16.msra.mxu0 0
      %821 = vmatprep.mubr.bf16.mxu0 0
      %822 = vmatmul.mubr.bf16.gmra.mrb[0].mxu0 %v788
      %v823 = vpop.f32.mrb[0].mxu0
      %v824 = vadd.f32 0.0, %v823
      %v825 = vpop.f32.mrb[0].mxu0
      %v826 = vadd.f32 0.0, %v825
      %v827 = vpop.f32.mrb[0].mxu0
      %v828 = vpop.f32.mrb[0].mxu0
      %829 = vdwg.mxu0
      %830 = vmatprep.subr.bf16.mxu0 %v374
      %831 = vmatpush1.bf16.msra.mxu0 %v373
      %832 = vmatprep.subr.bf16.mxu0 %v378
      %833 = vmatpush1.bf16.msra.mxu0 %v377
      %834 = vmatprep.subr.bf16.mxu0 %v382
      %835 = vmatpush1.bf16.msra.mxu0 %v381
      %836 = vmatprep.subr.bf16.mxu0 %v386
      %837 = vmatpush1.bf16.msra.mxu0 %v385
      %838 = vmatprep.subr.bf16.mxu0 %v390
      %839 = vmatpush1.bf16.msra.mxu0 %v389
      %840 = vmatprep.subr.bf16.mxu0 %v394
      %841 = vmatpush1.bf16.msra.mxu0 %v393
      %842 = vmatprep.subr.bf16.mxu0 %v398
      %843 = vmatpush1.bf16.msra.mxu0 %v397
      %844 = vmatprep.subr.bf16.mxu0 %v402
      %845 = vmatpush1.bf16.msra.mxu0 %v401
      %846 = vmatprep.subr.bf16.mxu0 0
      %847 = vmatpush1.bf16.msra.mxu0 0
      %848 = vmatprep.subr.bf16.mxu0 0
      %849 = vmatpush1.bf16.msra.mxu0 0
      %850 = vmatprep.subr.bf16.mxu0 0
      %851 = vmatpush1.bf16.msra.mxu0 0
      %852 = vmatprep.subr.bf16.mxu0 0
      %853 = vmatpush1.bf16.msra.mxu0 0
      %854 = vmatprep.subr.bf16.mxu0 0
      %855 = vmatpush1.bf16.msra.mxu0 0
      %856 = vmatprep.subr.bf16.mxu0 0
      %857 = vmatpush1.bf16.msra.mxu0 0
      %858 = vmatprep.subr.bf16.mxu0 0
      %859 = vmatpush1.bf16.msra.mxu0 0
      %860 = vmatprep.subr.bf16.mxu0 0
      %861 = vmatpush1.bf16.msra.mxu0 0
      %862 = vmatprep.mubr.bf16.mxu0 0
      %863 = vmatmul.mubr.bf16.gmra.mrb[0].mxu0 %v788
      %v864 = vpop.f32.mrb[0].mxu0
      %v865 = vadd.f32 0.0, %v864
      %v866 = vpop.f32.mrb[0].mxu0
      %v867 = vadd.f32 0.0, %v866
      %v868 = vpop.f32.mrb[0].mxu0
      %v869 = vpop.f32.mrb[0].mxu0
      %870 = vdwg.mxu0
      %v871 = vadd.f32 %v784, %v824
      %v872 = vadd.f32 %v785, %v826
      %v873 = vadd.f32 %v786, %v865
      %v874 = vadd.f32 %v787, %v867
      %v875 = vxor.u32 %v871, 2147483648
      %v876 = vmul.f32 %v875, 1.442695
      %v877 = vpow.pop %v876
      %v878 = vadd.f32 %v877, 1.0
      %v879 = vrcp.pop %v878
      %v880 = vmul.f32 1.0, %v879
      %v881 = vxor.u32 %v872, 2147483648
      %v882 = vmul.f32 %v881, 1.442695
      %v883 = vpow.pop %v882
      %v884 = vadd.f32 %v883, 1.0
      %v885 = vrcp.pop %v884
      %v886 = vmul.f32 1.0, %v885
      %v887 = vtanh.pop %v873
      %v888 = vxor.u32 %v874, 2147483648
      %v889 = vmul.f32 %v888, 1.442695
      %v890 = vpow.pop %v889
      %v891 = vadd.f32 %v890, 1.0
      %v892 = vrcp.pop %v891
      %v893 = vmul.f32 1.0, %v892
      %v894 = vmul.f32 %v886, %v778
      %v895 = vmul.f32 %v880, %v887
      %v896 = vadd.f32 %v894, %v895
      %v897 = vtanh.pop %v896
      %v898 = vmul.f32 %v893, %v897
      %899 = vst [vmem:[#allocation2] sm:$0xff] %v898
      %900 = vst [vmem:[#allocation3] sm:$0xff] %v896
      %p901 = scmp.eq.s32.totalorder %s20, 1
      // Predicated region
      $region41: #{lstm_model_forward.3} parent=35 // pred_check
        %p902 = pneg %p901
      $region42: #{lstm_model_forward.3} parent=35 // pred_check_branch
        %904 = sbr.rel (%p902) target = $region44
      $region43: #{lstm_model_forward.3} parent=35 // pred_region
        %v905 = vpack.c.bf16 %v898, %v898
        %v906 = vld [vmem:[%s2] sm:$0xf]
        %v907 = vld [vmem:[%s2 + $0x4] sm:$0xf]
        %v908 = vld [vmem:[%s2 + $0x8] sm:$0xf]
        %v909 = vld [vmem:[%s2 + $0xc] sm:$0xf]
        %v910 = vld [vmem:[%s2 + $0x10] sm:$0xf]
        %v911 = vld [vmem:[%s2 + $0x14] sm:$0xf]
        %v912 = vld [vmem:[%s2 + $0x18] sm:$0xf]
        %v913 = vld [vmem:[%s2 + $0x1c] sm:$0xf]
        %v914 = vld [vmem:[%s2 + $0x20] sm:$0xf]
        %v915 = vld [vmem:[%s2 + $0x24] sm:$0xf]
        %v916 = vld [vmem:[%s2 + $0x28] sm:$0xf]
        %v917 = vld [vmem:[%s2 + $0x2c] sm:$0xf]
        %v918 = vld [vmem:[%s2 + $0x30] sm:$0xf]
        %v919 = vld [vmem:[%s2 + $0x34] sm:$0xf]
        %v920 = vld [vmem:[%s2 + $0x38] sm:$0xf]
        %v921 = vld [vmem:[%s2 + $0x3c] sm:$0xf]
        %v922 = vld [vmem:[%s3] sm:$0x1]
        %v924 = vlaneseq
        %v925 = vshrl.u32 %v924, 7
        %v926 = vsub.s32 0, %v925
        %v927 = vrot.slane %v922, %v926
        %v945 = vunpack.c.l.b16 %v906
        %v946 = vunpack.c.l.b16 %v907
        %v947 = vunpack.c.l.b16 %v908
        %v948 = vunpack.c.l.b16 %v909
        %v949 = vunpack.c.l.b16 %v910
        %v950 = vunpack.c.l.b16 %v911
        %v951 = vunpack.c.l.b16 %v912
        %v952 = vunpack.c.l.b16 %v913
        %v953 = vunpack.c.l.b16 %v914
        %v954 = vunpack.c.l.b16 %v915
        %v955 = vunpack.c.l.b16 %v916
        %v956 = vunpack.c.l.b16 %v917
        %v957 = vunpack.c.l.b16 %v918
        %v958 = vunpack.c.l.b16 %v919
        %v959 = vunpack.c.l.b16 %v920
        %v960 = vunpack.c.l.b16 %v921
        %v961 = vpack.c.b16 %v946, %v945
        %v962 = vpack.c.b16 %v948, %v947
        %v963 = vpack.c.b16 %v950, %v949
        %v964 = vpack.c.b16 %v952, %v951
        %v965 = vpack.c.b16 %v954, %v953
        %v966 = vpack.c.b16 %v956, %v955
        %v967 = vpack.c.b16 %v958, %v957
        %v968 = vpack.c.b16 %v960, %v959
        %977 = vmatprep.subr.bf16.mxu0 0
        %978 = vmatpush1.bf16.msra.mxu0 %v961
        %979 = vmatprep.subr.bf16.mxu0 0
        %980 = vmatpush1.bf16.msra.mxu0 %v962
        %981 = vmatprep.subr.bf16.mxu0 0
        %982 = vmatpush1.bf16.msra.mxu0 %v963
        %983 = vmatprep.subr.bf16.mxu0 0
        %984 = vmatpush1.bf16.msra.mxu0 %v964
        %985 = vmatprep.subr.bf16.mxu0 0
        %986 = vmatpush1.bf16.msra.mxu0 %v965
        %987 = vmatprep.subr.bf16.mxu0 0
        %988 = vmatpush1.bf16.msra.mxu0 %v966
        %989 = vmatprep.subr.bf16.mxu0 0
        %990 = vmatpush1.bf16.msra.mxu0 %v967
        %991 = vmatprep.subr.bf16.mxu0 0
        %992 = vmatpush1.bf16.msra.mxu0 %v968
        %993 = vmatprep.subr.bf16.mxu0 0
        %994 = vmatpush1.bf16.msra.mxu0 0
        %995 = vmatprep.subr.bf16.mxu0 0
        %996 = vmatpush1.bf16.msra.mxu0 0
        %997 = vmatprep.subr.bf16.mxu0 0
        %998 = vmatpush1.bf16.msra.mxu0 0
        %999 = vmatprep.subr.bf16.mxu0 0
        %1000 = vmatpush1.bf16.msra.mxu0 0
        %1001 = vmatprep.subr.bf16.mxu0 0
        %1002 = vmatpush1.bf16.msra.mxu0 0
        %1003 = vmatprep.subr.bf16.mxu0 0
        %1004 = vmatpush1.bf16.msra.mxu0 0
        %1005 = vmatprep.subr.bf16.mxu0 0
        %1006 = vmatpush1.bf16.msra.mxu0 0
        %1007 = vmatprep.subr.bf16.mxu0 0
        %1008 = vmatpush1.bf16.msra.mxu0 0
        %1009 = vmatprep.mubr.bf16.mxu0 0
        %1010 = vmatmul.mubr.bf16.gmra.mrb[0].mxu0 %v905
        %v1011 = vpop.f32.mrb[0].mxu0
        %v1012 = vadd.f32 %v927, %v1011
        %v1013 = vpop.f32.mrb[0].mxu0
        %v1014 = vpop.f32.mrb[0].mxu0
        %v1015 = vpop.f32.mrb[0].mxu0
        %1016 = vdwg.mxu0
        %1017 = vst [vmem:[%s226] sm:$0xff] %v1012
      $region44: #{lstm_model_forward.3} parent=35 // pred_fallthru
        _
      %p1018 = scmp.lt.s32.totalorder %s19, 0
      %s1019 = scalar_select %p1018, %s19, 0
      %s1020 = smul.addr %s1019, 8
      %s1021 = scalar_lea.vmem %s4, %s1020
      // Predicated region
      $region45: #{lstm_model_forward.3} parent=35 // pred_check
        %p1022 = pneg %p136
      $region46: #{lstm_model_forward.3} parent=35 // pred_check_branch
        %1024 = sbr.rel (%p1022) target = $region48
      $region47: #{lstm_model_forward.3} parent=35 // pred_region
        _
      $region48: #{lstm_model_forward.3} parent=35 // pred_fallthru
        _
      // Predicated region
      $region49: #{lstm_model_forward.3} parent=35 // pred_check
        %p1025 = pneg %p136
      $region50: #{lstm_model_forward.3} parent=35 // pred_check_branch
        %1027 = sbr.rel (%p1025) target = $region52
      $region51: #{lstm_model_forward.3} parent=35 // pred_region
        %p1028 = scmp.lt.s32.totalorder %s19, 0
        %s1029 = scalar_select %p1028, %s19, 0
        %s1030 = smul.addr %s1029, 8
        %s1031 = scalar_lea.vmem %s4, %s1030
      $region52: #{lstm_model_forward.3} parent=35 // pred_fallthru
        _
    $region36: #{lstm_model_forward.3} parent=5 // pred_fallthru
      _
    %p1032 = scmp.le.s32.totalorder 2, %s10
    // Predicated region
    $region53: #{lstm_model_forward.3} parent=5 // pred_check
      %p1033 = pneg %p1032
    $region54: #{lstm_model_forward.3} parent=5 // pred_check_branch
      %1035 = sbr.rel (%p1033) target = $region56
    $region55: #{lstm_model_forward.3} parent=5 // pred_region
      %s1036 = ssub.s32 %s10, 2
    $region56: #{lstm_model_forward.3} parent=5 // pred_fallthru
      _
  $region6: #{lstm_model_forward.3} parent=0 // loop_footer
    %s14 = sadd.s32 1, %s10
  $region7: #{lstm_model_forward.3} parent=0 // loop_footer_branch
    %9 = sbr.rel target = $region3
  $region8: #{lstm_model_forward.3} parent=0 // loop_exit
    _

// kernel: lstm_model_forward.2
$region0: #{lstm_model_forward.2}
  #allocation0 [shape = 'u32[]', space=smem, size = 0x4, offset = 0x4, fixed_abs, tag = 'smem constant byte address 0x4 - core index']
  #allocation1 [shape = 'u32[144,128]{1,0:T(1,128)}', space=vmem, size = 0x12000, scoped, tag = 'internal scratch']
  %s0 = inlined_call_operand.vmem [shape: bf16[64,16], index: 0, kind: input, shape index: {}]
  %s1 = inlined_call_operand.vmem [shape: bf16[16,512], index: 1, kind: input, shape index: {}]
  %s2 = inlined_call_operand.hbm [shape: f32[1,512], index: 2, kind: input, shape index: {}]
  %s3 = inlined_call_operand.vmem [shape: bf16[64,512], index: 3, kind: output, shape index: {}]
  %s4 = sld [smem:[#allocation0]]
  $region26: #{lstm_model_forward.2} parent=0
    _
  %s6 = ssub.s32 1, %s4
  %s7 = scalar_select 0, %s6, %s4
  $region1: #{lstm_model_forward.2} parent=0
    #allocation2 [shape = 'u8[2048]{0}', space=vmem, size = 0x800, scoped, tag = 'input window, operand 2, single buffered']
    #allocation3 [shape = 's32[1]{0}', space=sflag, size = 0x4, scoped, tag = 'scoped memory for lstm_model_forward.2']
    %8 = vsyncpa [#allocation3], 0
    // Predicated region
    $region2: #{lstm_model_forward.2} parent=1 // pred_check
      _
    $region3: #{lstm_model_forward.2} parent=1 // pred_check_branch
      %10 = sbr.rel (0) target = $region5
    $region4: #{lstm_model_forward.2} parent=1 // pred_region
      _
    $region5: #{lstm_model_forward.2} parent=1 // pred_fallthru
      _
    // Predicated region
    $region6: #{lstm_model_forward.2} parent=1 // pred_check
      _
    $region7: #{lstm_model_forward.2} parent=1 // pred_check_branch
      %12 = sbr.rel (0) target = $region9
    $region8: #{lstm_model_forward.2} parent=1 // pred_region
      _
    $region9: #{lstm_model_forward.2} parent=1 // pred_fallthru
      _
    // Predicated region
    $region10: #{lstm_model_forward.2} parent=1 // pred_check
      _
    $region11: #{lstm_model_forward.2} parent=1 // pred_check_branch
      %14 = sbr.rel (0) target = $region13
    $region12: #{lstm_model_forward.2} parent=1 // pred_region
      %s16 = ssub.s32 64, 64
      %17 = vsyncadd [#allocation3], %s16
      %s19 = sshll.u32 [#allocation2], 4
      %s20 = int_to_ptr.vmem [resolvable:$true] %s19
      %22 = dma.hbm_to_vmem [thread:$0]  %s2, 64, %s20, [#allocation3]
    $region13: #{lstm_model_forward.2} parent=1 // pred_fallthru
      _
    // Predicated region
    $region14: #{lstm_model_forward.2} parent=1 // pred_check
      _
    $region15: #{lstm_model_forward.2} parent=1 // pred_check_branch
      %24 = sbr.rel (0) target = $region17
    $region16: #{lstm_model_forward.2} parent=1 // pred_region
      %25 = dma.done [#allocation3], 64
    $region17: #{lstm_model_forward.2} parent=1 // pred_fallthru
      _
    %v27 = vld [vmem:[%s0] sm:$0xf]
    %v28 = vld [vmem:[%s0 + $0x4] sm:$0xf]
    %v29 = vld [vmem:[%s0 + $0x8] sm:$0xf]
    %v30 = vld [vmem:[%s0 + $0xc] sm:$0xf]
    %v31 = vld [vmem:[%s0 + $0x10] sm:$0xf]
    %v32 = vld [vmem:[%s0 + $0x14] sm:$0xf]
    %v33 = vld [vmem:[%s0 + $0x18] sm:$0xf]
    %v34 = vld [vmem:[%s0 + $0x1c] sm:$0xf]
    %v35 = vld [vmem:[%s1] sm:$0xff]
    %v36 = vld [vmem:[%s1 + $0x8] sm:$0xff]
    %v37 = vld [vmem:[%s1 + $0x10] sm:$0xff]
    %v38 = vld [vmem:[%s1 + $0x18] sm:$0xff]
    %v39 = vld [vmem:[#allocation2] sm:$0xf]
    %v41 = vlaneseq
    %v42 = vshrl.u32 %v41, 7
    %v43 = vsub.s32 0, %v42
    %v44 = vrot.slane %v39, %v43
    %v45 = vlaneseq
    %v46 = vshrl.u32 %v45, 7
    %v47 = vsub.s32 1, %v46
    %v48 = vrot.slane %v39, %v47
    %v49 = vlaneseq
    %v50 = vshrl.u32 %v49, 7
    %v51 = vsub.s32 2, %v50
    %v52 = vrot.slane %v39, %v51
    %v53 = vlaneseq
    %v54 = vshrl.u32 %v53, 7
    %v55 = vsub.s32 3, %v54
    %v56 = vrot.slane %v39, %v55
    %v69 = vunpack.c.l.b16 %v27
    %v70 = vunpack.c.l.b16 %v28
    %v71 = vunpack.c.l.b16 %v29
    %v72 = vunpack.c.l.b16 %v30
    %v73 = vunpack.c.l.b16 %v31
    %v74 = vunpack.c.l.b16 %v32
    %v75 = vunpack.c.l.b16 %v33
    %v76 = vunpack.c.l.b16 %v34
    %v77 = vpack.c.b16 %v70, %v69
    %v78 = vpack.c.b16 %v72, %v71
    %v79 = vpack.c.b16 %v74, %v73
    %v80 = vpack.c.b16 %v76, %v75
    %v85 = vunpack.c.l.b16 %v35
    %v86 = vunpack.c.h.b16 %v35
    %v87 = vunpack.c.l.b16 %v36
    %v88 = vunpack.c.h.b16 %v36
    %v89 = vunpack.c.l.b16 %v37
    %v90 = vunpack.c.h.b16 %v37
    %v91 = vunpack.c.l.b16 %v38
    %v92 = vunpack.c.h.b16 %v38
    %v93 = vpack.c.b16 %v89, %v85
    %v94 = vpack.c.b16 %v90, %v86
    %v95 = vpack.c.b16 %v91, %v87
    %v96 = vpack.c.b16 %v92, %v88
    %vm101 = vcmask 130048
    %v103 = vsel %vm101, %v77, 0
    %v106 = vsel %vm101, %v78, 0
    %v109 = vsel %vm101, %v79, 0
    %v112 = vsel %vm101, %v80, 0
    %114 = vmatprep.subr.bf16.mxu0 %v94
    %115 = vmatpush1.bf16.msra.mxu0 %v93
    %116 = vmatprep.subr.bf16.mxu0 0
    %117 = vmatpush1.bf16.msra.mxu0 0
    %118 = vmatprep.subr.bf16.mxu0 0
    %119 = vmatpush1.bf16.msra.mxu0 0
    %120 = vmatprep.subr.bf16.mxu0 0
    %121 = vmatpush1.bf16.msra.mxu0 0
    %122 = vmatprep.subr.bf16.mxu0 0
    %123 = vmatpush1.bf16.msra.mxu0 0
    %124 = vmatprep.subr.bf16.mxu0 0
    %125 = vmatpush1.bf16.msra.mxu0 0
    %126 = vmatprep.subr.bf16.mxu0 0
    %127 = vmatpush1.bf16.msra.mxu0 0
    %128 = vmatprep.subr.bf16.mxu0 0
    %129 = vmatpush1.bf16.msra.mxu0 0
    %130 = vmatprep.subr.bf16.mxu0 0
    %131 = vmatpush1.bf16.msra.mxu0 0
    %132 = vmatprep.subr.bf16.mxu0 0
    %133 = vmatpush1.bf16.msra.mxu0 0
    %134 = vmatprep.subr.bf16.mxu0 0
    %135 = vmatpush1.bf16.msra.mxu0 0
    %136 = vmatprep.subr.bf16.mxu0 0
    %137 = vmatpush1.bf16.msra.mxu0 0
    %138 = vmatprep.subr.bf16.mxu0 0
    %139 = vmatpush1.bf16.msra.mxu0 0
    %140 = vmatprep.subr.bf16.mxu0 0
    %141 = vmatpush1.bf16.msra.mxu0 0
    %142 = vmatprep.subr.bf16.mxu0 0
    %143 = vmatpush1.bf16.msra.mxu0 0
    %144 = vmatprep.subr.bf16.mxu0 0
    %145 = vmatpush1.bf16.msra.mxu0 0
    %146 = vmatprep.mubr.bf16.mxu0 0
    %147 = vmatmul.mubr.bf16.gmra.mrb[0].mxu0 %v103
    %v148 = vpop.f32.mrb[0].mxu0
    %v149 = vadd.f32 %v44, %v148
    %v150 = vpop.f32.mrb[0].mxu0
    %v151 = vadd.f32 %v48, %v150
    %v152 = vpop.f32.mrb[0].mxu0
    %v153 = vadd.f32 %v44, %v152
    %v154 = vpop.f32.mrb[0].mxu0
    %v155 = vadd.f32 %v48, %v154
    %156 = vmatprep.mubr.bf16.mxu0 0
    %157 = vmatmul.mubr.bf16.gmra.mrb[0].mxu0 %v106
    %v158 = vpop.f32.mrb[0].mxu0
    %v159 = vadd.f32 %v44, %v158
    %v160 = vpop.f32.mrb[0].mxu0
    %v161 = vadd.f32 %v48, %v160
    %v162 = vpop.f32.mrb[0].mxu0
    %v163 = vadd.f32 %v44, %v162
    %v164 = vpop.f32.mrb[0].mxu0
    %v165 = vadd.f32 %v48, %v164
    %166 = vmatprep.mubr.bf16.mxu0 0
    %167 = vmatmul.mubr.bf16.gmra.mrb[0].mxu0 %v109
    %v168 = vpop.f32.mrb[0].mxu0
    %v169 = vadd.f32 %v44, %v168
    %v170 = vpop.f32.mrb[0].mxu0
    %v171 = vadd.f32 %v48, %v170
    %v172 = vpop.f32.mrb[0].mxu0
    %v173 = vadd.f32 %v44, %v172
    %v174 = vpop.f32.mrb[0].mxu0
    %v175 = vadd.f32 %v48, %v174
    %176 = vmatprep.mubr.bf16.mxu0 0
    %177 = vmatmul.mubr.bf16.gmra.mrb[0].mxu0 %v112
    %v178 = vpop.f32.mrb[0].mxu0
    %v179 = vadd.f32 %v44, %v178
    %v180 = vpop.f32.mrb[0].mxu0
    %v181 = vadd.f32 %v48, %v180
    %v182 = vpop.f32.mrb[0].mxu0
    %v183 = vadd.f32 %v44, %v182
    %v184 = vpop.f32.mrb[0].mxu0
    %v185 = vadd.f32 %v48, %v184
    %186 = vdwg.mxu0
    %187 = vmatprep.subr.bf16.mxu0 %v96
    %188 = vmatpush1.bf16.msra.mxu0 %v95
    %189 = vmatprep.subr.bf16.mxu0 0
    %190 = vmatpush1.bf16.msra.mxu0 0
    %191 = vmatprep.subr.bf16.mxu0 0
    %192 = vmatpush1.bf16.msra.mxu0 0
    %193 = vmatprep.subr.bf16.mxu0 0
    %194 = vmatpush1.bf16.msra.mxu0 0
    %195 = vmatprep.subr.bf16.mxu0 0
    %196 = vmatpush1.bf16.msra.mxu0 0
    %197 = vmatprep.subr.bf16.mxu0 0
    %198 = vmatpush1.bf16.msra.mxu0 0
    %199 = vmatprep.subr.bf16.mxu0 0
    %200 = vmatpush1.bf16.msra.mxu0 0
    %201 = vmatprep.subr.bf16.mxu0 0
    %202 = vmatpush1.bf16.msra.mxu0 0
    %203 = vmatprep.subr.bf16.mxu0 0
    %204 = vmatpush1.bf16.msra.mxu0 0
    %205 = vmatprep.subr.bf16.mxu0 0
    %206 = vmatpush1.bf16.msra.mxu0 0
    %207 = vmatprep.subr.bf16.mxu0 0
    %208 = vmatpush1.bf16.msra.mxu0 0
    %209 = vmatprep.subr.bf16.mxu0 0
    %210 = vmatpush1.bf16.msra.mxu0 0
    %211 = vmatprep.subr.bf16.mxu0 0
    %212 = vmatpush1.bf16.msra.mxu0 0
    %213 = vmatprep.subr.bf16.mxu0 0
    %214 = vmatpush1.bf16.msra.mxu0 0
    %215 = vmatprep.subr.bf16.mxu0 0
    %216 = vmatpush1.bf16.msra.mxu0 0
    %217 = vmatprep.subr.bf16.mxu0 0
    %218 = vmatpush1.bf16.msra.mxu0 0
    %219 = vmatprep.mubr.bf16.mxu0 0
    %220 = vmatmul.mubr.bf16.gmra.mrb[0].mxu0 %v103
    %v221 = vpop.f32.mrb[0].mxu0
    %v222 = vadd.f32 %v52, %v221
    %v223 = vpop.f32.mrb[0].mxu0
    %v224 = vadd.f32 %v56, %v223
    %v225 = vpop.f32.mrb[0].mxu0
    %v226 = vadd.f32 %v52, %v225
    %v227 = vpop.f32.mrb[0].mxu0
    %v228 = vadd.f32 %v56, %v227
    %229 = vmatprep.mubr.bf16.mxu0 0
    %230 = vmatmul.mubr.bf16.gmra.mrb[0].mxu0 %v106
    %v231 = vpop.f32.mrb[0].mxu0
    %v232 = vadd.f32 %v52, %v231
    %v233 = vpop.f32.mrb[0].mxu0
    %v234 = vadd.f32 %v56, %v233
    %v235 = vpop.f32.mrb[0].mxu0
    %v236 = vadd.f32 %v52, %v235
    %v237 = vpop.f32.mrb[0].mxu0
    %v238 = vadd.f32 %v56, %v237
    %239 = vmatprep.mubr.bf16.mxu0 0
    %240 = vmatmul.mubr.bf16.gmra.mrb[0].mxu0 %v109
    %v241 = vpop.f32.mrb[0].mxu0
    %v242 = vadd.f32 %v52, %v241
    %v243 = vpop.f32.mrb[0].mxu0
    %v244 = vadd.f32 %v56, %v243
    %v245 = vpop.f32.mrb[0].mxu0
    %v246 = vadd.f32 %v52, %v245
    %v247 = vpop.f32.mrb[0].mxu0
    %v248 = vadd.f32 %v56, %v247
    %249 = vmatprep.mubr.bf16.mxu0 0
    %250 = vmatmul.mubr.bf16.gmra.mrb[0].mxu0 %v112
    %v251 = vpop.f32.mrb[0].mxu0
    %v252 = vadd.f32 %v52, %v251
    %v253 = vpop.f32.mrb[0].mxu0
    %v254 = vadd.f32 %v56, %v253
    %v255 = vpop.f32.mrb[0].mxu0
    %v256 = vadd.f32 %v52, %v255
    %v257 = vpop.f32.mrb[0].mxu0
    %v258 = vadd.f32 %v56, %v257
    %259 = vdwg.mxu0
    %v260 = vpack.c.bf16 %v153, %v149
    %v261 = vpack.c.bf16 %v155, %v151
    %v262 = vpack.c.bf16 %v226, %v222
    %v263 = vpack.c.bf16 %v228, %v224
    %v264 = vpack.c.bf16 %v163, %v159
    %v265 = vpack.c.bf16 %v165, %v161
    %v266 = vpack.c.bf16 %v236, %v232
    %v267 = vpack.c.bf16 %v238, %v234
    %v268 = vpack.c.bf16 %v173, %v169
    %v269 = vpack.c.bf16 %v175, %v171
    %v270 = vpack.c.bf16 %v246, %v242
    %v271 = vpack.c.bf16 %v248, %v244
    %v272 = vpack.c.bf16 %v183, %v179
    %v273 = vpack.c.bf16 %v185, %v181
    %v274 = vpack.c.bf16 %v256, %v252
    %v275 = vpack.c.bf16 %v258, %v254
    %v292 = vunpack.c.l.b16 %v260
    %v293 = vunpack.c.l.b16 %v261
    %v294 = vunpack.c.l.b16 %v262
    %v295 = vunpack.c.l.b16 %v263
    %v296 = vunpack.c.h.b16 %v260
    %v297 = vunpack.c.h.b16 %v261
    %v298 = vunpack.c.h.b16 %v262
    %v299 = vunpack.c.h.b16 %v263
    %v300 = vunpack.c.l.b16 %v264
    %v301 = vunpack.c.l.b16 %v265
    %v302 = vunpack.c.l.b16 %v266
    %v303 = vunpack.c.l.b16 %v267
    %v304 = vunpack.c.h.b16 %v264
    %v305 = vunpack.c.h.b16 %v265
    %v306 = vunpack.c.h.b16 %v266
    %v307 = vunpack.c.h.b16 %v267
    %v308 = vunpack.c.l.b16 %v268
    %v309 = vunpack.c.l.b16 %v269
    %v310 = vunpack.c.l.b16 %v270
    %v311 = vunpack.c.l.b16 %v271
    %v312 = vunpack.c.h.b16 %v268
    %v313 = vunpack.c.h.b16 %v269
    %v314 = vunpack.c.h.b16 %v270
    %v315 = vunpack.c.h.b16 %v271
    %v316 = vunpack.c.l.b16 %v272
    %v317 = vunpack.c.l.b16 %v273
    %v318 = vunpack.c.l.b16 %v274
    %v319 = vunpack.c.l.b16 %v275
    %v320 = vunpack.c.h.b16 %v272
    %v321 = vunpack.c.h.b16 %v273
    %v322 = vunpack.c.h.b16 %v274
    %v323 = vunpack.c.h.b16 %v275
    %v324 = vpack.c.b16 %v293, %v292
    %v325 = vpack.c.b16 %v295, %v294
    %v326 = vpack.c.b16 %v297, %v296
    %v327 = vpack.c.b16 %v299, %v298
    %v328 = vpack.c.b16 %v301, %v300
    %v329 = vpack.c.b16 %v303, %v302
    %v330 = vpack.c.b16 %v305, %v304
    %v331 = vpack.c.b16 %v307, %v306
    %v332 = vpack.c.b16 %v309, %v308
    %v333 = vpack.c.b16 %v311, %v310
    %v334 = vpack.c.b16 %v313, %v312
    %v335 = vpack.c.b16 %v315, %v314
    %v336 = vpack.c.b16 %v317, %v316
    %v337 = vpack.c.b16 %v319, %v318
    %v338 = vpack.c.b16 %v321, %v320
    %v339 = vpack.c.b16 %v323, %v322
    %356 = vst [vmem:[%s3] sm:$0xff] %v324
    %357 = vst [vmem:[%s3 + $0x8] sm:$0xff] %v325
    %358 = vst [vmem:[%s3 + $0x10] sm:$0xff] %v326
    %359 = vst [vmem:[%s3 + $0x18] sm:$0xff] %v327
    %360 = vst [vmem:[%s3 + $0x20] sm:$0xff] %v328
    %361 = vst [vmem:[%s3 + $0x28] sm:$0xff] %v329
    %362 = vst [vmem:[%s3 + $0x30] sm:$0xff] %v330
    %363 = vst [vmem:[%s3 + $0x38] sm:$0xff] %v331
    %364 = vst [vmem:[%s3 + $0x40] sm:$0xff] %v332
    %365 = vst [vmem:[%s3 + $0x48] sm:$0xff] %v333
    %366 = vst [vmem:[%s3 + $0x50] sm:$0xff] %v334
    %367 = vst [vmem:[%s3 + $0x58] sm:$0xff] %v335
    %368 = vst [vmem:[%s3 + $0x60] sm:$0xff] %v336
    %369 = vst [vmem:[%s3 + $0x68] sm:$0xff] %v337
    %370 = vst [vmem:[%s3 + $0x70] sm:$0xff] %v338
    %371 = vst [vmem:[%s3 + $0x78] sm:$0xff] %v339
    // Predicated region
    $region18: #{lstm_model_forward.2} parent=1 // pred_check
      _
    $region19: #{lstm_model_forward.2} parent=1 // pred_check_branch
      %373 = sbr.rel (0) target = $region21
    $region20: #{lstm_model_forward.2} parent=1 // pred_region
      _
    $region21: #{lstm_model_forward.2} parent=1 // pred_fallthru
      _
    // Predicated region
    $region22: #{lstm_model_forward.2} parent=1 // pred_check
      _
    $region23: #{lstm_model_forward.2} parent=1 // pred_check_branch
      %375 = sbr.rel (0) target = $region25
    $region24: #{lstm_model_forward.2} parent=1 // pred_region
      _
    $region25: #{lstm_model_forward.2} parent=1 // pred_fallthru
      _
    %376 = vsyncpa [#allocation3], 1

// kernel: lstm_model_forward.3
$region0: #{lstm_model_forward.3}
  #allocation0 [shape = 'u32[]', space=smem, size = 0x4, offset = 0x4, fixed_abs, tag = 'smem constant byte address 0x4 - core index']
  #allocation1 [shape = 'u32[144,128]{1,0:T(1,128)}', space=vmem, size = 0x12000, scoped, tag = 'internal scratch']
  #allocation2 [shape = 'f32[8,128]{1,0:T(8,128)}', space=vmem, size = 0x1000, scoped, tag = 'scratch operand']
  #allocation3 [shape = 'f32[8,128]{1,0:T(8,128)}', space=vmem, size = 0x1000, scoped, tag = 'scratch operand']
  %s0 = inlined_call_operand.vmem [shape: bf16[8,8,512], index: 0, kind: input, shape index: {}]
  %s1 = inlined_call_operand.vmem [shape: bf16[128,512], index: 1, kind: input, shape index: {}]
  %s2 = inlined_call_operand.vmem [shape: bf16[128,128], index: 2, kind: input, shape index: {}]
  %s3 = inlined_call_operand.vmem [shape: f32[1,128], index: 3, kind: input, shape index: {}]
  %s4 = inlined_call_operand.vmem [shape: f32[8,128], index: 4, kind: output, shape index: {}]
  %s5 = sld [smem:[#allocation0]]
  $region57: #{lstm_model_forward.3} parent=0
    _
  %s7 = ssub.s32 1, %s5
  %s8 = scalar_select 0, %s7, %s5
  loop: start=0, step=1, limit=4
  $region2: #{lstm_model_forward.3} parent=0 // loop_pre_header
    _
  $region3: #{lstm_model_forward.3} parent=0 // loop_header
    %s10 = sphi 0, %s14
    %p11 = scmp.ge.s32.totalorder %s10, 4
    %s17 = sphi 0, %s29
    %s18 = sphi 0, %s25
    %s19 = sphi 0, %s17
    %s20 = sphi 0, %s18
    %s21 = sphi 0, %s19
    %s22 = sphi 0, %s20
    %s34 = sphi 0, %s36
    %s37 = sphi 0, %s34
    %s38 = sphi 0, %s37
    %s54 = sphi 0, %s38
    %s58 = sphi 0, %s58
    %s60 = sphi 0, %s58
    %s61 = sphi 0, %s60
    %s75 = sphi 0, %s61
    %s79 = sphi 0, %s79
    %s81 = sphi 0, %s79
    %s82 = sphi 0, %s81
    %s96 = sphi 0, %s82
    %s100 = sphi 0, %s100
    %s102 = sphi 0, %s100
    %s103 = sphi 0, %s102
    %s117 = sphi 0, %s103
    %s123 = sphi 0, %s125
    %s126 = sphi 0, %s123
    %s127 = sphi 0, %s126
    %s143 = sphi 0, %s127
  $region4: #{lstm_model_forward.3} parent=0 // loop_header_branch
    %13 = sbr.rel (%p11) target = $region8
  $region5: #{lstm_model_forward.3} parent=0 // loop_body
    %s15 = ssub.s32 %s10, 1
    %s16 = ssub.s32 %s10, 2
    %s23 = sadd.s32 1, %s18
    %p24 = scmp.ge.s32.totalorder %s23, 2
    %s25 = scalar_select %p24, 0, %s23
    %s26 = sadd.s32 1, %s17
    %s27 = scalar_select %p24, %s26, %s17
    %p28 = scmp.ge.s32.totalorder %s27, 1
    %s29 = scalar_select %p28, 0, %s27
    %s30 = ssub.s32 %s18, %s25
    %s31 = ssub.s32 %s17, %s29
    %s32 = sor.u32 %s30, %s31
    %p33 = scmp.eq.s32.totalorder %s32, 0
    %s35 = sadd.s32 %s34, 1
    %s36 = scalar_select %p33, %s34, %s35
    %p39 = pneg %p33
    %p40 = scmp.eq.s32.totalorder %s10, 1
    %p41 = por %p39, %p40
    %p42 = scmp.ne.s32.totalorder %s34, %s37
    %p43 = scmp.eq.s32.totalorder %s10, 0
    %p44 = por %p42, %p43
    %p45 = scmp.ne.s32.totalorder %s34, %s37
    %p46 = scmp.eq.s32.totalorder %s15, 1
    %p47 = por %p45, %p46
    %p48 = scmp.ne.s32.totalorder %s37, %s38
    %p49 = scmp.eq.s32.totalorder %s15, 0
    %p50 = por %p48, %p49
    %p51 = scmp.ne.s32.totalorder %s37, %s38
    %p52 = scmp.eq.s32.totalorder %s16, 1
    %p53 = por %p51, %p52
    %p55 = scmp.ne.s32.totalorder %s38, %s54
    %p56 = scmp.eq.s32.totalorder %s16, 0
    %p57 = por %p55, %p56
    %s59 = sadd.s32 %s58, 1
    %p62 = scmp.eq.s32.totalorder %s10, 1
    %p63 = scmp.ne.s32.totalorder %s58, %s60
    %p64 = scmp.eq.s32.totalorder %s10, 0
    %p65 = por %p63, %p64
    %p66 = scmp.ne.s32.totalorder %s58, %s60
    %p67 = scmp.eq.s32.totalorder %s15, 1
    %p68 = por %p66, %p67
    %p69 = scmp.ne.s32.totalorder %s60, %s61
    %p70 = scmp.eq.s32.totalorder %s15, 0
    %p71 = por %p69, %p70
    %p72 = scmp.ne.s32.totalorder %s60, %s61
    %p73 = scmp.eq.s32.totalorder %s16, 1
    %p74 = por %p72, %p73
    %p76 = scmp.ne.s32.totalorder %s61, %s75
    %p77 = scmp.eq.s32.totalorder %s16, 0
    %p78 = por %p76, %p77
    %s80 = sadd.s32 %s79, 1
    %p83 = scmp.eq.s32.totalorder %s10, 1
    %p84 = scmp.ne.s32.totalorder %s79, %s81
    %p85 = scmp.eq.s32.totalorder %s10, 0
    %p86 = por %p84, %p85
    %p87 = scmp.ne.s32.totalorder %s79, %s81
    %p88 = scmp.eq.s32.totalorder %s15, 1
    %p89 = por %p87, %p88
    %p90 = scmp.ne.s32.totalorder %s81, %s82
    %p91 = scmp.eq.s32.totalorder %s15, 0
    %p92 = por %p90, %p91
    %p93 = scmp.ne.s32.totalorder %s81, %s82
    %p94 = scmp.eq.s32.totalorder %s16, 1
    %p95 = por %p93, %p94
    %p97 = scmp.ne.s32.totalorder %s82, %s96
    %p98 = scmp.eq.s32.totalorder %s16, 0
    %p99 = por %p97, %p98
    %s101 = sadd.s32 %s100, 1
    %p104 = scmp.eq.s32.totalorder %s10, 1
    %p105 = scmp.ne.s32.totalorder %s100, %s102
    %p106 = scmp.eq.s32.totalorder %s10, 0
    %p107 = por %p105, %p106
    %p108 = scmp.ne.s32.totalorder %s100, %s102
    %p109 = scmp.eq.s32.totalorder %s15, 1
    %p110 = por %p108, %p109
    %p111 = scmp.ne.s32.totalorder %s102, %s103
    %p112 = scmp.eq.s32.totalorder %s15, 0
    %p113 = por %p111, %p112
    %p114 = scmp.ne.s32.totalorder %s102, %s103
    %p115 = scmp.eq.s32.totalorder %s16, 1
    %p116 = por %p114, %p115
    %p118 = scmp.ne.s32.totalorder %s103, %s117
    %p119 = scmp.eq.s32.totalorder %s16, 0
    %p120 = por %p118, %p119
    %s121 = ssub.s32 %s17, %s29
    %p122 = scmp.eq.s32.totalorder %s121, 0
    %s124 = sadd.s32 %s123, 1
    %s125 = scalar_select %p122, %s123, %s124
    %p128 = pneg %p122
    %p129 = scmp.eq.s32.totalorder %s10, 1
    %p130 = por %p128, %p129
    %p131 = scmp.ne.s32.totalorder %s123, %s126
    %p132 = scmp.eq.s32.totalorder %s10, 0
    %p133 = por %p131, %p132
    %p134 = scmp.ne.s32.totalorder %s123, %s126
    %p135 = scmp.eq.s32.totalorder %s15, 1
    %p136 = por %p134, %p135
    %p137 = scmp.ne.s32.totalorder %s126, %s127
    %p138 = scmp.eq.s32.totalorder %s15, 0
    %p139 = por %p137, %p138
    %p140 = scmp.ne.s32.totalorder %s126, %s127
    %p141 = scmp.eq.s32.totalorder %s16, 1
    %p142 = por %p140, %p141
    %p144 = scmp.ne.s32.totalorder %s127, %s143
    %p145 = scmp.eq.s32.totalorder %s16, 0
    %p146 = por %p144, %p145
    %p147 = scmp.le.s32.totalorder 1, %s10
    %p148 = scmp.lt.s32.totalorder %s10, 3
    %p149 = pnand %p147, %p148
    %p150 = pneg %p149
    // Predicated region
    $region9: #{lstm_model_forward.3} parent=5 // pred_check
      _
    $region10: #{lstm_model_forward.3} parent=5 // pred_check_branch
      %152 = sbr.rel (%p149) target = $region12
    $region11: #{lstm_model_forward.3} parent=5 // pred_region
      %s153 = ssub.s32 %s10, 1
      // Predicated region
      $region13: #{lstm_model_forward.3} parent=11 // pred_check
        %p154 = pneg %p71
      $region14: #{lstm_model_forward.3} parent=11 // pred_check_branch
        %156 = sbr.rel (%p154) target = $region16
      $region15: #{lstm_model_forward.3} parent=11 // pred_region
        _
      $region16: #{lstm_model_forward.3} parent=11 // pred_fallthru
        _
      // Predicated region
      $region17: #{lstm_model_forward.3} parent=11 // pred_check
        %p157 = pneg %p92
      $region18: #{lstm_model_forward.3} parent=11 // pred_check_branch
        %159 = sbr.rel (%p157) target = $region20
      $region19: #{lstm_model_forward.3} parent=11 // pred_region
        _
      $region20: #{lstm_model_forward.3} parent=11 // pred_fallthru
        _
      // Predicated region
      $region21: #{lstm_model_forward.3} parent=11 // pred_check
        %p160 = pneg %p113
      $region22: #{lstm_model_forward.3} parent=11 // pred_check_branch
        %162 = sbr.rel (%p160) target = $region24
      $region23: #{lstm_model_forward.3} parent=11 // pred_region
        _
      $region24: #{lstm_model_forward.3} parent=11 // pred_fallthru
        _
    $region12: #{lstm_model_forward.3} parent=5 // pred_fallthru
      _
    %p163 = scmp.lt.s32.totalorder %s10, 2
    // Predicated region
    $region25: #{lstm_model_forward.3} parent=5 // pred_check
      %p164 = pneg %p163
    $region26: #{lstm_model_forward.3} parent=5 // pred_check_branch
      %166 = sbr.rel (%p164) target = $region28
    $region27: #{lstm_model_forward.3} parent=5 // pred_region
      // Predicated region
      $region29: #{lstm_model_forward.3} parent=27 // pred_check
        %p167 = pneg %p44
      $region30: #{lstm_model_forward.3} parent=27 // pred_check_branch
        %169 = sbr.rel (%p167) target = $region32
      $region31: #{lstm_model_forward.3} parent=27 // pred_region
        %s170 = smul.u32 4, %s18
        %p171 = scmp.lt.s32.totalorder %s170, 7
        %s172 = scalar_select %p171, %s170, 7
        %p173 = scmp.lt.s32.totalorder %s17, 0
        %s174 = scalar_select %p173, %s17, 0
        %s175 = smul.addr %s174, 4
        %s176 = smul.addr %s172, 4
        %s177 = sadd.s32 %s175, %s176
        %s178 = smul.addr %s177, 4
        %s179 = scalar_lea.vmem %s0, %s178
        %s180 = smul.u32 4, %s18
      $region32: #{lstm_model_forward.3} parent=27 // pred_fallthru
        _
    $region28: #{lstm_model_forward.3} parent=5 // pred_fallthru
      _
    %p181 = scmp.le.s32.totalorder 1, %s10
    %p182 = scmp.lt.s32.totalorder %s10, 3
    %p183 = pnand %p181, %p182
    %p184 = pneg %p183
    // Predicated region
    $region33: #{lstm_model_forward.3} parent=5 // pred_check
      _
    $region34: #{lstm_model_forward.3} parent=5 // pred_check_branch
      %186 = sbr.rel (%p183) target = $region36
    $region35: #{lstm_model_forward.3} parent=5 // pred_region
      %s187 = ssub.s32 %s10, 1
      %s188 = smul.u32 4, %s20
      %p189 = scmp.lt.s32.totalorder %s188, 7
      %s190 = scalar_select %p189, %s188, 7
      %p191 = scmp.lt.s32.totalorder %s19, 0
      %s192 = scalar_select %p191, %s19, 0
      %s193 = smul.addr %s192, 4
      %s194 = smul.addr %s190, 4
      %s195 = sadd.s32 %s193, %s194
      %s196 = smul.addr %s195, 4
      %s197 = scalar_lea.vmem %s0, %s196
      %p198 = pneg %p50
      %p199 = pneg %p47
      %p200 = pneg %p71
      %p201 = pneg %p68
      %p202 = pneg %p92
      %p203 = pneg %p89
      %p204 = pneg %p113
      %p205 = pneg %p110
      %p206 = pneg %p139
      %p207 = pneg %p136
      %p208 = scmp.lt.s32.totalorder %s19, 0
      %s209 = scalar_select %p208, %s19, 0
      %s210 = smul.addr %s209, 8
      %s211 = scalar_lea.vmem %s4, %s210
      %s212 = smul.u32 4, %s20
      %p213 = scmp.lt.s32.totalorder %s212, 7
      %s214 = scalar_select %p213, %s212, 7
      %p215 = scmp.lt.s32.totalorder %s19, 0
      %s216 = scalar_select %p215, %s19, 0
      %s217 = smul.addr %s216, 4
      %s218 = smul.addr %s214, 4
      %s219 = sadd.s32 %s217, %s218
      %s220 = smul.addr %s219, 4
      %s221 = scalar_lea.vmem %s0, %s220
      %s222 = smul.u32 4, %s20
      %p223 = scmp.lt.s32.totalorder %s19, 0
      %s224 = scalar_select %p223, %s19, 0
      %s225 = smul.addr %s224, 8
      %s226 = scalar_lea.vmem %s4, %s225
      %p228 = scmp.eq.s32.totalorder %s20, 0
      // Predicated region
      $region37: #{lstm_model_forward.3} parent=35 // pred_check
        %p229 = pneg %p228
      $region38: #{lstm_model_forward.3} parent=35 // pred_check_branch
        %231 = sbr.rel (%p229) target = $region40
      $region39: #{lstm_model_forward.3} parent=35 // pred_region
        %232 = vst [vmem:[#allocation2] sm:$0xff] 0.0
        %233 = vst [vmem:[#allocation3] sm:$0xff] 0.0
      $region40: #{lstm_model_forward.3} parent=35 // pred_fallthru
        _
      %v234 = vld [vmem:[#allocation2] sm:$0xff]
      %v235 = vld [vmem:[#allocation3] sm:$0xff]
      %v236 = vld [vmem:[%s221] sm:$0xff]
      %v237 = vld [vmem:[%s221 + $0x8] sm:$0xff]
      %v238 = vunpack.c.l.bf16 %v236
      %v239 = vunpack.c.h.bf16 %v236
      %v240 = vunpack.c.l.bf16 %v237
      %v241 = vunpack.c.h.bf16 %v237
      %v242 = vpack.c.bf16 %v234, %v234
      %v243 = vld [vmem:[%s1] sm:$0xff]
      %v244 = vld [vmem:[%s1 + $0x8] sm:$0xff]
      %v245 = vld [vmem:[%s1 + $0x10] sm:$0xff]
      %v246 = vld [vmem:[%s1 + $0x18] sm:$0xff]
      %v247 = vld [vmem:[%s1 + $0x20] sm:$0xff]
      %v248 = vld [vmem:[%s1 + $0x28] sm:$0xff]
      %v249 = vld [vmem:[%s1 + $0x30] sm:$0xff]
      %v250 = vld [vmem:[%s1 + $0x38] sm:$0xff]
      %v251 = vld [vmem:[%s1 + $0x40] sm:$0xff]
      %v252 = vld [vmem:[%s1 + $0x48] sm:$0xff]
      %v253 = vld [vmem:[%s1 + $0x50] sm:$0xff]
      %v254 = vld [vmem:[%s1 + $0x58] sm:$0xff]
      %v255 = vld [vmem:[%s1 + $0x60] sm:$0xff]
      %v256 = vld [vmem:[%s1 + $0x68] sm:$0xff]
      %v257 = vld [vmem:[%s1 + $0x70] sm:$0xff]
      %v258 = vld [vmem:[%s1 + $0x78] sm:$0xff]
      %v259 = vld [vmem:[%s1 + $0x80] sm:$0xff]
      %v260 = vld [vmem:[%s1 + $0x88] sm:$0xff]
      %v261 = vld [vmem:[%s1 + $0x90] sm:$0xff]
      %v262 = vld [vmem:[%s1 + $0x98] sm:$0xff]
      %v263 = vld [vmem:[%s1 + $0xa0] sm:$0xff]
      %v264 = vld [vmem:[%s1 + $0xa8] sm:$0xff]
      %v265 = vld [vmem:[%s1 + $0xb0] sm:$0xff]
      %v266 = vld [vmem:[%s1 + $0xb8] sm:$0xff]
      %v267 = vld [vmem:[%s1 + $0xc0] sm:$0xff]
      %v268 = vld [vmem:[%s1 + $0xc8] sm:$0xff]
      %v269 = vld [vmem:[%s1 + $0xd0] sm:$0xff]
      %v270 = vld [vmem:[%s1 + $0xd8] sm:$0xff]
      %v271 = vld [vmem:[%s1 + $0xe0] sm:$0xff]
      %v272 = vld [vmem:[%s1 + $0xe8] sm:$0xff]
      %v273 = vld [vmem:[%s1 + $0xf0] sm:$0xff]
      %v274 = vld [vmem:[%s1 + $0xf8] sm:$0xff]
      %v307 = vunpack.c.l.b16 %v243
      %v308 = vunpack.c.h.b16 %v243
      %v309 = vunpack.c.l.b16 %v244
      %v310 = vunpack.c.h.b16 %v244
      %v311 = vunpack.c.l.b16 %v245
      %v312 = vunpack.c.h.b16 %v245
      %v313 = vunpack.c.l.b16 %v246
      %v314 = vunpack.c.h.b16 %v246
      %v315 = vunpack.c.l.b16 %v247
      %v316 = vunpack.c.h.b16 %v247
      %v317 = vunpack.c.l.b16 %v248
      %v318 = vunpack.c.h.b16 %v248
      %v319 = vunpack.c.l.b16 %v249
      %v320 = vunpack.c.h.b16 %v249
      %v321 = vunpack.c.l.b16 %v250
      %v322 = vunpack.c.h.b16 %v250
      %v323 = vunpack.c.l.b16 %v251
      %v324 = vunpack.c.h.b16 %v251
      %v325 = vunpack.c.l.b16 %v252
      %v326 = vunpack.c.h.b16 %v252
      %v327 = vunpack.c.l.b16 %v253
      %v328 = vunpack.c.h.b16 %v253
      %v329 = vunpack.c.l.b16 %v254
      %v330 = vunpack.c.h.b16 %v254
      %v331 = vunpack.c.l.b16 %v255
      %v332 = vunpack.c.h.b16 %v255
      %v333 = vunpack.c.l.b16 %v256
      %v334 = vunpack.c.h.b16 %v256
      %v335 = vunpack.c.l.b16 %v257
      %v336 = vunpack.c.h.b16 %v257
      %v337 = vunpack.c.l.b16 %v258
      %v338 = vunpack.c.h.b16 %v258
      %v339 = vunpack.c.l.b16 %v259
      %v340 = vunpack.c.h.b16 %v259
      %v341 = vunpack.c.l.b16 %v260
      %v342 = vunpack.c.h.b16 %v260
      %v343 = vunpack.c.l.b16 %v261
      %v344 = vunpack.c.h.b16 %v261
      %v345 = vunpack.c.l.b16 %v262
      %v346 = vunpack.c.h.b16 %v262
      %v347 = vunpack.c.l.b16 %v263
      %v348 = vunpack.c.h.b16 %v263
      %v349 = vunpack.c.l.b16 %v264
      %v350 = vunpack.c.h.b16 %v264
      %v351 = vunpack.c.l.b16 %v265
      %v352 = vunpack.c.h.b16 %v265
      %v353 = vunpack.c.l.b16 %v266
      %v354 = vunpack.c.h.b16 %v266
      %v355 = vunpack.c.l.b16 %v267
      %v356 = vunpack.c.h.b16 %v267
      %v357 = vunpack.c.l.b16 %v268
      %v358 = vunpack.c.h.b16 %v268
      %v359 = vunpack.c.l.b16 %v269
      %v360 = vunpack.c.h.b16 %v269
      %v361 = vunpack.c.l.b16 %v270
      %v362 = vunpack.c.h.b16 %v270
      %v363 = vunpack.c.l.b16 %v271
      %v364 = vunpack.c.h.b16 %v271
      %v365 = vunpack.c.l.b16 %v272
      %v366 = vunpack.c.h.b16 %v272
      %v367 = vunpack.c.l.b16 %v273
      %v368 = vunpack.c.h.b16 %v273
      %v369 = vunpack.c.l.b16 %v274
      %v370 = vunpack.c.h.b16 %v274
      %v371 = vpack.c.b16 %v311, %v307
      %v372 = vpack.c.b16 %v312, %v308
      %v373 = vpack.c.b16 %v313, %v309
      %v374 = vpack.c.b16 %v314, %v310
      %v375 = vpack.c.b16 %v319, %v315
      %v376 = vpack.c.b16 %v320, %v316
      %v377 = vpack.c.b16 %v321, %v317
      %v378 = vpack.c.b16 %v322, %v318
      %v379 = vpack.c.b16 %v327, %v323
      %v380 = vpack.c.b16 %v328, %v324
      %v381 = vpack.c.b16 %v329, %v325
      %v382 = vpack.c.b16 %v330, %v326
      %v383 = vpack.c.b16 %v335, %v331
      %v384 = vpack.c.b16 %v336, %v332
      %v385 = vpack.c.b16 %v337, %v333
      %v386 = vpack.c.b16 %v338, %v334
      %v387 = vpack.c.b16 %v343, %v339
      %v388 = vpack.c.b16 %v344, %v340
      %v389 = vpack.c.b16 %v345, %v341
      %v390 = vpack.c.b16 %v346, %v342
      %v391 = vpack.c.b16 %v351, %v347
      %v392 = vpack.c.b16 %v352, %v348
      %v393 = vpack.c.b16 %v353, %v349
      %v394 = vpack.c.b16 %v354, %v350
      %v395 = vpack.c.b16 %v359, %v355
      %v396 = vpack.c.b16 %v360, %v356
      %v397 = vpack.c.b16 %v361, %v357
      %v398 = vpack.c.b16 %v362, %v358
      %v399 = vpack.c.b16 %v367, %v363
      %v400 = vpack.c.b16 %v368, %v364
      %v401 = vpack.c.b16 %v369, %v365
      %v402 = vpack.c.b16 %v370, %v366
      %435 = vmatprep.subr.bf16.mxu0 %v372
      %436 = vmatpush1.bf16.msra.mxu0 %v371
      %437 = vmatprep.subr.bf16.mxu0 %v376
      %438 = vmatpush1.bf16.msra.mxu0 %v375
      %439 = vmatprep.subr.bf16.mxu0 %v380
      %440 = vmatpush1.bf16.msra.mxu0 %v379
      %441 = vmatprep.subr.bf16.mxu0 %v384
      %442 = vmatpush1.bf16.msra.mxu0 %v383
      %443 = vmatprep.subr.bf16.mxu0 %v388
      %444 = vmatpush1.bf16.msra.mxu0 %v387
      %445 = vmatprep.subr.bf16.mxu0 %v392
      %446 = vmatpush1.bf16.msra.mxu0 %v391
      %447 = vmatprep.subr.bf16.mxu0 %v396
      %448 = vmatpush1.bf16.msra.mxu0 %v395
      %449 = vmatprep.subr.bf16.mxu0 %v400
      %450 = vmatpush1.bf16.msra.mxu0 %v399
      %451 = vmatprep.subr.bf16.mxu0 0
      %452 = vmatpush1.bf16.msra.mxu0 0
      %453 = vmatprep.subr.bf16.mxu0 0
      %454 = vmatpush1.bf16.msra.mxu0 0
      %455 = vmatprep.subr.bf16.mxu0 0
      %456 = vmatpush1.bf16.msra.mxu0 0
      %457 = vmatprep.subr.bf16.mxu0 0
      %458 = vmatpush1.bf16.msra.mxu0 0
      %459 = vmatprep.subr.bf16.mxu0 0
      %460 = vmatpush1.bf16.msra.mxu0 0
      %461 = vmatprep.subr.bf16.mxu0 0
      %462 = vmatpush1.bf16.msra.mxu0 0
      %463 = vmatprep.subr.bf16.mxu0 0
      %464 = vmatpush1.bf16.msra.mxu0 0
      %465 = vmatprep.subr.bf16.mxu0 0
      %466 = vmatpush1.bf16.msra.mxu0 0
      %467 = vmatprep.mubr.bf16.mxu0 0
      %468 = vmatmul.mubr.bf16.gmra.mrb[0].mxu0 %v242
      %v469 = vpop.f32.mrb[0].mxu0
      %v470 = vadd.f32 0.0, %v469
      %v471 = vpop.f32.mrb[0].mxu0
      %v472 = vadd.f32 0.0, %v471
      %v473 = vpop.f32.mrb[0].mxu0
      %v474 = vpop.f32.mrb[0].mxu0
      %475 = vdwg.mxu0
      %476 = vmatprep.subr.bf16.mxu0 %v374
      %477 = vmatpush1.bf16.msra.mxu0 %v373
      %478 = vmatprep.subr.bf16.mxu0 %v378
      %479 = vmatpush1.bf16.msra.mxu0 %v377
      %480 = vmatprep.subr.bf16.mxu0 %v382
      %481 = vmatpush1.bf16.msra.mxu0 %v381
      %482 = vmatprep.subr.bf16.mxu0 %v386
      %483 = vmatpush1.bf16.msra.mxu0 %v385
      %484 = vmatprep.subr.bf16.mxu0 %v390
      %485 = vmatpush1.bf16.msra.mxu0 %v389
      %486 = vmatprep.subr.bf16.mxu0 %v394
      %487 = vmatpush1.bf16.msra.mxu0 %v393
      %488 = vmatprep.subr.bf16.mxu0 %v398
      %489 = vmatpush1.bf16.msra.mxu0 %v397
      %490 = vmatprep.subr.bf16.mxu0 %v402
      %491 = vmatpush1.bf16.msra.mxu0 %v401
      %492 = vmatprep.subr.bf16.mxu0 0
      %493 = vmatpush1.bf16.msra.mxu0 0
      %494 = vmatprep.subr.bf16.mxu0 0
      %495 = vmatpush1.bf16.msra.mxu0 0
      %496 = vmatprep.subr.bf16.mxu0 0
      %497 = vmatpush1.bf16.msra.mxu0 0
      %498 = vmatprep.subr.bf16.mxu0 0
      %499 = vmatpush1.bf16.msra.mxu0 0
      %500 = vmatprep.subr.bf16.mxu0 0
      %501 = vmatpush1.bf16.msra.mxu0 0
      %502 = vmatprep.subr.bf16.mxu0 0
      %503 = vmatpush1.bf16.msra.mxu0 0
      %504 = vmatprep.subr.bf16.mxu0 0
      %505 = vmatpush1.bf16.msra.mxu0 0
      %506 = vmatprep.subr.bf16.mxu0 0
      %507 = vmatpush1.bf16.msra.mxu0 0
      %508 = vmatprep.mubr.bf16.mxu0 0
      %509 = vmatmul.mubr.bf16.gmra.mrb[0].mxu0 %v242
      %v510 = vpop.f32.mrb[0].mxu0
      %v511 = vadd.f32 0.0, %v510
      %v512 = vpop.f32.mrb[0].mxu0
      %v513 = vadd.f32 0.0, %v512
      %v514 = vpop.f32.mrb[0].mxu0
      %v515 = vpop.f32.mrb[0].mxu0
      %516 = vdwg.mxu0
      %v517 = vadd.f32 %v238, %v470
      %v518 = vadd.f32 %v239, %v472
      %v519 = vadd.f32 %v240, %v511
      %v520 = vadd.f32 %v241, %v513
      %v521 = vxor.u32 %v517, 2147483648
      %v522 = vmul.f32 %v521, 1.442695
      %v523 = vpow.pop %v522
      %v524 = vadd.f32 %v523, 1.0
      %v525 = vrcp.pop %v524
      %v526 = vmul.f32 1.0, %v525
      %v527 = vxor.u32 %v518, 2147483648
      %v528 = vmul.f32 %v527, 1.442695
      %v529 = vpow.pop %v528
      %v530 = vadd.f32 %v529, 1.0
      %v531 = vrcp.pop %v530
      %v532 = vmul.f32 1.0, %v531
      %v533 = vtanh.pop %v519
      %v534 = vxor.u32 %v520, 2147483648
      %v535 = vmul.f32 %v534, 1.442695
      %v536 = vpow.pop %v535
      %v537 = vadd.f32 %v536, 1.0
      %v538 = vrcp.pop %v537
      %v539 = vmul.f32 1.0, %v538
      %v540 = vmul.f32 %v532, %v235
      %v541 = vmul.f32 %v526, %v533
      %v542 = vadd.f32 %v540, %v541
      %v543 = vtanh.pop %v542
      %v544 = vmul.f32 %v539, %v543
      %s545 = scalar_lea.vmem %s221, 16
      %v546 = vld [vmem:[%s545] sm:$0xff]
      %v547 = vld [vmem:[%s545 + $0x8] sm:$0xff]
      %v548 = vunpack.c.l.bf16 %v546
      %v549 = vunpack.c.h.bf16 %v546
      %v550 = vunpack.c.l.bf16 %v547
      %v551 = vunpack.c.h.bf16 %v547
      %v552 = vpack.c.bf16 %v544, %v544
      %553 = vmatprep.subr.bf16.mxu0 %v372
      %554 = vmatpush1.bf16.msra.mxu0 %v371
      %555 = vmatprep.subr.bf16.mxu0 %v376
      %556 = vmatpush1.bf16.msra.mxu0 %v375
      %557 = vmatprep.subr.bf16.mxu0 %v380
      %558 = vmatpush1.bf16.msra.mxu0 %v379
      %559 = vmatprep.subr.bf16.mxu0 %v384
      %560 = vmatpush1.bf16.msra.mxu0 %v383
      %561 = vmatprep.subr.bf16.mxu0 %v388
      %562 = vmatpush1.bf16.msra.mxu0 %v387
      %563 = vmatprep.subr.bf16.mxu0 %v392
      %564 = vmatpush1.bf16.msra.mxu0 %v391
      %565 = vmatprep.subr.bf16.mxu0 %v396
      %566 = vmatpush1.bf16.msra.mxu0 %v395
      %567 = vmatprep.subr.bf16.mxu0 %v400
      %568 = vmatpush1.bf16.msra.mxu0 %v399
      %569 = vmatprep.subr.bf16.mxu0 0
      %570 = vmatpush1.bf16.msra.mxu0 0
      %571 = vmatprep.subr.bf16.mxu0 0
      %572 = vmatpush1.bf16.msra.mxu0 0
      %573 = vmatprep.subr.bf16.mxu0 0
      %574 = vmatpush1.bf16.msra.mxu0 0
      %575 = vmatprep.subr.bf16.mxu0 0
      %576 = vmatpush1.bf16.msra.mxu0 0
      %577 = vmatprep.subr.bf16.mxu0 0
      %578 = vmatpush1.bf16.msra.mxu0 0
      %579 = vmatprep.subr.bf16.mxu0 0
      %580 = vmatpush1.bf16.msra.mxu0 0
      %581 = vmatprep.subr.bf16.mxu0 0
      %582 = vmatpush1.bf16.msra.mxu0 0
      %583 = vmatprep.subr.bf16.mxu0 0
      %584 = vmatpush1.bf16.msra.mxu0 0
      %585 = vmatprep.mubr.bf16.mxu0 0
      %586 = vmatmul.mubr.bf16.gmra.mrb[0].mxu0 %v552
      %v587 = vpop.f32.mrb[0].mxu0
      %v588 = vadd.f32 0.0, %v587
      %v589 = vpop.f32.mrb[0].mxu0
      %v590 = vadd.f32 0.0, %v589
      %v591 = vpop.f32.mrb[0].mxu0
      %v592 = vpop.f32.mrb[0].mxu0
      %593 = vdwg.mxu0
      %594 = vmatprep.subr.bf16.mxu0 %v374
      %595 = vmatpush1.bf16.msra.mxu0 %v373
      %596 = vmatprep.subr.bf16.mxu0 %v378
      %597 = vmatpush1.bf16.msra.mxu0 %v377
      %598 = vmatprep.subr.bf16.mxu0 %v382
      %599 = vmatpush1.bf16.msra.mxu0 %v381
      %600 = vmatprep.subr.bf16.mxu0 %v386
      %601 = vmatpush1.bf16.msra.mxu0 %v385
      %602 = vmatprep.subr.bf16.mxu0 %v390
      %603 = vmatpush1.bf16.msra.mxu0 %v389
      %604 = vmatprep.subr.bf16.mxu0 %v394
      %605 = vmatpush1.bf16.msra.mxu0 %v393
      %606 = vmatprep.subr.bf16.mxu0 %v398
      %607 = vmatpush1.bf16.msra.mxu0 %v397
      %608 = vmatprep.subr.bf16.mxu0 %v402
      %609 = vmatpush1.bf16.msra.mxu0 %v401
      %610 = vmatprep.subr.bf16.mxu0 0
      %611 = vmatpush1.bf16.msra.mxu0 0
      %612 = vmatprep.subr.bf16.mxu0 0
      %613 = vmatpush1.bf16.msra.mxu0 0
      %614 = vmatprep.subr.bf16.mxu0 0
      %615 = vmatpush1.bf16.msra.mxu0 0
      %616 = vmatprep.subr.bf16.mxu0 0
      %617 = vmatpush1.bf16.msra.mxu0 0
      %618 = vmatprep.subr.bf16.mxu0 0
      %619 = vmatpush1.bf16.msra.mxu0 0
      %620 = vmatprep.subr.bf16.mxu0 0
      %621 = vmatpush1.bf16.msra.mxu0 0
      %622 = vmatprep.subr.bf16.mxu0 0
      %623 = vmatpush1.bf16.msra.mxu0 0
      %624 = vmatprep.subr.bf16.mxu0 0
      %625 = vmatpush1.bf16.msra.mxu0 0
      %626 = vmatprep.mubr.bf16.mxu0 0
      %627 = vmatmul.mubr.bf16.gmra.mrb[0].mxu0 %v552
      %v628 = vpop.f32.mrb[0].mxu0
      %v629 = vadd.f32 0.0, %v628
      %v630 = vpop.f32.mrb[0].mxu0
      %v631 = vadd.f32 0.0, %v630
      %v632 = vpop.f32.mrb[0].mxu0
      %v633 = vpop.f32.mrb[0].mxu0
      %634 = vdwg.mxu0
      %v635 = vadd.f32 %v548, %v588
      %v636 = vadd.f32 %v549, %v590
      %v637 = vadd.f32 %v550, %v629
      %v638 = vadd.f32 %v551, %v631
      %v639 = vxor.u32 %v635, 2147483648
      %v640 = vmul.f32 %v639, 1.442695
      %v641 = vpow.pop %v640
      %v642 = vadd.f32 %v641, 1.0
      %v643 = vrcp.pop %v642
      %v644 = vmul.f32 1.0, %v643
      %v645 = vxor.u32 %v636, 2147483648
      %v646 = vmul.f32 %v645, 1.442695
      %v647 = vpow.pop %v646
      %v648 = vadd.f32 %v647, 1.0
      %v649 = vrcp.pop %v648
      %v650 = vmul.f32 1.0, %v649
      %v651 = vtanh.pop %v637
      %v652 = vxor.u32 %v638, 2147483648
      %v653 = vmul.f32 %v652, 1.442695
      %v654 = vpow.pop %v653
      %v655 = vadd.f32 %v654, 1.0
      %v656 = vrcp.pop %v655
      %v657 = vmul.f32 1.0, %v656
      %v658 = vmul.f32 %v650, %v542
      %v659 = vmul.f32 %v644, %v651
      %v660 = vadd.f32 %v658, %v659
      %v661 = vtanh.pop %v660
      %v662 = vmul.f32 %v657, %v661
      %s663 = scalar_lea.vmem %s221, 32
      %v664 = vld [vmem:[%s663] sm:$0xff]
      %v665 = vld [vmem:[%s663 + $0x8] sm:$0xff]
      %v666 = vunpack.c.l.bf16 %v664
      %v667 = vunpack.c.h.bf16 %v664
      %v668 = vunpack.c.l.bf16 %v665
      %v669 = vunpack.c.h.bf16 %v665
      %v670 = vpack.c.bf16 %v662, %v662
      %671 = vmatprep.subr.bf16.mxu0 %v372
      %672 = vmatpush1.bf16.msra.mxu0 %v371
      %673 = vmatprep.subr.bf16.mxu0 %v376
      %674 = vmatpush1.bf16.msra.mxu0 %v375
      %675 = vmatprep.subr.bf16.mxu0 %v380
      %676 = vmatpush1.bf16.msra.mxu0 %v379
      %677 = vmatprep.subr.bf16.mxu0 %v384
      %678 = vmatpush1.bf16.msra.mxu0 %v383
      %679 = vmatprep.subr.bf16.mxu0 %v388
      %680 = vmatpush1.bf16.msra.mxu0 %v387
      %681 = vmatprep.subr.bf16.mxu0 %v392
      %682 = vmatpush1.bf16.msra.mxu0 %v391
      %683 = vmatprep.subr.bf16.mxu0 %v396
      %684 = vmatpush1.bf16.msra.mxu0 %v395
      %685 = vmatprep.subr.bf16.mxu0 %v400
      %686 = vmatpush1.bf16.msra.mxu0 %v399
      %687 = vmatprep.subr.bf16.mxu0 0
      %688 = vmatpush1.bf16.msra.mxu0 0
      %689 = vmatprep.subr.bf16.mxu0 0
      %690 = vmatpush1.bf16.msra.mxu0 0
      %691 = vmatprep.subr.bf16.mxu0 0
      %692 = vmatpush1.bf16.msra.mxu0 0
      %693 = vmatprep.subr.bf16.mxu0 0
      %694 = vmatpush1.bf16.msra.mxu0 0
      %695 = vmatprep.subr.bf16.mxu0 0
      %696 = vmatpush1.bf16.msra.mxu0 0
      %697 = vmatprep.subr.bf16.mxu0 0
      %698 = vmatpush1.bf16.msra.mxu0 0
      %699 = vmatprep.subr.bf16.mxu0 0
      %700 = vmatpush1.bf16.msra.mxu0 0
      %701 = vmatprep.subr.bf16.mxu0 0
      %702 = vmatpush1.bf16.msra.mxu0 0
      %703 = vmatprep.mubr.bf16.mxu0 0
      %704 = vmatmul.mubr.bf16.gmra.mrb[0].mxu0 %v670
      %v705 = vpop.f32.mrb[0].mxu0
      %v706 = vadd.f32 0.0, %v705
      %v707 = vpop.f32.mrb[0].mxu0
      %v708 = vadd.f32 0.0, %v707
      %v709 = vpop.f32.mrb[0].mxu0
      %v710 = vpop.f32.mrb[0].mxu0
      %711 = vdwg.mxu0
      %712 = vmatprep.subr.bf16.mxu0 %v374
      %713 = vmatpush1.bf16.msra.mxu0 %v373
      %714 = vmatprep.subr.bf16.mxu0 %v378
      %715 = vmatpush1.bf16.msra.mxu0 %v377
      %716 = vmatprep.subr.bf16.mxu0 %v382
      %717 = vmatpush1.bf16.msra.mxu0 %v381
      %718 = vmatprep.subr.bf16.mxu0 %v386
      %719 = vmatpush1.bf16.msra.mxu0 %v385
      %720 = vmatprep.subr.bf16.mxu0 %v390
      %721 = vmatpush1.bf16.msra.mxu0 %v389
      %722 = vmatprep.subr.bf16.mxu0 %v394
      %723 = vmatpush1.bf16.msra.mxu0 %v393
      %724 = vmatprep.subr.bf16.mxu0 %v398
      %725 = vmatpush1.bf16.msra.mxu0 %v397
      %726 = vmatprep.subr.bf16.mxu0 %v402
      %727 = vmatpush1.bf16.msra.mxu0 %v401
      %728 = vmatprep.subr.bf16.mxu0 0
      %729 = vmatpush1.bf16.msra.mxu0 0
      %730 = vmatprep.subr.bf16.mxu0 0
      %731 = vmatpush1.bf16.msra.mxu0 0
      %732 = vmatprep.subr.bf16.mxu0 0
      %733 = vmatpush1.bf16.msra.mxu0 0
      %734 = vmatprep.subr.bf16.mxu0 0
      %735 = vmatpush1.bf16.msra.mxu0 0
      %736 = vmatprep.subr.bf16.mxu0 0
      %737 = vmatpush1.bf16.msra.mxu0 0
      %738 = vmatprep.subr.bf16.mxu0 0
      %739 = vmatpush1.bf16.msra.mxu0 0
      %740 = vmatprep.subr.bf16.mxu0 0
      %741 = vmatpush1.bf16.msra.mxu0 0
      %742 = vmatprep.subr.bf16.mxu0 0
      %743 = vmatpush1.bf16.msra.mxu0 0
      %744 = vmatprep.mubr.bf16.mxu0 0
      %745 = vmatmul.mubr.bf16.gmra.mrb[0].mxu0 %v670
      %v746 = vpop.f32.mrb[0].mxu0
      %v747 = vadd.f32 0.0, %v746
      %v748 = vpop.f32.mrb[0].mxu0
      %v749 = vadd.f32 0.0, %v748
      %v750 = vpop.f32.mrb[0].mxu0
      %v751 = vpop.f32.mrb[0].mxu0
      %752 = vdwg.mxu0
      %v753 = vadd.f32 %v666, %v706
      %v754 = vadd.f32 %v667, %v708
      %v755 = vadd.f32 %v668, %v747
      %v756 = vadd.f32 %v669, %v749
      %v757 = vxor.u32 %v753, 2147483648
      %v758 = vmul.f32 %v757, 1.442695
      %v759 = vpow.pop %v758
      %v760 = vadd.f32 %v759, 1.0
      %v761 = vrcp.pop %v760
      %v762 = vmul.f32 1.0, %v761
      %v763 = vxor.u32 %v754, 2147483648
      %v764 = vmul.f32 %v763, 1.442695
      %v765 = vpow.pop %v764
      %v766 = vadd.f32 %v765, 1.0
      %v767 = vrcp.pop %v766
      %v768 = vmul.f32 1.0, %v767
      %v769 = vtanh.pop %v755
      %v770 = vxor.u32 %v756, 2147483648
      %v771 = vmul.f32 %v770, 1.442695
      %v772 = vpow.pop %v771
      %v773 = vadd.f32 %v772, 1.0
      %v774 = vrcp.pop %v773
      %v775 = vmul.f32 1.0, %v774
      %v776 = vmul.f32 %v768, %v660
      %v777 = vmul.f32 %v762, %v769
      %v778 = vadd.f32 %v776, %v777
      %v779 = vtanh.pop %v778
      %v780 = vmul.f32 %v775, %v779
      %s781 = scalar_lea.vmem %s221, 48
      %v782 = vld [vmem:[%s781] sm:$0xff]
      %v783 = vld [vmem:[%s781 + $0x8] sm:$0xff]
      %v784 = vunpack.c.l.bf16 %v782
      %v785 = vunpack.c.h.bf16 %v782
      %v786 = vunpack.c.l.bf16 %v783
      %v787 = vunpack.c.h.bf16 %v783
      %v788 = vpack.c.bf16 %v780, %v780
      %789 = vmatprep.subr.bf16.mxu0 %v372
      %790 = vmatpush1.bf16.msra.mxu0 %v371
      %791 = vmatprep.subr.bf16.mxu0 %v376
      %792 = vmatpush1.bf16.msra.mxu0 %v375
      %793 = vmatprep.subr.bf16.mxu0 %v380
      %794 = vmatpush1.bf16.msra.mxu0 %v379
      %795 = vmatprep.subr.bf16.mxu0 %v384
      %796 = vmatpush1.bf16.msra.mxu0 %v383
      %797 = vmatprep.subr.bf16.mxu0 %v388
      %798 = vmatpush1.bf16.msra.mxu0 %v387
      %799 = vmatprep.subr.bf16.mxu0 %v392
      %800 = vmatpush1.bf16.msra.mxu0 %v391
      %801 = vmatprep.subr.bf16.mxu0 %v396
      %802 = vmatpush1.bf16.msra.mxu0 %v395
      %803 = vmatprep.subr.bf16.mxu0 %v400
      %804 = vmatpush1.bf16.msra.mxu0 %v399
      %805 = vmatprep.subr.bf16.mxu0 0
      %806 = vmatpush1.bf16.msra.mxu0 0
      %807 = vmatprep.subr.bf16.mxu0 0
      %808 = vmatpush1.bf16.msra.mxu0 0
      %809 = vmatprep.subr.bf16.mxu0 0
      %810 = vmatpush1.bf16.msra.mxu0 0
      %811 = vmatprep.subr.bf16.mxu0 0
      %812 = vmatpush1.bf16.msra.mxu0 0
      %813 = vmatprep.subr.bf16.mxu0 0
      %814 = vmatpush1.bf16.msra.mxu0 0
      %815 = vmatprep.subr.bf16.mxu0 0
      %816 = vmatpush1.bf16.msra.mxu0 0
      %817 = vmatprep.subr.bf16.mxu0 0
      %818 = vmatpush1.bf16.msra.mxu0 0
      %819 = vmatprep.subr.bf16.mxu0 0
      %820 = vmatpush1.bf16.msra.mxu0 0
      %821 = vmatprep.mubr.bf16.mxu0 0
      %822 = vmatmul.mubr.bf16.gmra.mrb[0].mxu0 %v788
      %v823 = vpop.f32.mrb[0].mxu0
      %v824 = vadd.f32 0.0, %v823
      %v825 = vpop.f32.mrb[0].mxu0
      %v826 = vadd.f32 0.0, %v825
      %v827 = vpop.f32.mrb[0].mxu0
      %v828 = vpop.f32.mrb[0].mxu0
      %829 = vdwg.mxu0
      %830 = vmatprep.subr.bf16.mxu0 %v374
      %831 = vmatpush1.bf16.msra.mxu0 %v373
      %832 = vmatprep.subr.bf16.mxu0 %v378
      %833 = vmatpush1.bf16.msra.mxu0 %v377
      %834 = vmatprep.subr.bf16.mxu0 %v382
      %835 = vmatpush1.bf16.msra.mxu0 %v381
      %836 = vmatprep.subr.bf16.mxu0 %v386
      %837 = vmatpush1.bf16.msra.mxu0 %v385
      %838 = vmatprep.subr.bf16.mxu0 %v390
      %839 = vmatpush1.bf16.msra.mxu0 %v389
      %840 = vmatprep.subr.bf16.mxu0 %v394
      %841 = vmatpush1.bf16.msra.mxu0 %v393
      %842 = vmatprep.subr.bf16.mxu0 %v398
      %843 = vmatpush1.bf16.msra.mxu0 %v397
      %844 = vmatprep.subr.bf16.mxu0 %v402
      %845 = vmatpush1.bf16.msra.mxu0 %v401
      %846 = vmatprep.subr.bf16.mxu0 0
      %847 = vmatpush1.bf16.msra.mxu0 0
      %848 = vmatprep.subr.bf16.mxu0 0
      %849 = vmatpush1.bf16.msra.mxu0 0
      %850 = vmatprep.subr.bf16.mxu0 0
      %851 = vmatpush1.bf16.msra.mxu0 0
      %852 = vmatprep.subr.bf16.mxu0 0
      %853 = vmatpush1.bf16.msra.mxu0 0
      %854 = vmatprep.subr.bf16.mxu0 0
      %855 = vmatpush1.bf16.msra.mxu0 0
      %856 = vmatprep.subr.bf16.mxu0 0
      %857 = vmatpush1.bf16.msra.mxu0 0
      %858 = vmatprep.subr.bf16.mxu0 0
      %859 = vmatpush1.bf16.msra.mxu0 0
      %860 = vmatprep.subr.bf16.mxu0 0
      %861 = vmatpush1.bf16.msra.mxu0 0
      %862 = vmatprep.mubr.bf16.mxu0 0
      %863 = vmatmul.mubr.bf16.gmra.mrb[0].mxu0 %v788
      %v864 = vpop.f32.mrb[0].mxu0
      %v865 = vadd.f32 0.0, %v864
      %v866 = vpop.f32.mrb[0].mxu0
      %v867 = vadd.f32 0.0, %v866
      %v868 = vpop.f32.mrb[0].mxu0
      %v869 = vpop.f32.mrb[0].mxu0
      %870 = vdwg.mxu0
      %v871 = vadd.f32 %v784, %v824
      %v872 = vadd.f32 %v785, %v826
      %v873 = vadd.f32 %v786, %v865
      %v874 = vadd.f32 %v787, %v867
      %v875 = vxor.u32 %v871, 2147483648
      %v876 = vmul.f32 %v875, 1.442695
      %v877 = vpow.pop %v876
      %v878 = vadd.f32 %v877, 1.0
      %v879 = vrcp.pop %v878
      %v880 = vmul.f32 1.0, %v879
      %v881 = vxor.u32 %v872, 2147483648
      %v882 = vmul.f32 %v881, 1.442695
      %v883 = vpow.pop %v882
      %v884 = vadd.f32 %v883, 1.0
      %v885 = vrcp.pop %v884
      %v886 = vmul.f32 1.0, %v885
      %v887 = vtanh.pop %v873
      %v888 = vxor.u32 %v874, 2147483648
      %v889 = vmul.f32 %v888, 1.442695
      %v890 = vpow.pop %v889
      %v891 = vadd.f32 %v890, 1.0
      %v892 = vrcp.pop %v891
      %v893 = vmul.f32 1.0, %v892
      %v894 = vmul.f32 %v886, %v778
      %v895 = vmul.f32 %v880, %v887
      %v896 = vadd.f32 %v894, %v895
      %v897 = vtanh.pop %v896
      %v898 = vmul.f32 %v893, %v897
      %899 = vst [vmem:[#allocation2] sm:$0xff] %v898
      %900 = vst [vmem:[#allocation3] sm:$0xff] %v896
      %p901 = scmp.eq.s32.totalorder %s20, 1
      // Predicated region
      $region41: #{lstm_model_forward.3} parent=35 // pred_check
        %p902 = pneg %p901
      $region42: #{lstm_model_forward.3} parent=35 // pred_check_branch
        %904 = sbr.rel (%p902) target = $region44
      $region43: #{lstm_model_forward.3} parent=35 // pred_region
        %v905 = vpack.c.bf16 %v898, %v898
        %v906 = vld [vmem:[%s2] sm:$0xf]
        %v907 = vld [vmem:[%s2 + $0x4] sm:$0xf]
        %v908 = vld [vmem:[%s2 + $0x8] sm:$0xf]
        %v909 = vld [vmem:[%s2 + $0xc] sm:$0xf]
        %v910 = vld [vmem:[%s2 + $0x10] sm:$0xf]
        %v911 = vld [vmem:[%s2 + $0x14] sm:$0xf]
        %v912 = vld [vmem:[%s2 + $0x18] sm:$0xf]
        %v913 = vld [vmem:[%s2 + $0x1c] sm:$0xf]
        %v914 = vld [vmem:[%s2 + $0x20] sm:$0xf]
        %v915 = vld [vmem:[%s2 + $0x24] sm:$0xf]
        %v916 = vld [vmem:[%s2 + $0x28] sm:$0xf]
        %v917 = vld [vmem:[%s2 + $0x2c] sm:$0xf]
        %v918 = vld [vmem:[%s2 + $0x30] sm:$0xf]
        %v919 = vld [vmem:[%s2 + $0x34] sm:$0xf]
        %v920 = vld [vmem:[%s2 + $0x38] sm:$0xf]
        %v921 = vld [vmem:[%s2 + $0x3c] sm:$0xf]
        %v922 = vld [vmem:[%s3] sm:$0x1]
        %v924 = vlaneseq
        %v925 = vshrl.u32 %v924, 7
        %v926 = vsub.s32 0, %v925
        %v927 = vrot.slane %v922, %v926
        %v945 = vunpack.c.l.b16 %v906
        %v946 = vunpack.c.l.b16 %v907
        %v947 = vunpack.c.l.b16 %v908
        %v948 = vunpack.c.l.b16 %v909
        %v949 = vunpack.c.l.b16 %v910
        %v950 = vunpack.c.l.b16 %v911
        %v951 = vunpack.c.l.b16 %v912
        %v952 = vunpack.c.l.b16 %v913
        %v953 = vunpack.c.l.b16 %v914
        %v954 = vunpack.c.l.b16 %v915
        %v955 = vunpack.c.l.b16 %v916
        %v956 = vunpack.c.l.b16 %v917
        %v957 = vunpack.c.l.b16 %v918
        %v958 = vunpack.c.l.b16 %v919
        %v959 = vunpack.c.l.b16 %v920
        %v960 = vunpack.c.l.b16 %v921
        %v961 = vpack.c.b16 %v946, %v945
        %v962 = vpack.c.b16 %v948, %v947
        %v963 = vpack.c.b16 %v950, %v949
        %v964 = vpack.c.b16 %v952, %v951
        %v965 = vpack.c.b16 %v954, %v953
        %v966 = vpack.c.b16 %v956, %v955
        %v967 = vpack.c.b16 %v958, %v957
        %v968 = vpack.c.b16 %v960, %v959
        %977 = vmatprep.subr.bf16.mxu0 0
        %978 = vmatpush1.bf16.msra.mxu0 %v961
        %979 = vmatprep.subr.bf16.mxu0 0
        %980 = vmatpush1.bf16.msra.mxu0 %v962
        %981 = vmatprep.subr.bf16.mxu0 0
        %982 = vmatpush1.bf16.msra.mxu0 %v963
        %983 = vmatprep.subr.bf16.mxu0 0
        %984 = vmatpush1.bf16.msra.mxu0 %v964
        %985 = vmatprep.subr.bf16.mxu0 0
        %986 = vmatpush1.bf16.msra.mxu0 %v965
        %987 = vmatprep.subr.bf16.mxu0 0
        %988 = vmatpush1.bf16.msra.mxu0 %v966
        %989 = vmatprep.subr.bf16.mxu0 0
        %990 = vmatpush1.bf16.msra.mxu0 %v967
        %991 = vmatprep.subr.bf16.mxu0 0
        %992 = vmatpush1.bf16.msra.mxu0 %v968
        %993 = vmatprep.subr.bf16.mxu0 0
        %994 = vmatpush1.bf16.msra.mxu0 0
        %995 = vmatprep.subr.bf16.mxu0 0
        %996 = vmatpush1.bf16.msra.mxu0 0
        %997 = vmatprep.subr.bf16.mxu0 0
        %998 = vmatpush1.bf16.msra.mxu0 0
        %999 = vmatprep.subr.bf16.mxu0 0
        %1000 = vmatpush1.bf16.msra.mxu0 0
        %1001 = vmatprep.subr.bf16.mxu0 0
        %1002 = vmatpush1.bf16.msra.mxu0 0
        %1003 = vmatprep.subr.bf16.mxu0 0
        %1004 = vmatpush1.bf16.msra.mxu0 0
        %1005 = vmatprep.subr.bf16.mxu0 0
        %1006 = vmatpush1.bf16.msra.mxu0 0
        %1007 = vmatprep.subr.bf16.mxu0 0
        %1008 = vmatpush1.bf16.msra.mxu0 0
        %1009 = vmatprep.mubr.bf16.mxu0 0
        %1010 = vmatmul.mubr.bf16.gmra.mrb[0].mxu0 %v905
        %v1011 = vpop.f32.mrb[0].mxu0
        %v1012 = vadd.f32 %v927, %v1011
        %v1013 = vpop.f32.mrb[0].mxu0
        %v1014 = vpop.f32.mrb[0].mxu0
        %v1015 = vpop.f32.mrb[0].mxu0
        %1016 = vdwg.mxu0
        %1017 = vst [vmem:[%s226] sm:$0xff] %v1012
      $region44: #{lstm_model_forward.3} parent=35 // pred_fallthru
        _
      %p1018 = scmp.lt.s32.totalorder %s19, 0
      %s1019 = scalar_select %p1018, %s19, 0
      %s1020 = smul.addr %s1019, 8
      %s1021 = scalar_lea.vmem %s4, %s1020
      // Predicated region
      $region45: #{lstm_model_forward.3} parent=35 // pred_check
        %p1022 = pneg %p136
      $region46: #{lstm_model_forward.3} parent=35 // pred_check_branch
        %1024 = sbr.rel (%p1022) target = $region48
      $region47: #{lstm_model_forward.3} parent=35 // pred_region
        _
      $region48: #{lstm_model_forward.3} parent=35 // pred_fallthru
        _
      // Predicated region
      $region49: #{lstm_model_forward.3} parent=35 // pred_check
        %p1025 = pneg %p136
      $region50: #{lstm_model_forward.3} parent=35 // pred_check_branch
        %1027 = sbr.rel (%p1025) target = $region52
      $region51: #{lstm_model_forward.3} parent=35 // pred_region
        %p1028 = scmp.lt.s32.totalorder %s19, 0
        %s1029 = scalar_select %p1028, %s19, 0
        %s1030 = smul.addr %s1029, 8
        %s1031 = scalar_lea.vmem %s4, %s1030
      $region52: #{lstm_model_forward.3} parent=35 // pred_fallthru
        _
    $region36: #{lstm_model_forward.3} parent=5 // pred_fallthru
      _
    %p1032 = scmp.le.s32.totalorder 2, %s10
    // Predicated region
    $region53: #{lstm_model_forward.3} parent=5 // pred_check
      %p1033 = pneg %p1032
    $region54: #{lstm_model_forward.3} parent=5 // pred_check_branch
      %1035 = sbr.rel (%p1033) target = $region56
    $region55: #{lstm_model_forward.3} parent=5 // pred_region
      %s1036 = ssub.s32 %s10, 2
    $region56: #{lstm_model_forward.3} parent=5 // pred_fallthru
      _
  $region6: #{lstm_model_forward.3} parent=0 // loop_footer
    %s14 = sadd.s32 1, %s10
  $region7: #{lstm_model_forward.3} parent=0 // loop_footer_branch
    %9 = sbr.rel target = $region3
  $region8: #{lstm_model_forward.3} parent=0 // loop_exit
    _

</llo_original>
